<compile_context>
chip_gen: v7x
topology: tpu7x:2x2x1
jax: 0.10.0
libtpu: 0.0.40
codegen_flags: <defaults>
</compile_context>

<pallas_src>
import jax
import jax.numpy as jnp
from jax import lax
from jax.experimental import pallas as pl
from jax.experimental.pallas import tpu as pltpu


def _accum_conv3x3(tap_fn, w_ref, n_rows, n_cols):
    """sum over 9 taps of (n_rows*n_cols, C) @ (C, Cout), f32 accumulation."""
    acc = None
    for t in range(9):
        ky, kx = divmod(t, 3)
        tap = tap_fn(ky, kx).reshape(n_rows * n_cols, -1)
        part = jnp.dot(tap, w_ref[t], preferred_element_type=jnp.float32)
        acc = part if acc is None else acc + part
    return acc


def _double_conv_kernel(x_ref, w1_ref, b1_ref, w2_ref, b2_ref, out_ref,
                        mid_ref):
    """Fused (conv3x3 + folded-BN bias + ReLU) * 2 for one (batch, H-tile).

    x_ref   : (1, Th+4, W+2, Cin_p)   pre-padded bf16 input slab (halos incl.)
    w1_ref  : (9, Cin_p, Cout_p)      conv1 weights (BN scale folded), bf16
    b1_ref  : (1, Cout_p)             folded bias, layer 1 (f32)
    w2_ref  : (9, Cout_p, Cout_p)     conv2 weights (BN scale folded), bf16
    b2_ref  : (1, Cout_p)             folded bias, layer 2 (f32)
    out_ref : (1, Th, W, Cout_p)      f32 output tile
    mid_ref : (Th+2, W+2, Cout_p)     bf16 scratch: padded intermediate y1
    """
    Th = out_ref.shape[1]
    W = out_ref.shape[2]
    cout = out_ref.shape[3]
    mrows = Th + 2
    h = pl.program_id(1)
    n_th = pl.num_programs(1)

    # ---- conv1 + bias + ReLU over the (Th+2, W) intermediate region --------
    acc1 = _accum_conv3x3(
        lambda ky, kx: x_ref[0, ky:ky + mrows, kx:kx + W, :],
        w1_ref, mrows, W)
    y1 = jnp.maximum(acc1 + b1_ref[...], 0.0)
    mid_ref[:, 1:1 + W, :] = y1.reshape(mrows, W, cout).astype(mid_ref.dtype)

    # conv2's zero padding: 1-column halos every step (cheap, no cross-step
    # state), top/bottom halo rows only at the global image boundary.
    mid_ref[:, 0:1, :] = jnp.zeros((mrows, 1, cout), mid_ref.dtype)
    mid_ref[:, W + 1:W + 2, :] = jnp.zeros((mrows, 1, cout), mid_ref.dtype)

    @pl.when(h == 0)
    def _():
        mid_ref[0:1, :, :] = jnp.zeros((1, W + 2, cout), mid_ref.dtype)

    @pl.when(h == n_th - 1)
    def _():
        mid_ref[mrows - 1:mrows, :, :] = jnp.zeros((1, W + 2, cout),
                                                   mid_ref.dtype)

    # ---- conv2 + bias + ReLU ------------------------------------------------
    acc2 = _accum_conv3x3(
        lambda ky, kx: mid_ref[ky:ky + Th, kx:kx + W, :],
        w2_ref, Th, W)
    y2 = jnp.maximum(acc2 + b2_ref[...], 0.0)
    out_ref[0] = y2.reshape(Th, W, cout).astype(out_ref.dtype)


def _pad_to_lanes(c, lanes=128):
    return ((c + lanes - 1) // lanes) * lanes


def _pick_tile_h(h, target=64):
    th = min(target, h)
    while h % th:
        th -= 1
    return th


def double_conv_forward(x_nchw, w1, scale1, bias1, w2, scale2, bias2,
                        *, tile_h=None):
    """Pallas forward of DoubleConv (eval-mode BN). NCHW in/out like PyTorch."""
    N, Cin, H, W = x_nchw.shape
    Cout = w1.shape[-1]
    Cin_p = _pad_to_lanes(Cin)
    Cout_p = _pad_to_lanes(Cout)
    Th = _pick_tile_h(H) if tile_h is None else tile_h
    assert H % Th == 0, (H, Th)
    n_th = H // Th

    # NHWC, spatial halo pad (2 rows / 1 col each side), lane-padded channels,
    # bf16 on the DMA/MXU path (f32 accumulation in-kernel).
    x = jnp.transpose(x_nchw, (0, 2, 3, 1)).astype(jnp.float32)
    x = jnp.pad(x, ((0, 0), (2, 2), (1, 1), (0, Cin_p - Cin)))
    x = x.astype(jnp.bfloat16)
    # Overlapping H-tiles (tile_h + 4 rows each) so plain BlockSpecs can
    # auto-pipeline them without a halo DMA.
    row_idx = jnp.arange(n_th)[:, None] * Th + jnp.arange(Th + 4)[None, :]
    x_tiles = x[:, row_idx].reshape(N * n_th, Th + 4, W + 2, Cin_p)

    def prep_w(w, scale, cin_p, cout_p):
        # Fold BN scale into the conv weights in f32, then pad + bf16-cast.
        kh, kw, cin, cout = w.shape
        wf = w.astype(jnp.float32) * scale.astype(jnp.float32)[None, None, None, :]
        wf = jnp.pad(wf, ((0, 0), (0, 0), (0, cin_p - cin), (0, cout_p - cout)))
        return wf.reshape(kh * kw, cin_p, cout_p).astype(jnp.bfloat16)

    def prep_b(b, cout_p):
        bp = jnp.pad(b.astype(jnp.float32), (0, cout_p - b.shape[0]))
        return bp.reshape(1, cout_p)

    w1p = prep_w(w1, scale1, Cin_p, Cout_p)
    w2p = prep_w(w2, scale2, Cout_p, Cout_p)
    b1p = prep_b(bias1, Cout_p)
    b2p = prep_b(bias2, Cout_p)

    out_nhwc = pl.pallas_call(
        _double_conv_kernel,
        out_shape=jax.ShapeDtypeStruct((N, H, W, Cout_p), jnp.float32),
        grid_spec=pltpu.PrefetchScalarGridSpec(
            num_scalar_prefetch=0,
            grid=(N, n_th),
            in_specs=[
                pl.BlockSpec((1, Th + 4, W + 2, Cin_p),
                             lambda n, h: (n * n_th + h, 0, 0, 0)),
                pl.BlockSpec((9, Cin_p, Cout_p), lambda n, h: (0, 0, 0)),
                pl.BlockSpec((1, Cout_p), lambda n, h: (0, 0)),
                pl.BlockSpec((9, Cout_p, Cout_p), lambda n, h: (0, 0, 0)),
                pl.BlockSpec((1, Cout_p), lambda n, h: (0, 0)),
            ],
            out_specs=pl.BlockSpec((1, Th, W, Cout_p),
                                   lambda n, h: (n, h, 0, 0)),
            scratch_shapes=[
                pltpu.VMEM((Th + 2, W + 2, Cout_p), jnp.bfloat16),
            ],
        ),
        compiler_params=pltpu.CompilerParams(
            dimension_semantics=("parallel", "parallel"),
            vmem_limit_bytes=32 * 1024 * 1024),
    )(x_tiles, w1p, b1p, w2p, b2p)

    out_nhwc = out_nhwc[..., :Cout]                        # drop lane padding
    return jnp.transpose(out_nhwc, (0, 3, 1, 2))           # back to NCHW


def _ref_forward(x_nchw, w1, scale1, bias1, w2, scale2, bias2):
    """Pure-JAX reference mirroring the kernel's bf16 quantization points."""
    x = jnp.transpose(x_nchw, (0, 2, 3, 1)).astype(jnp.float32)
    for (w, s, b) in ((w1, scale1, bias1), (w2, scale2, bias2)):
        wf = (w.astype(jnp.float32) * s[None, None, None, :]).astype(jnp.bfloat16)
        y = lax.conv_general_dilated(
            x.astype(jnp.bfloat16), wf, (1, 1), 'SAME',
            dimension_numbers=('NHWC', 'HWIO', 'NHWC'),
            preferred_element_type=jnp.float32)
        x = jnp.maximum(y + b[None, None, None, :], 0.0)
    return jnp.transpose(x, (0, 3, 1, 2))


def _make_layer_params(key, cin, cout, eps=1e-5):
    """Deterministic conv weight + folded-BN scale/bias (eval-mode BN)."""
    k = jax.random.split(key, 6)
    w = jax.random.normal(k[0], (3, 3, cin, cout), jnp.float32) * 0.1   # HWIO
    conv_b = jax.random.normal(k[1], (cout,), jnp.float32) * 0.1
    gamma = 1.0 + 0.1 * jax.random.normal(k[2], (cout,), jnp.float32)
    beta = 0.1 * jax.random.normal(k[3], (cout,), jnp.float32)
    run_mean = 0.1 * jax.random.normal(k[4], (cout,), jnp.float32)
    run_var = 1.0 + 0.1 * jnp.abs(jax.random.normal(k[5], (cout,), jnp.float32))
    scale = gamma / jnp.sqrt(run_var + eps)
    bias = beta + (conv_b - run_mean) * scale
    return w, scale, bias


if __name__ == "__main__":
    N, Cin, Cout, H, W = 2, 4, 8, 16, 16

    key = jax.random.PRNGKey(0)
    kx, k1, k2 = jax.random.split(key, 3)

    x = jax.random.normal(kx, (N, Cin, H, W), jnp.float32)   # NCHW like PyTorch
    w1, s1, b1 = _make_layer_params(k1, Cin, Cout)
    w2, s2, b2 = _make_layer_params(k2, Cout, Cout)

    # tile_h=8 exercises the multi-tile path (2 H-tiles per image).
    out = double_conv_forward(x, w1, s1, b1, w2, s2, b2, tile_h=8)
    out = jax.block_until_ready(out)

    ref = _ref_forward(x, w1, s1, b1, w2, s2, b2)
    assert out.shape == (N, Cout, H, W), out.shape
    max_err = float(jnp.max(jnp.abs(out - ref)))
    assert jnp.allclose(out, ref, atol=2e-3, rtol=2e-3), max_err

    print("KERNEL_OK")
</pallas_src>

<mosaic_0001>
module attributes {stable_mosaic.version = 11 : i64} {
  func.func @_double_conv_kernel(%arg0: i32, %arg1: i32, %arg2: memref<1x12x18x128xbf16, #tpu.memory_space<vmem>>, %arg3: memref<9x128x128xbf16, #tpu.memory_space<vmem>>, %arg4: memref<1x128xf32, #tpu.memory_space<vmem>>, %arg5: memref<9x128x128xbf16, #tpu.memory_space<vmem>>, %arg6: memref<1x128xf32, #tpu.memory_space<vmem>>, %arg7: memref<1x8x16x128xf32, #tpu.memory_space<vmem>>, %arg8: memref<10x18x128xbf16, #tpu.memory_space<vmem>>) attributes {dimension_semantics = [#tpu.dimension_semantics<parallel>, #tpu.dimension_semantics<parallel>], iteration_bounds = array<i64: 2, 2>, scalar_prefetch = 0 : i64, scratch_operands = 1 : i64, tpu.core_type = #tpu.core_type<tc>, window_params = [{transform_indices = @transform_0, window_bounds = array<i64: 1, 12, 18, 128>}, {pipeline_mode = #tpu.pipeline_mode<synchronous>, transform_indices = @transform_1, window_bounds = array<i64: 9, 128, 128>}, {pipeline_mode = #tpu.pipeline_mode<synchronous>, transform_indices = @transform_2, window_bounds = array<i64: 1, 128>}, {pipeline_mode = #tpu.pipeline_mode<synchronous>, transform_indices = @transform_3, window_bounds = array<i64: 9, 128, 128>}, {pipeline_mode = #tpu.pipeline_mode<synchronous>, transform_indices = @transform_4, window_bounds = array<i64: 1, 128>}, {transform_indices = @transform_5, window_bounds = array<i64: 1, 8, 16, 128>}]} {
    %c0 = arith.constant 0 : index
    %c0_0 = arith.constant 0 : index
    %c0_1 = arith.constant 0 : index
    %c0_2 = arith.constant 0 : index
    %0 = vector.load %arg2[%c0, %c0_0, %c0_1, %c0_2] : memref<1x12x18x128xbf16, #tpu.memory_space<vmem>>, vector<1x10x16x128xbf16>
    %1 = vector.shape_cast %0 : vector<1x10x16x128xbf16> to vector<10x16x128xbf16>
    %2 = vector.shape_cast %1 : vector<10x16x128xbf16> to vector<160x128xbf16>
    %c0_3 = arith.constant 0 : index
    %c0_4 = arith.constant 0 : index
    %c0_5 = arith.constant 0 : index
    %3 = vector.load %arg3[%c0_3, %c0_4, %c0_5] : memref<9x128x128xbf16, #tpu.memory_space<vmem>>, vector<1x128x128xbf16>
    %4 = vector.shape_cast %3 : vector<1x128x128xbf16> to vector<128x128xbf16>
    %cst = arith.constant dense<0.000000e+00> : vector<160x128xf32>
    %5 = tpu.matmul %2, %4, %cst {dimension_numbers = #tpu.dot_dimension_numbers<[1], [0], [0], [1], [0, 0, 1, 1], [], []>} : vector<160x128xbf16>, vector<128x128xbf16>, vector<160x128xf32> -> vector<160x128xf32>
    %c0_6 = arith.constant 0 : index
    %c0_7 = arith.constant 0 : index
    %c1 = arith.constant 1 : index
    %c0_8 = arith.constant 0 : index
    %6 = vector.load %arg2[%c0_6, %c0_7, %c1, %c0_8] : memref<1x12x18x128xbf16, #tpu.memory_space<vmem>>, vector<1x10x16x128xbf16>
    %7 = vector.shape_cast %6 : vector<1x10x16x128xbf16> to vector<10x16x128xbf16>
    %8 = vector.shape_cast %7 : vector<10x16x128xbf16> to vector<160x128xbf16>
    %c1_9 = arith.constant 1 : index
    %c0_10 = arith.constant 0 : index
    %c0_11 = arith.constant 0 : index
    %9 = vector.load %arg3[%c1_9, %c0_10, %c0_11] : memref<9x128x128xbf16, #tpu.memory_space<vmem>>, vector<1x128x128xbf16>
    %10 = vector.shape_cast %9 : vector<1x128x128xbf16> to vector<128x128xbf16>
    %cst_12 = arith.constant dense<0.000000e+00> : vector<160x128xf32>
    %11 = tpu.matmul %8, %10, %cst_12 {dimension_numbers = #tpu.dot_dimension_numbers<[1], [0], [0], [1], [0, 0, 1, 1], [], []>} : vector<160x128xbf16>, vector<128x128xbf16>, vector<160x128xf32> -> vector<160x128xf32>
    %12 = arith.addf %5, %11 : vector<160x128xf32>
    %c0_13 = arith.constant 0 : index
    %c0_14 = arith.constant 0 : index
    %c2 = arith.constant 2 : index
    %c0_15 = arith.constant 0 : index
    %13 = vector.load %arg2[%c0_13, %c0_14, %c2, %c0_15] : memref<1x12x18x128xbf16, #tpu.memory_space<vmem>>, vector<1x10x16x128xbf16>
    %14 = vector.shape_cast %13 : vector<1x10x16x128xbf16> to vector<10x16x128xbf16>
    %15 = vector.shape_cast %14 : vector<10x16x128xbf16> to vector<160x128xbf16>
    %c2_16 = arith.constant 2 : index
    %c0_17 = arith.constant 0 : index
    %c0_18 = arith.constant 0 : index
    %16 = vector.load %arg3[%c2_16, %c0_17, %c0_18] : memref<9x128x128xbf16, #tpu.memory_space<vmem>>, vector<1x128x128xbf16>
    %17 = vector.shape_cast %16 : vector<1x128x128xbf16> to vector<128x128xbf16>
    %cst_19 = arith.constant dense<0.000000e+00> : vector<160x128xf32>
    %18 = tpu.matmul %15, %17, %cst_19 {dimension_numbers = #tpu.dot_dimension_numbers<[1], [0], [0], [1], [0, 0, 1, 1], [], []>} : vector<160x128xbf16>, vector<128x128xbf16>, vector<160x128xf32> -> vector<160x128xf32>
    %19 = arith.addf %12, %18 : vector<160x128xf32>
    %c0_20 = arith.constant 0 : index
    %c1_21 = arith.constant 1 : index
    %c0_22 = arith.constant 0 : index
    %c0_23 = arith.constant 0 : index
    %20 = vector.load %arg2[%c0_20, %c1_21, %c0_22, %c0_23] : memref<1x12x18x128xbf16, #tpu.memory_space<vmem>>, vector<1x10x16x128xbf16>
    %21 = vector.shape_cast %20 : vector<1x10x16x128xbf16> to vector<10x16x128xbf16>
    %22 = vector.shape_cast %21 : vector<10x16x128xbf16> to vector<160x128xbf16>
    %c3 = arith.constant 3 : index
    %c0_24 = arith.constant 0 : index
    %c0_25 = arith.constant 0 : index
    %23 = vector.load %arg3[%c3, %c0_24, %c0_25] : memref<9x128x128xbf16, #tpu.memory_space<vmem>>, vector<1x128x128xbf16>
    %24 = vector.shape_cast %23 : vector<1x128x128xbf16> to vector<128x128xbf16>
    %cst_26 = arith.constant dense<0.000000e+00> : vector<160x128xf32>
    %25 = tpu.matmul %22, %24, %cst_26 {dimension_numbers = #tpu.dot_dimension_numbers<[1], [0], [0], [1], [0, 0, 1, 1], [], []>} : vector<160x128xbf16>, vector<128x128xbf16>, vector<160x128xf32> -> vector<160x128xf32>
    %26 = arith.addf %19, %25 : vector<160x128xf32>
    %c0_27 = arith.constant 0 : index
    %c1_28 = arith.constant 1 : index
    %c1_29 = arith.constant 1 : index
    %c0_30 = arith.constant 0 : index
    %27 = vector.load %arg2[%c0_27, %c1_28, %c1_29, %c0_30] : memref<1x12x18x128xbf16, #tpu.memory_space<vmem>>, vector<1x10x16x128xbf16>
    %28 = vector.shape_cast %27 : vector<1x10x16x128xbf16> to vector<10x16x128xbf16>
    %29 = vector.shape_cast %28 : vector<10x16x128xbf16> to vector<160x128xbf16>
    %c4 = arith.constant 4 : index
    %c0_31 = arith.constant 0 : index
    %c0_32 = arith.constant 0 : index
    %30 = vector.load %arg3[%c4, %c0_31, %c0_32] : memref<9x128x128xbf16, #tpu.memory_space<vmem>>, vector<1x128x128xbf16>
    %31 = vector.shape_cast %30 : vector<1x128x128xbf16> to vector<128x128xbf16>
    %cst_33 = arith.constant dense<0.000000e+00> : vector<160x128xf32>
    %32 = tpu.matmul %29, %31, %cst_33 {dimension_numbers = #tpu.dot_dimension_numbers<[1], [0], [0], [1], [0, 0, 1, 1], [], []>} : vector<160x128xbf16>, vector<128x128xbf16>, vector<160x128xf32> -> vector<160x128xf32>
    %33 = arith.addf %26, %32 : vector<160x128xf32>
    %c0_34 = arith.constant 0 : index
    %c1_35 = arith.constant 1 : index
    %c2_36 = arith.constant 2 : index
    %c0_37 = arith.constant 0 : index
    %34 = vector.load %arg2[%c0_34, %c1_35, %c2_36, %c0_37] : memref<1x12x18x128xbf16, #tpu.memory_space<vmem>>, vector<1x10x16x128xbf16>
    %35 = vector.shape_cast %34 : vector<1x10x16x128xbf16> to vector<10x16x128xbf16>
    %36 = vector.shape_cast %35 : vector<10x16x128xbf16> to vector<160x128xbf16>
    %c5 = arith.constant 5 : index
    %c0_38 = arith.constant 0 : index
    %c0_39 = arith.constant 0 : index
    %37 = vector.load %arg3[%c5, %c0_38, %c0_39] : memref<9x128x128xbf16, #tpu.memory_space<vmem>>, vector<1x128x128xbf16>
    %38 = vector.shape_cast %37 : vector<1x128x128xbf16> to vector<128x128xbf16>
    %cst_40 = arith.constant dense<0.000000e+00> : vector<160x128xf32>
    %39 = tpu.matmul %36, %38, %cst_40 {dimension_numbers = #tpu.dot_dimension_numbers<[1], [0], [0], [1], [0, 0, 1, 1], [], []>} : vector<160x128xbf16>, vector<128x128xbf16>, vector<160x128xf32> -> vector<160x128xf32>
    %40 = arith.addf %33, %39 : vector<160x128xf32>
    %c0_41 = arith.constant 0 : index
    %c2_42 = arith.constant 2 : index
    %c0_43 = arith.constant 0 : index
    %c0_44 = arith.constant 0 : index
    %41 = vector.load %arg2[%c0_41, %c2_42, %c0_43, %c0_44] : memref<1x12x18x128xbf16, #tpu.memory_space<vmem>>, vector<1x10x16x128xbf16>
    %42 = vector.shape_cast %41 : vector<1x10x16x128xbf16> to vector<10x16x128xbf16>
    %43 = vector.shape_cast %42 : vector<10x16x128xbf16> to vector<160x128xbf16>
    %c6 = arith.constant 6 : index
    %c0_45 = arith.constant 0 : index
    %c0_46 = arith.constant 0 : index
    %44 = vector.load %arg3[%c6, %c0_45, %c0_46] : memref<9x128x128xbf16, #tpu.memory_space<vmem>>, vector<1x128x128xbf16>
    %45 = vector.shape_cast %44 : vector<1x128x128xbf16> to vector<128x128xbf16>
    %cst_47 = arith.constant dense<0.000000e+00> : vector<160x128xf32>
    %46 = tpu.matmul %43, %45, %cst_47 {dimension_numbers = #tpu.dot_dimension_numbers<[1], [0], [0], [1], [0, 0, 1, 1], [], []>} : vector<160x128xbf16>, vector<128x128xbf16>, vector<160x128xf32> -> vector<160x128xf32>
    %47 = arith.addf %40, %46 : vector<160x128xf32>
    %c0_48 = arith.constant 0 : index
    %c2_49 = arith.constant 2 : index
    %c1_50 = arith.constant 1 : index
    %c0_51 = arith.constant 0 : index
    %48 = vector.load %arg2[%c0_48, %c2_49, %c1_50, %c0_51] : memref<1x12x18x128xbf16, #tpu.memory_space<vmem>>, vector<1x10x16x128xbf16>
    %49 = vector.shape_cast %48 : vector<1x10x16x128xbf16> to vector<10x16x128xbf16>
    %50 = vector.shape_cast %49 : vector<10x16x128xbf16> to vector<160x128xbf16>
    %c7 = arith.constant 7 : index
    %c0_52 = arith.constant 0 : index
    %c0_53 = arith.constant 0 : index
    %51 = vector.load %arg3[%c7, %c0_52, %c0_53] : memref<9x128x128xbf16, #tpu.memory_space<vmem>>, vector<1x128x128xbf16>
    %52 = vector.shape_cast %51 : vector<1x128x128xbf16> to vector<128x128xbf16>
    %cst_54 = arith.constant dense<0.000000e+00> : vector<160x128xf32>
    %53 = tpu.matmul %50, %52, %cst_54 {dimension_numbers = #tpu.dot_dimension_numbers<[1], [0], [0], [1], [0, 0, 1, 1], [], []>} : vector<160x128xbf16>, vector<128x128xbf16>, vector<160x128xf32> -> vector<160x128xf32>
    %54 = arith.addf %47, %53 : vector<160x128xf32>
    %c0_55 = arith.constant 0 : index
    %c2_56 = arith.constant 2 : index
    %c2_57 = arith.constant 2 : index
    %c0_58 = arith.constant 0 : index
    %55 = vector.load %arg2[%c0_55, %c2_56, %c2_57, %c0_58] : memref<1x12x18x128xbf16, #tpu.memory_space<vmem>>, vector<1x10x16x128xbf16>
    %56 = vector.shape_cast %55 : vector<1x10x16x128xbf16> to vector<10x16x128xbf16>
    %57 = vector.shape_cast %56 : vector<10x16x128xbf16> to vector<160x128xbf16>
    %c8 = arith.constant 8 : index
    %c0_59 = arith.constant 0 : index
    %c0_60 = arith.constant 0 : index
    %58 = vector.load %arg3[%c8, %c0_59, %c0_60] : memref<9x128x128xbf16, #tpu.memory_space<vmem>>, vector<1x128x128xbf16>
    %59 = vector.shape_cast %58 : vector<1x128x128xbf16> to vector<128x128xbf16>
    %cst_61 = arith.constant dense<0.000000e+00> : vector<160x128xf32>
    %60 = tpu.matmul %57, %59, %cst_61 {dimension_numbers = #tpu.dot_dimension_numbers<[1], [0], [0], [1], [0, 0, 1, 1], [], []>} : vector<160x128xbf16>, vector<128x128xbf16>, vector<160x128xf32> -> vector<160x128xf32>
    %61 = arith.addf %54, %60 : vector<160x128xf32>
    %c0_62 = arith.constant 0 : index
    %c0_63 = arith.constant 0 : index
    %62 = vector.load %arg4[%c0_62, %c0_63] : memref<1x128xf32, #tpu.memory_space<vmem>>, vector<1x128xf32>
    %63 = vector.broadcast %62 : vector<1x128xf32> to vector<160x128xf32>
    %64 = arith.addf %61, %63 : vector<160x128xf32>
    %cst_64 = arith.constant 0.000000e+00 : f32
    %65 = vector.broadcast %cst_64 : f32 to vector<160x128xf32>
    %66 = arith.maximumf %64, %65 : vector<160x128xf32>
    %67 = vector.shape_cast %66 : vector<160x128xf32> to vector<10x16x128xf32>
    %68 = arith.truncf %67 : vector<10x16x128xf32> to vector<10x16x128xbf16>
    %c0_65 = arith.constant 0 : index
    %c1_66 = arith.constant 1 : index
    %c0_67 = arith.constant 0 : index
    %69 = vector.load %arg8[%c0_65, %c1_66, %c0_67] : memref<10x18x128xbf16, #tpu.memory_space<vmem>>, vector<10x16x128xbf16>
    tpu.vector_store %arg8[%c0_65, %c1_66, %c0_67], %68 {strides = array<i32>} : memref<10x18x128xbf16, #tpu.memory_space<vmem>>, vector<10x16x128xbf16>,
    %cst_68 = arith.constant 0.000000e+00 : bf16
    %70 = vector.broadcast %cst_68 : bf16 to vector<10x1x128xbf16>
    %c0_69 = arith.constant 0 : index
    %c0_70 = arith.constant 0 : index
    %c0_71 = arith.constant 0 : index
    %71 = vector.load %arg8[%c0_69, %c0_70, %c0_71] : memref<10x18x128xbf16, #tpu.memory_space<vmem>>, vector<10x1x128xbf16>
    tpu.vector_store %arg8[%c0_69, %c0_70, %c0_71], %70 {strides = array<i32>} : memref<10x18x128xbf16, #tpu.memory_space<vmem>>, vector<10x1x128xbf16>,
    %cst_72 = arith.constant 0.000000e+00 : bf16
    %72 = vector.broadcast %cst_72 : bf16 to vector<10x1x128xbf16>
    %c0_73 = arith.constant 0 : index
    %c17 = arith.constant 17 : index
    %c0_74 = arith.constant 0 : index
    %73 = vector.load %arg8[%c0_73, %c17, %c0_74] : memref<10x18x128xbf16, #tpu.memory_space<vmem>>, vector<10x1x128xbf16>
    tpu.vector_store %arg8[%c0_73, %c17, %c0_74], %72 {strides = array<i32>} : memref<10x18x128xbf16, #tpu.memory_space<vmem>>, vector<10x1x128xbf16>,
    %c0_i32 = arith.constant 0 : i32
    %74 = arith.cmpi eq, %arg1, %c0_i32 : i32
    %75 = arith.extui %74 : i1 to i32
    %c0_i32_75 = arith.constant 0 : i32
    %76 = arith.cmpi ne, %75, %c0_i32_75 : i32
    scf.if %76 {
      %cst_147 = arith.constant 0.000000e+00 : bf16
      %142 = vector.broadcast %cst_147 : bf16 to vector<1x18x128xbf16>
      %c0_148 = arith.constant 0 : index
      %c0_149 = arith.constant 0 : index
      %c0_150 = arith.constant 0 : index
      %143 = vector.load %arg8[%c0_148, %c0_149, %c0_150] : memref<10x18x128xbf16, #tpu.memory_space<vmem>>, vector<1x18x128xbf16>
      tpu.vector_store %arg8[%c0_148, %c0_149, %c0_150], %142 {strides = array<i32>} : memref<10x18x128xbf16, #tpu.memory_space<vmem>>, vector<1x18x128xbf16>,
    } else {
    }
    %c1_i32 = arith.constant 1 : i32
    %77 = arith.cmpi eq, %arg1, %c1_i32 : i32
    %78 = arith.extui %77 : i1 to i32
    %c0_i32_76 = arith.constant 0 : i32
    %79 = arith.cmpi ne, %78, %c0_i32_76 : i32
    scf.if %79 {
      %cst_147 = arith.constant 0.000000e+00 : bf16
      %142 = vector.broadcast %cst_147 : bf16 to vector<1x18x128xbf16>
      %c9 = arith.constant 9 : index
      %c0_148 = arith.constant 0 : index
      %c0_149 = arith.constant 0 : index
      %143 = vector.load %arg8[%c9, %c0_148, %c0_149] : memref<10x18x128xbf16, #tpu.memory_space<vmem>>, vector<1x18x128xbf16>
      tpu.vector_store %arg8[%c9, %c0_148, %c0_149], %142 {strides = array<i32>} : memref<10x18x128xbf16, #tpu.memory_space<vmem>>, vector<1x18x128xbf16>,
    } else {
    }
    %c0_77 = arith.constant 0 : index
    %c0_78 = arith.constant 0 : index
    %c0_79 = arith.constant 0 : index
    %80 = vector.load %arg8[%c0_77, %c0_78, %c0_79] : memref<10x18x128xbf16, #tpu.memory_space<vmem>>, vector<8x16x128xbf16>
    %81 = vector.shape_cast %80 : vector<8x16x128xbf16> to vector<128x128xbf16>
    %c0_80 = arith.constant 0 : index
    %c0_81 = arith.constant 0 : index
    %c0_82 = arith.constant 0 : index
    %82 = vector.load %arg5[%c0_80, %c0_81, %c0_82] : memref<9x128x128xbf16, #tpu.memory_space<vmem>>, vector<1x128x128xbf16>
    %83 = vector.shape_cast %82 : vector<1x128x128xbf16> to vector<128x128xbf16>
    %cst_83 = arith.constant dense<0.000000e+00> : vector<128x128xf32>
    %84 = tpu.matmul %81, %83, %cst_83 {dimension_numbers = #tpu.dot_dimension_numbers<[1], [0], [0], [1], [0, 0, 1, 1], [], []>} : vector<128x128xbf16>, vector<128x128xbf16>, vector<128x128xf32> -> vector<128x128xf32>
    %c0_84 = arith.constant 0 : index
    %c1_85 = arith.constant 1 : index
    %c0_86 = arith.constant 0 : index
    %85 = vector.load %arg8[%c0_84, %c1_85, %c0_86] : memref<10x18x128xbf16, #tpu.memory_space<vmem>>, vector<8x16x128xbf16>
    %86 = vector.shape_cast %85 : vector<8x16x128xbf16> to vector<128x128xbf16>
    %c1_87 = arith.constant 1 : index
    %c0_88 = arith.constant 0 : index
    %c0_89 = arith.constant 0 : index
    %87 = vector.load %arg5[%c1_87, %c0_88, %c0_89] : memref<9x128x128xbf16, #tpu.memory_space<vmem>>, vector<1x128x128xbf16>
    %88 = vector.shape_cast %87 : vector<1x128x128xbf16> to vector<128x128xbf16>
    %cst_90 = arith.constant dense<0.000000e+00> : vector<128x128xf32>
    %89 = tpu.matmul %86, %88, %cst_90 {dimension_numbers = #tpu.dot_dimension_numbers<[1], [0], [0], [1], [0, 0, 1, 1], [], []>} : vector<128x128xbf16>, vector<128x128xbf16>, vector<128x128xf32> -> vector<128x128xf32>
    %90 = arith.addf %84, %89 : vector<128x128xf32>
    %c0_91 = arith.constant 0 : index
    %c2_92 = arith.constant 2 : index
    %c0_93 = arith.constant 0 : index
    %91 = vector.load %arg8[%c0_91, %c2_92, %c0_93] : memref<10x18x128xbf16, #tpu.memory_space<vmem>>, vector<8x16x128xbf16>
    %92 = vector.shape_cast %91 : vector<8x16x128xbf16> to vector<128x128xbf16>
    %c2_94 = arith.constant 2 : index
    %c0_95 = arith.constant 0 : index
    %c0_96 = arith.constant 0 : index
    %93 = vector.load %arg5[%c2_94, %c0_95, %c0_96] : memref<9x128x128xbf16, #tpu.memory_space<vmem>>, vector<1x128x128xbf16>
    %94 = vector.shape_cast %93 : vector<1x128x128xbf16> to vector<128x128xbf16>
    %cst_97 = arith.constant dense<0.000000e+00> : vector<128x128xf32>
    %95 = tpu.matmul %92, %94, %cst_97 {dimension_numbers = #tpu.dot_dimension_numbers<[1], [0], [0], [1], [0, 0, 1, 1], [], []>} : vector<128x128xbf16>, vector<128x128xbf16>, vector<128x128xf32> -> vector<128x128xf32>
    %96 = arith.addf %90, %95 : vector<128x128xf32>
    %c1_98 = arith.constant 1 : index
    %c0_99 = arith.constant 0 : index
    %c0_100 = arith.constant 0 : index
    %97 = vector.load %arg8[%c1_98, %c0_99, %c0_100] : memref<10x18x128xbf16, #tpu.memory_space<vmem>>, vector<8x16x128xbf16>
    %98 = vector.shape_cast %97 : vector<8x16x128xbf16> to vector<128x128xbf16>
    %c3_101 = arith.constant 3 : index
    %c0_102 = arith.constant 0 : index
    %c0_103 = arith.constant 0 : index
    %99 = vector.load %arg5[%c3_101, %c0_102, %c0_103] : memref<9x128x128xbf16, #tpu.memory_space<vmem>>, vector<1x128x128xbf16>
    %100 = vector.shape_cast %99 : vector<1x128x128xbf16> to vector<128x128xbf16>
    %cst_104 = arith.constant dense<0.000000e+00> : vector<128x128xf32>
    %101 = tpu.matmul %98, %100, %cst_104 {dimension_numbers = #tpu.dot_dimension_numbers<[1], [0], [0], [1], [0, 0, 1, 1], [], []>} : vector<128x128xbf16>, vector<128x128xbf16>, vector<128x128xf32> -> vector<128x128xf32>
    %102 = arith.addf %96, %101 : vector<128x128xf32>
    %c1_105 = arith.constant 1 : index
    %c1_106 = arith.constant 1 : index
    %c0_107 = arith.constant 0 : index
    %103 = vector.load %arg8[%c1_105, %c1_106, %c0_107] : memref<10x18x128xbf16, #tpu.memory_space<vmem>>, vector<8x16x128xbf16>
    %104 = vector.shape_cast %103 : vector<8x16x128xbf16> to vector<128x128xbf16>
    %c4_108 = arith.constant 4 : index
    %c0_109 = arith.constant 0 : index
    %c0_110 = arith.constant 0 : index
    %105 = vector.load %arg5[%c4_108, %c0_109, %c0_110] : memref<9x128x128xbf16, #tpu.memory_space<vmem>>, vector<1x128x128xbf16>
    %106 = vector.shape_cast %105 : vector<1x128x128xbf16> to vector<128x128xbf16>
    %cst_111 = arith.constant dense<0.000000e+00> : vector<128x128xf32>
    %107 = tpu.matmul %104, %106, %cst_111 {dimension_numbers = #tpu.dot_dimension_numbers<[1], [0], [0], [1], [0, 0, 1, 1], [], []>} : vector<128x128xbf16>, vector<128x128xbf16>, vector<128x128xf32> -> vector<128x128xf32>
    %108 = arith.addf %102, %107 : vector<128x128xf32>
    %c1_112 = arith.constant 1 : index
    %c2_113 = arith.constant 2 : index
    %c0_114 = arith.constant 0 : index
    %109 = vector.load %arg8[%c1_112, %c2_113, %c0_114] : memref<10x18x128xbf16, #tpu.memory_space<vmem>>, vector<8x16x128xbf16>
    %110 = vector.shape_cast %109 : vector<8x16x128xbf16> to vector<128x128xbf16>
    %c5_115 = arith.constant 5 : index
    %c0_116 = arith.constant 0 : index
    %c0_117 = arith.constant 0 : index
    %111 = vector.load %arg5[%c5_115, %c0_116, %c0_117] : memref<9x128x128xbf16, #tpu.memory_space<vmem>>, vector<1x128x128xbf16>
    %112 = vector.shape_cast %111 : vector<1x128x128xbf16> to vector<128x128xbf16>
    %cst_118 = arith.constant dense<0.000000e+00> : vector<128x128xf32>
    %113 = tpu.matmul %110, %112, %cst_118 {dimension_numbers = #tpu.dot_dimension_numbers<[1], [0], [0], [1], [0, 0, 1, 1], [], []>} : vector<128x128xbf16>, vector<128x128xbf16>, vector<128x128xf32> -> vector<128x128xf32>
    %114 = arith.addf %108, %113 : vector<128x128xf32>
    %c2_119 = arith.constant 2 : index
    %c0_120 = arith.constant 0 : index
    %c0_121 = arith.constant 0 : index
    %115 = vector.load %arg8[%c2_119, %c0_120, %c0_121] : memref<10x18x128xbf16, #tpu.memory_space<vmem>>, vector<8x16x128xbf16>
    %116 = vector.shape_cast %115 : vector<8x16x128xbf16> to vector<128x128xbf16>
    %c6_122 = arith.constant 6 : index
    %c0_123 = arith.constant 0 : index
    %c0_124 = arith.constant 0 : index
    %117 = vector.load %arg5[%c6_122, %c0_123, %c0_124] : memref<9x128x128xbf16, #tpu.memory_space<vmem>>, vector<1x128x128xbf16>
    %118 = vector.shape_cast %117 : vector<1x128x128xbf16> to vector<128x128xbf16>
    %cst_125 = arith.constant dense<0.000000e+00> : vector<128x128xf32>
    %119 = tpu.matmul %116, %118, %cst_125 {dimension_numbers = #tpu.dot_dimension_numbers<[1], [0], [0], [1], [0, 0, 1, 1], [], []>} : vector<128x128xbf16>, vector<128x128xbf16>, vector<128x128xf32> -> vector<128x128xf32>
    %120 = arith.addf %114, %119 : vector<128x128xf32>
    %c2_126 = arith.constant 2 : index
    %c1_127 = arith.constant 1 : index
    %c0_128 = arith.constant 0 : index
    %121 = vector.load %arg8[%c2_126, %c1_127, %c0_128] : memref<10x18x128xbf16, #tpu.memory_space<vmem>>, vector<8x16x128xbf16>
    %122 = vector.shape_cast %121 : vector<8x16x128xbf16> to vector<128x128xbf16>
    %c7_129 = arith.constant 7 : index
    %c0_130 = arith.constant 0 : index
    %c0_131 = arith.constant 0 : index
    %123 = vector.load %arg5[%c7_129, %c0_130, %c0_131] : memref<9x128x128xbf16, #tpu.memory_space<vmem>>, vector<1x128x128xbf16>
    %124 = vector.shape_cast %123 : vector<1x128x128xbf16> to vector<128x128xbf16>
    %cst_132 = arith.constant dense<0.000000e+00> : vector<128x128xf32>
    %125 = tpu.matmul %122, %124, %cst_132 {dimension_numbers = #tpu.dot_dimension_numbers<[1], [0], [0], [1], [0, 0, 1, 1], [], []>} : vector<128x128xbf16>, vector<128x128xbf16>, vector<128x128xf32> -> vector<128x128xf32>
    %126 = arith.addf %120, %125 : vector<128x128xf32>
    %c2_133 = arith.constant 2 : index
    %c2_134 = arith.constant 2 : index
    %c0_135 = arith.constant 0 : index
    %127 = vector.load %arg8[%c2_133, %c2_134, %c0_135] : memref<10x18x128xbf16, #tpu.memory_space<vmem>>, vector<8x16x128xbf16>
    %128 = vector.shape_cast %127 : vector<8x16x128xbf16> to vector<128x128xbf16>
    %c8_136 = arith.constant 8 : index
    %c0_137 = arith.constant 0 : index
    %c0_138 = arith.constant 0 : index
    %129 = vector.load %arg5[%c8_136, %c0_137, %c0_138] : memref<9x128x128xbf16, #tpu.memory_space<vmem>>, vector<1x128x128xbf16>
    %130 = vector.shape_cast %129 : vector<1x128x128xbf16> to vector<128x128xbf16>
    %cst_139 = arith.constant dense<0.000000e+00> : vector<128x128xf32>
    %131 = tpu.matmul %128, %130, %cst_139 {dimension_numbers = #tpu.dot_dimension_numbers<[1], [0], [0], [1], [0, 0, 1, 1], [], []>} : vector<128x128xbf16>, vector<128x128xbf16>, vector<128x128xf32> -> vector<128x128xf32>
    %132 = arith.addf %126, %131 : vector<128x128xf32>
    %c0_140 = arith.constant 0 : index
    %c0_141 = arith.constant 0 : index
    %133 = vector.load %arg6[%c0_140, %c0_141] : memref<1x128xf32, #tpu.memory_space<vmem>>, vector<1x128xf32>
    %134 = vector.broadcast %133 : vector<1x128xf32> to vector<128x128xf32>
    %135 = arith.addf %132, %134 : vector<128x128xf32>
    %cst_142 = arith.constant 0.000000e+00 : f32
    %136 = vector.broadcast %cst_142 : f32 to vector<128x128xf32>
    %137 = arith.maximumf %135, %136 : vector<128x128xf32>
    %138 = vector.shape_cast %137 : vector<128x128xf32> to vector<8x16x128xf32>
    %c0_143 = arith.constant 0 : index
    %c0_144 = arith.constant 0 : index
    %c0_145 = arith.constant 0 : index
    %c0_146 = arith.constant 0 : index
    %139 = vector.load %arg7[%c0_143, %c0_144, %c0_145, %c0_146] : memref<1x8x16x128xf32, #tpu.memory_space<vmem>>, vector<1x8x16x128xf32>
    %140 = vector.shape_cast %139 : vector<1x8x16x128xf32> to vector<8x16x128xf32>
    %141 = vector.shape_cast %138 : vector<8x16x128xf32> to vector<1x8x16x128xf32>
    tpu.vector_store %arg7[%c0_143, %c0_144, %c0_145, %c0_146], %141 {strides = array<i32>} : memref<1x8x16x128xf32, #tpu.memory_space<vmem>>, vector<1x8x16x128xf32>,
    return
  }
  func.func @transform_0(%arg0: i32, %arg1: i32) -> (i32, i32, i32, i32) {
    %c2_i32 = arith.constant 2 : i32
    %0 = arith.muli %arg0, %c2_i32 : i32
    %1 = arith.addi %0, %arg1 : i32
    %c0_i32 = arith.constant 0 : i32
    %c0_i32_0 = arith.constant 0 : i32
    %c0_i32_1 = arith.constant 0 : i32
    %c0_i32_2 = arith.constant 0 : i32
    return %1, %c0_i32, %c0_i32_0, %c0_i32_1 : i32, i32, i32, i32
  }
  func.func @transform_1(%arg0: i32, %arg1: i32) -> (i32, i32, i32) {
    %c0_i32 = arith.constant 0 : i32
    %c0_i32_0 = arith.constant 0 : i32
    %c0_i32_1 = arith.constant 0 : i32
    %c0_i32_2 = arith.constant 0 : i32
    return %c0_i32, %c0_i32_0, %c0_i32_1 : i32, i32, i32
  }
  func.func @transform_2(%arg0: i32, %arg1: i32) -> (i32, i32) {
    %c0_i32 = arith.constant 0 : i32
    %c0_i32_0 = arith.constant 0 : i32
    %c0_i32_1 = arith.constant 0 : i32
    return %c0_i32, %c0_i32_0 : i32, i32
  }
  func.func @transform_3(%arg0: i32, %arg1: i32) -> (i32, i32, i32) {
    %c0_i32 = arith.constant 0 : i32
    %c0_i32_0 = arith.constant 0 : i32
    %c0_i32_1 = arith.constant 0 : i32
    %c0_i32_2 = arith.constant 0 : i32
    return %c0_i32, %c0_i32_0, %c0_i32_1 : i32, i32, i32
  }
  func.func @transform_4(%arg0: i32, %arg1: i32) -> (i32, i32) {
    %c0_i32 = arith.constant 0 : i32
    %c0_i32_0 = arith.constant 0 : i32
    %c0_i32_1 = arith.constant 0 : i32
    return %c0_i32, %c0_i32_0 : i32, i32
  }
  func.func @transform_5(%arg0: i32, %arg1: i32) -> (i32, i32, i32, i32) {
    %c0_i32 = arith.constant 0 : i32
    %c0_i32_0 = arith.constant 0 : i32
    %c0_i32_1 = arith.constant 0 : i32
    return %arg0, %arg1, %c0_i32, %c0_i32_0 : i32, i32, i32, i32
  }
}

</mosaic_0001>

<llo_original>
// kernel: tpu_custom_call.1
$region0: #{tpu_custom_call.1}
  #allocation0 [shape = 'u32[]', space=smem, size = 0x4, offset = 0x4, fixed_abs, tag = 'smem constant byte address 0x4 - core index']
  #allocation1 [shape = 'u32[144,128]{1,0:T(1,128)}', space=vmem, size = 0x12000, scoped, tag = 'internal scratch']
  #allocation2 [shape = 'bf16[10,18,128]{2,1,0:T(8,128)(2,1)}', space=vmem, size = 0xf000, scoped, tag = 'scratch operand']
  %s0 = inlined_call_operand.vmem [shape: bf16[4,12,18,128], index: 0, kind: input, shape index: {}]
  %s1 = inlined_call_operand.vmem [shape: bf16[9,128,128], index: 1, kind: input, shape index: {}]
  %s2 = inlined_call_operand.vmem [shape: f32[1,128], index: 2, kind: input, shape index: {}]
  %s3 = inlined_call_operand.hbm [shape: bf16[9,128,128], index: 3, kind: input, shape index: {}]
  %s4 = inlined_call_operand.vmem [shape: f32[1,128], index: 4, kind: input, shape index: {}]
  %s5 = inlined_call_operand.hbm [shape: f32[2,16,16,128], index: 5, kind: output, shape index: {}]
  %s6 = sld [smem:[#allocation0]]
  $region65: #{tpu_custom_call.1} parent=0
    _
  %s8 = ssub.s32 1, %s6
  %s9 = scalar_select 0, %s8, %s6
  $region1: #{tpu_custom_call.1} parent=0
    #allocation3 [shape = 'u8[294912]{0}', space=vmem, size = 0x48000, scoped, tag = 'input window, operand 3, single buffered']
    #allocation4 [shape = 's32[2]{0}', space=sflag, size = 0x8, scoped, tag = 'scoped memory for tpu_custom_call.1']
    #allocation5 [shape = 's32[2]{0}', space=sflag, size = 0x8, scoped, tag = 'scoped memory for tpu_custom_call.1']
    #allocation6 [shape = 'u8[131072]{0}', space=vmem, size = 0x20000, scoped, tag = 'output window, operand 0']
    %10 = vsyncpa [#allocation4], 0
    %11 = vsyncpa [#allocation5], 0
    %s12 = scalar_lea.sflag [#allocation5], 1
    %13 = vsyncpa %s12, 0
    loop: start=0, step=1, limit=6
    $region2: #{tpu_custom_call.1} parent=1 // loop_pre_header
      _
    $region3: #{tpu_custom_call.1} parent=1 // loop_header
      %s15 = sphi 0, %s19
      %p16 = scmp.ge.s32.totalorder %s15, 6
      %s22 = sphi 0, %s34
      %s23 = sphi 0, %s30
      %s24 = sphi 0, %s22
      %s25 = sphi 0, %s23
      %s26 = sphi 0, %s24
      %s27 = sphi 0, %s25
      %s41 = sphi 0, %s43
      %s44 = sphi 0, %s41
      %s45 = sphi 0, %s44
      %s61 = sphi 0, %s45
      %s65 = sphi 0, %s65
      %s67 = sphi 0, %s65
      %s68 = sphi 0, %s67
      %s82 = sphi 0, %s68
      %s86 = sphi 0, %s86
      %s88 = sphi 0, %s86
      %s89 = sphi 0, %s88
      %s103 = sphi 0, %s89
      %s107 = sphi 0, %s107
      %s109 = sphi 0, %s107
      %s110 = sphi 0, %s109
      %s124 = sphi 0, %s110
      %s128 = sphi 0, %s128
      %s130 = sphi 0, %s128
      %s131 = sphi 0, %s130
      %s145 = sphi 0, %s131
      %s153 = sphi 0, %s155
      %s156 = sphi 0, %s153
      %s157 = sphi 0, %s156
      %s173 = sphi 0, %s157
    $region4: #{tpu_custom_call.1} parent=1 // loop_header_branch
      %18 = sbr.rel (%p16) target = $region8
    $region5: #{tpu_custom_call.1} parent=1 // loop_body
      %s20 = ssub.s32 %s15, 1
      %s21 = ssub.s32 %s15, 2
      %s28 = sadd.s32 1, %s23
      %p29 = scmp.ge.s32.totalorder %s28, 2
      %s30 = scalar_select %p29, 0, %s28
      %s31 = sadd.s32 1, %s22
      %s32 = scalar_select %p29, %s31, %s22
      %p33 = scmp.ge.s32.totalorder %s32, 2
      %s34 = scalar_select %p33, 0, %s32
      %s35 = smul.u32 %s22, 2
      %s36 = sadd.s32 %s35, %s23
      %s37 = smul.u32 %s34, 2
      %s38 = sadd.s32 %s37, %s30
      %s39 = ssub.s32 %s36, %s38
      %p40 = scmp.eq.s32.totalorder %s39, 0
      %s42 = sadd.s32 %s41, 1
      %s43 = scalar_select %p40, %s41, %s42
      %p46 = pneg %p40
      %p47 = scmp.eq.s32.totalorder %s15, 3
      %p48 = por %p46, %p47
      %p49 = scmp.ne.s32.totalorder %s41, %s44
      %p50 = scmp.eq.s32.totalorder %s15, 0
      %p51 = por %p49, %p50
      %p52 = scmp.ne.s32.totalorder %s41, %s44
      %p53 = scmp.eq.s32.totalorder %s20, 3
      %p54 = por %p52, %p53
      %p55 = scmp.ne.s32.totalorder %s44, %s45
      %p56 = scmp.eq.s32.totalorder %s20, 0
      %p57 = por %p55, %p56
      %p58 = scmp.ne.s32.totalorder %s44, %s45
      %p59 = scmp.eq.s32.totalorder %s21, 3
      %p60 = por %p58, %p59
      %p62 = scmp.ne.s32.totalorder %s45, %s61
      %p63 = scmp.eq.s32.totalorder %s21, 0
      %p64 = por %p62, %p63
      %s66 = sadd.s32 %s65, 1
      %p69 = scmp.eq.s32.totalorder %s15, 3
      %p70 = scmp.ne.s32.totalorder %s65, %s67
      %p71 = scmp.eq.s32.totalorder %s15, 0
      %p72 = por %p70, %p71
      %p73 = scmp.ne.s32.totalorder %s65, %s67
      %p74 = scmp.eq.s32.totalorder %s20, 3
      %p75 = por %p73, %p74
      %p76 = scmp.ne.s32.totalorder %s67, %s68
      %p77 = scmp.eq.s32.totalorder %s20, 0
      %p78 = por %p76, %p77
      %p79 = scmp.ne.s32.totalorder %s67, %s68
      %p80 = scmp.eq.s32.totalorder %s21, 3
      %p81 = por %p79, %p80
      %p83 = scmp.ne.s32.totalorder %s68, %s82
      %p84 = scmp.eq.s32.totalorder %s21, 0
      %p85 = por %p83, %p84
      %s87 = sadd.s32 %s86, 1
      %p90 = scmp.eq.s32.totalorder %s15, 3
      %p91 = scmp.ne.s32.totalorder %s86, %s88
      %p92 = scmp.eq.s32.totalorder %s15, 0
      %p93 = por %p91, %p92
      %p94 = scmp.ne.s32.totalorder %s86, %s88
      %p95 = scmp.eq.s32.totalorder %s20, 3
      %p96 = por %p94, %p95
      %p97 = scmp.ne.s32.totalorder %s88, %s89
      %p98 = scmp.eq.s32.totalorder %s20, 0
      %p99 = por %p97, %p98
      %p100 = scmp.ne.s32.totalorder %s88, %s89
      %p101 = scmp.eq.s32.totalorder %s21, 3
      %p102 = por %p100, %p101
      %p104 = scmp.ne.s32.totalorder %s89, %s103
      %p105 = scmp.eq.s32.totalorder %s21, 0
      %p106 = por %p104, %p105
      %s108 = sadd.s32 %s107, 1
      %p111 = scmp.eq.s32.totalorder %s15, 3
      %p112 = scmp.ne.s32.totalorder %s107, %s109
      %p113 = scmp.eq.s32.totalorder %s15, 0
      %p114 = por %p112, %p113
      %p115 = scmp.ne.s32.totalorder %s107, %s109
      %p116 = scmp.eq.s32.totalorder %s20, 3
      %p117 = por %p115, %p116
      %p118 = scmp.ne.s32.totalorder %s109, %s110
      %p119 = scmp.eq.s32.totalorder %s20, 0
      %p120 = por %p118, %p119
      %p121 = scmp.ne.s32.totalorder %s109, %s110
      %p122 = scmp.eq.s32.totalorder %s21, 3
      %p123 = por %p121, %p122
      %p125 = scmp.ne.s32.totalorder %s110, %s124
      %p126 = scmp.eq.s32.totalorder %s21, 0
      %p127 = por %p125, %p126
      %s129 = sadd.s32 %s128, 1
      %p132 = scmp.eq.s32.totalorder %s15, 3
      %p133 = scmp.ne.s32.totalorder %s128, %s130
      %p134 = scmp.eq.s32.totalorder %s15, 0
      %p135 = por %p133, %p134
      %p136 = scmp.ne.s32.totalorder %s128, %s130
      %p137 = scmp.eq.s32.totalorder %s20, 3
      %p138 = por %p136, %p137
      %p139 = scmp.ne.s32.totalorder %s130, %s131
      %p140 = scmp.eq.s32.totalorder %s20, 0
      %p141 = por %p139, %p140
      %p142 = scmp.ne.s32.totalorder %s130, %s131
      %p143 = scmp.eq.s32.totalorder %s21, 3
      %p144 = por %p142, %p143
      %p146 = scmp.ne.s32.totalorder %s131, %s145
      %p147 = scmp.eq.s32.totalorder %s21, 0
      %p148 = por %p146, %p147
      %s149 = ssub.s32 %s22, %s34
      %s150 = ssub.s32 %s23, %s30
      %s151 = sor.u32 %s149, %s150
      %p152 = scmp.eq.s32.totalorder %s151, 0
      %s154 = sadd.s32 %s153, 1
      %s155 = scalar_select %p152, %s153, %s154
      %p158 = pneg %p152
      %p159 = scmp.eq.s32.totalorder %s15, 3
      %p160 = por %p158, %p159
      %p161 = scmp.ne.s32.totalorder %s153, %s156
      %p162 = scmp.eq.s32.totalorder %s15, 0
      %p163 = por %p161, %p162
      %p164 = scmp.ne.s32.totalorder %s153, %s156
      %p165 = scmp.eq.s32.totalorder %s20, 3
      %p166 = por %p164, %p165
      %p167 = scmp.ne.s32.totalorder %s156, %s157
      %p168 = scmp.eq.s32.totalorder %s20, 0
      %p169 = por %p167, %p168
      %p170 = scmp.ne.s32.totalorder %s156, %s157
      %p171 = scmp.eq.s32.totalorder %s21, 3
      %p172 = por %p170, %p171
      %p174 = scmp.ne.s32.totalorder %s157, %s173
      %p175 = scmp.eq.s32.totalorder %s21, 0
      %p176 = por %p174, %p175
      %p177 = scmp.le.s32.totalorder 1, %s15
      %p178 = scmp.lt.s32.totalorder %s15, 5
      %p179 = pnand %p177, %p178
      %p180 = pneg %p179
      // Predicated region
      $region9: #{tpu_custom_call.1} parent=5 // pred_check
        _
      $region10: #{tpu_custom_call.1} parent=5 // pred_check_branch
        %182 = sbr.rel (%p179) target = $region12
      $region11: #{tpu_custom_call.1} parent=5 // pred_region
        %s183 = ssub.s32 %s15, 1
        // Predicated region
        $region13: #{tpu_custom_call.1} parent=11 // pred_check
          %p184 = pneg %p78
        $region14: #{tpu_custom_call.1} parent=11 // pred_check_branch
          %186 = sbr.rel (%p184) target = $region16
        $region15: #{tpu_custom_call.1} parent=11 // pred_region
          _
        $region16: #{tpu_custom_call.1} parent=11 // pred_fallthru
          _
        // Predicated region
        $region17: #{tpu_custom_call.1} parent=11 // pred_check
          %p187 = pneg %p99
        $region18: #{tpu_custom_call.1} parent=11 // pred_check_branch
          %189 = sbr.rel (%p187) target = $region20
        $region19: #{tpu_custom_call.1} parent=11 // pred_region
          _
        $region20: #{tpu_custom_call.1} parent=11 // pred_fallthru
          _
        // Predicated region
        $region21: #{tpu_custom_call.1} parent=11 // pred_check
          %p190 = pneg %p120
        $region22: #{tpu_custom_call.1} parent=11 // pred_check_branch
          %192 = sbr.rel (%p190) target = $region24
        $region23: #{tpu_custom_call.1} parent=11 // pred_region
          %s194 = ssub.s32 9216, 9216
          %195 = vsyncadd [#allocation4], %s194
          %s196 = sshll.u32 [#allocation3], 4
          %s197 = int_to_ptr.vmem [resolvable:$true] %s196
          %202 = dma.hbm_to_vmem [thread:$0]  %s3, 9216, %s197, [#allocation4], 64, 64, 4
        $region24: #{tpu_custom_call.1} parent=11 // pred_fallthru
          _
        // Predicated region
        $region25: #{tpu_custom_call.1} parent=11 // pred_check
          %p203 = pneg %p141
        $region26: #{tpu_custom_call.1} parent=11 // pred_check_branch
          %205 = sbr.rel (%p203) target = $region28
        $region27: #{tpu_custom_call.1} parent=11 // pred_region
          _
        $region28: #{tpu_custom_call.1} parent=11 // pred_fallthru
          _
      $region12: #{tpu_custom_call.1} parent=5 // pred_fallthru
        _
      %p206 = scmp.lt.s32.totalorder %s15, 4
      // Predicated region
      $region29: #{tpu_custom_call.1} parent=5 // pred_check
        %p207 = pneg %p206
      $region30: #{tpu_custom_call.1} parent=5 // pred_check_branch
        %209 = sbr.rel (%p207) target = $region32
      $region31: #{tpu_custom_call.1} parent=5 // pred_region
        // Predicated region
        $region33: #{tpu_custom_call.1} parent=31 // pred_check
          %p210 = pneg %p51
        $region34: #{tpu_custom_call.1} parent=31 // pred_check_branch
          %212 = sbr.rel (%p210) target = $region36
        $region35: #{tpu_custom_call.1} parent=31 // pred_region
          %s213 = smul.u32 %s22, 2
          %s214 = sadd.s32 %s213, %s23
          %p215 = scmp.lt.s32.totalorder %s214, 3
          %s216 = scalar_select %p215, %s214, 3
          %s217 = smul.addr %s216, 36
          %s218 = smul.addr %s217, 4
          %s219 = scalar_lea.vmem %s0, %s218
          %s220 = smul.u32 %s22, 2
          %s221 = sadd.s32 %s220, %s23
        $region36: #{tpu_custom_call.1} parent=31 // pred_fallthru
          _
      $region32: #{tpu_custom_call.1} parent=5 // pred_fallthru
        _
      %p222 = scmp.le.s32.totalorder 1, %s15
      %p223 = scmp.lt.s32.totalorder %s15, 5
      %p224 = pnand %p222, %p223
      %p225 = pneg %p224
      // Predicated region
      $region37: #{tpu_custom_call.1} parent=5 // pred_check
        _
      $region38: #{tpu_custom_call.1} parent=5 // pred_check_branch
        %227 = sbr.rel (%p224) target = $region40
      $region39: #{tpu_custom_call.1} parent=5 // pred_region
        %s228 = ssub.s32 %s15, 1
        // Predicated region
        $region41: #{tpu_custom_call.1} parent=39 // pred_check
          %p229 = pneg %p120
        $region42: #{tpu_custom_call.1} parent=39 // pred_check_branch
          %231 = sbr.rel (%p229) target = $region44
        $region43: #{tpu_custom_call.1} parent=39 // pred_region
          %232 = dma.done [#allocation4], 9216
        $region44: #{tpu_custom_call.1} parent=39 // pred_fallthru
          _
        %s233 = smul.u32 %s24, 2
        %s234 = sadd.s32 %s233, %s25
        %p235 = scmp.lt.s32.totalorder %s234, 3
        %s236 = scalar_select %p235, %s234, 3
        %s237 = smul.addr %s236, 36
        %s238 = smul.addr %s237, 4
        %s239 = scalar_lea.vmem %s0, %s238
        %p240 = pneg %p57
        %p241 = pneg %p54
        %p242 = pneg %p78
        %p243 = pneg %p75
        %p244 = pneg %p99
        %p245 = pneg %p96
        %p246 = pneg %p120
        %p247 = pneg %p117
        %p248 = pneg %p141
        %p249 = pneg %p138
        %p250 = pneg %p169
        %p251 = pneg %p166
        %s252 = sand.u32 %s156, 1
        %s253 = scalar_lea.sflag [#allocation5], %s252
        %s254 = sand.u32 %s156, 1
        %s255 = smul.addr %s254, 128
        %s256 = scalar_lea.vmem [#allocation6], %s255
        %s257 = smul.u32 %s24, 2
        %s258 = sadd.s32 %s257, %s25
        %p259 = scmp.lt.s32.totalorder %s258, 3
        %s260 = scalar_select %p259, %s258, 3
        %s261 = smul.addr %s260, 36
        %s262 = smul.addr %s261, 4
        %s263 = scalar_lea.vmem %s0, %s262
        %s264 = smul.u32 %s24, 2
        %s265 = sadd.s32 %s264, %s25
        %s266 = smul.u32 8, %s25
        %v268 = vld [vmem:[%s263] sm:$0xf]
        %v269 = vld [vmem:[%s263 + $0x4] sm:$0xf]
        %v270 = vld [vmem:[%s263 + $0xc] sm:$0xf]
        %v271 = vld [vmem:[%s263 + $0x10] sm:$0xf]
        %v272 = vld [vmem:[%s263 + $0x18] sm:$0xf]
        %v273 = vld [vmem:[%s263 + $0x1c] sm:$0xf]
        %v274 = vld [vmem:[%s263 + $0x24] sm:$0xf]
        %v275 = vld [vmem:[%s263 + $0x28] sm:$0xf]
        %v276 = vld [vmem:[%s263 + $0x30] sm:$0xf]
        %v277 = vld [vmem:[%s263 + $0x34] sm:$0xf]
        %v278 = vld [vmem:[%s263 + $0x3c] sm:$0xf]
        %v279 = vld [vmem:[%s263 + $0x40] sm:$0xf]
        %v280 = vld [vmem:[%s263 + $0x48] sm:$0xf]
        %v281 = vld [vmem:[%s263 + $0x4c] sm:$0xf]
        %v282 = vld [vmem:[%s263 + $0x54] sm:$0xf]
        %v283 = vld [vmem:[%s263 + $0x58] sm:$0xf]
        %v284 = vld [vmem:[%s263 + $0x60] sm:$0xf]
        %v285 = vld [vmem:[%s263 + $0x64] sm:$0xf]
        %v286 = vld [vmem:[%s263 + $0x6c] sm:$0xf]
        %v287 = vld [vmem:[%s263 + $0x70] sm:$0xf]
        %v288 = vld [vmem:[%s1] sm:$0xf]
        %v289 = vld [vmem:[%s1 + $0x4] sm:$0xf]
        %v290 = vld [vmem:[%s1 + $0x8] sm:$0xf]
        %v291 = vld [vmem:[%s1 + $0xc] sm:$0xf]
        %v292 = vld [vmem:[%s1 + $0x10] sm:$0xf]
        %v293 = vld [vmem:[%s1 + $0x14] sm:$0xf]
        %v294 = vld [vmem:[%s1 + $0x18] sm:$0xf]
        %v295 = vld [vmem:[%s1 + $0x1c] sm:$0xf]
        %v296 = vld [vmem:[%s1 + $0x20] sm:$0xf]
        %v297 = vld [vmem:[%s1 + $0x24] sm:$0xf]
        %v298 = vld [vmem:[%s1 + $0x28] sm:$0xf]
        %v299 = vld [vmem:[%s1 + $0x2c] sm:$0xf]
        %v300 = vld [vmem:[%s1 + $0x30] sm:$0xf]
        %v301 = vld [vmem:[%s1 + $0x34] sm:$0xf]
        %v302 = vld [vmem:[%s1 + $0x38] sm:$0xf]
        %v303 = vld [vmem:[%s1 + $0x3c] sm:$0xf]
        %v304 = vld [vmem:[%s263 + $0x8] sm:$0x1]
        %v305 = vld [vmem:[%s263 + $0x14] sm:$0x1]
        %v306 = vld [vmem:[%s263 + $0x20] sm:$0x1]
        %v307 = vld [vmem:[%s263 + $0x2c] sm:$0x1]
        %v308 = vld [vmem:[%s263 + $0x38] sm:$0x1]
        %v309 = vld [vmem:[%s263 + $0x44] sm:$0x1]
        %v310 = vld [vmem:[%s263 + $0x50] sm:$0x1]
        %v311 = vld [vmem:[%s263 + $0x5c] sm:$0x1]
        %v312 = vld [vmem:[%s263 + $0x68] sm:$0x1]
        %v313 = vld [vmem:[%s263 + $0x74] sm:$0x1]
        %vm314 = vsmask.f32 3328
        %vm315 = vsmask.f32 7440
        %vm316 = vmor %vm314, %vm315
        %v318 = vshrl.u32 %v268, 16
        %v320 = vrot.slane %v318, 4
        %v321 = vshll.u32 %v268, 16
        %v323 = vrot.slane %v321, 5
        %v324 = vor.u32 %v320, %v323
        %v325 = vrot.slane %v324, 4
        %v327 = vshll.u32 %v269, 16
        %v329 = vrot.slane %v327, 5
        %v330 = vsel %vm316, %v325, %v329
        %v331 = vshrl.u32 %v269, 16
        %v333 = vrot.slane %v331, 4
        %v334 = vor.u32 %v333, %v329
        %v335 = vrot.slane %v334, 4
        %v337 = vshll.u32 %v304, 16
        %v339 = vrot.slane %v337, 5
        %v340 = vsel %vm316, %v335, %v339
        %v342 = vshrl.u32 %v270, 16
        %v344 = vrot.slane %v342, 4
        %v345 = vshll.u32 %v270, 16
        %v347 = vrot.slane %v345, 5
        %v348 = vor.u32 %v344, %v347
        %v349 = vrot.slane %v348, 4
        %v351 = vshll.u32 %v271, 16
        %v353 = vrot.slane %v351, 5
        %v354 = vsel %vm316, %v349, %v353
        %v355 = vshrl.u32 %v271, 16
        %v357 = vrot.slane %v355, 4
        %v358 = vor.u32 %v357, %v353
        %v359 = vrot.slane %v358, 4
        %v361 = vshll.u32 %v305, 16
        %v363 = vrot.slane %v361, 5
        %v364 = vsel %vm316, %v359, %v363
        %v366 = vshrl.u32 %v272, 16
        %v368 = vrot.slane %v366, 4
        %v369 = vshll.u32 %v272, 16
        %v371 = vrot.slane %v369, 5
        %v372 = vor.u32 %v368, %v371
        %v373 = vrot.slane %v372, 4
        %v375 = vshll.u32 %v273, 16
        %v377 = vrot.slane %v375, 5
        %v378 = vsel %vm316, %v373, %v377
        %v379 = vshrl.u32 %v273, 16
        %v381 = vrot.slane %v379, 4
        %v382 = vor.u32 %v381, %v377
        %v383 = vrot.slane %v382, 4
        %v385 = vshll.u32 %v306, 16
        %v387 = vrot.slane %v385, 5
        %v388 = vsel %vm316, %v383, %v387
        %v390 = vshrl.u32 %v274, 16
        %v392 = vrot.slane %v390, 4
        %v393 = vshll.u32 %v274, 16
        %v395 = vrot.slane %v393, 5
        %v396 = vor.u32 %v392, %v395
        %v397 = vrot.slane %v396, 4
        %v399 = vshll.u32 %v275, 16
        %v401 = vrot.slane %v399, 5
        %v402 = vsel %vm316, %v397, %v401
        %v403 = vshrl.u32 %v275, 16
        %v405 = vrot.slane %v403, 4
        %v406 = vor.u32 %v405, %v401
        %v407 = vrot.slane %v406, 4
        %v409 = vshll.u32 %v307, 16
        %v411 = vrot.slane %v409, 5
        %v412 = vsel %vm316, %v407, %v411
        %v414 = vshrl.u32 %v276, 16
        %v416 = vrot.slane %v414, 4
        %v417 = vshll.u32 %v276, 16
        %v419 = vrot.slane %v417, 5
        %v420 = vor.u32 %v416, %v419
        %v421 = vrot.slane %v420, 4
        %v423 = vshll.u32 %v277, 16
        %v425 = vrot.slane %v423, 5
        %v426 = vsel %vm316, %v421, %v425
        %v427 = vshrl.u32 %v277, 16
        %v429 = vrot.slane %v427, 4
        %v430 = vor.u32 %v429, %v425
        %v431 = vrot.slane %v430, 4
        %v433 = vshll.u32 %v308, 16
        %v435 = vrot.slane %v433, 5
        %v436 = vsel %vm316, %v431, %v435
        %v438 = vshrl.u32 %v278, 16
        %v440 = vrot.slane %v438, 4
        %v441 = vshll.u32 %v278, 16
        %v443 = vrot.slane %v441, 5
        %v444 = vor.u32 %v440, %v443
        %v445 = vrot.slane %v444, 4
        %v447 = vshll.u32 %v279, 16
        %v449 = vrot.slane %v447, 5
        %v450 = vsel %vm316, %v445, %v449
        %v451 = vshrl.u32 %v279, 16
        %v453 = vrot.slane %v451, 4
        %v454 = vor.u32 %v453, %v449
        %v455 = vrot.slane %v454, 4
        %v457 = vshll.u32 %v309, 16
        %v459 = vrot.slane %v457, 5
        %v460 = vsel %vm316, %v455, %v459
        %v462 = vshrl.u32 %v280, 16
        %v464 = vrot.slane %v462, 4
        %v465 = vshll.u32 %v280, 16
        %v467 = vrot.slane %v465, 5
        %v468 = vor.u32 %v464, %v467
        %v469 = vrot.slane %v468, 4
        %v471 = vshll.u32 %v281, 16
        %v473 = vrot.slane %v471, 5
        %v474 = vsel %vm316, %v469, %v473
        %v475 = vshrl.u32 %v281, 16
        %v477 = vrot.slane %v475, 4
        %v478 = vor.u32 %v477, %v473
        %v479 = vrot.slane %v478, 4
        %v481 = vshll.u32 %v310, 16
        %v483 = vrot.slane %v481, 5
        %v484 = vsel %vm316, %v479, %v483
        %v486 = vshrl.u32 %v282, 16
        %v488 = vrot.slane %v486, 4
        %v489 = vshll.u32 %v282, 16
        %v491 = vrot.slane %v489, 5
        %v492 = vor.u32 %v488, %v491
        %v493 = vrot.slane %v492, 4
        %v495 = vshll.u32 %v283, 16
        %v497 = vrot.slane %v495, 5
        %v498 = vsel %vm316, %v493, %v497
        %v499 = vshrl.u32 %v283, 16
        %v501 = vrot.slane %v499, 4
        %v502 = vor.u32 %v501, %v497
        %v503 = vrot.slane %v502, 4
        %v505 = vshll.u32 %v311, 16
        %v507 = vrot.slane %v505, 5
        %v508 = vsel %vm316, %v503, %v507
        %v510 = vshrl.u32 %v284, 16
        %v512 = vrot.slane %v510, 4
        %v513 = vshll.u32 %v284, 16
        %v515 = vrot.slane %v513, 5
        %v516 = vor.u32 %v512, %v515
        %v517 = vrot.slane %v516, 4
        %v519 = vshll.u32 %v285, 16
        %v521 = vrot.slane %v519, 5
        %v522 = vsel %vm316, %v517, %v521
        %v523 = vshrl.u32 %v285, 16
        %v525 = vrot.slane %v523, 4
        %v526 = vor.u32 %v525, %v521
        %v527 = vrot.slane %v526, 4
        %v529 = vshll.u32 %v312, 16
        %v531 = vrot.slane %v529, 5
        %v532 = vsel %vm316, %v527, %v531
        %v534 = vshrl.u32 %v286, 16
        %v536 = vrot.slane %v534, 4
        %v537 = vshll.u32 %v286, 16
        %v539 = vrot.slane %v537, 5
        %v540 = vor.u32 %v536, %v539
        %v541 = vrot.slane %v540, 4
        %v543 = vshll.u32 %v287, 16
        %v545 = vrot.slane %v543, 5
        %v546 = vsel %vm316, %v541, %v545
        %v547 = vshrl.u32 %v287, 16
        %v549 = vrot.slane %v547, 4
        %v550 = vor.u32 %v549, %v545
        %v551 = vrot.slane %v550, 4
        %v553 = vshll.u32 %v313, 16
        %v555 = vrot.slane %v553, 5
        %v556 = vsel %vm316, %v551, %v555
        %s557 = scalar_lea.vmem %s1, 64
        %v558 = vld [vmem:[%s557] sm:$0xf]
        %v559 = vld [vmem:[%s557 + $0x4] sm:$0xf]
        %v560 = vld [vmem:[%s557 + $0x8] sm:$0xf]
        %v561 = vld [vmem:[%s557 + $0xc] sm:$0xf]
        %v562 = vld [vmem:[%s557 + $0x10] sm:$0xf]
        %v563 = vld [vmem:[%s557 + $0x14] sm:$0xf]
        %v564 = vld [vmem:[%s557 + $0x18] sm:$0xf]
        %v565 = vld [vmem:[%s557 + $0x1c] sm:$0xf]
        %v566 = vld [vmem:[%s557 + $0x20] sm:$0xf]
        %v567 = vld [vmem:[%s557 + $0x24] sm:$0xf]
        %v568 = vld [vmem:[%s557 + $0x28] sm:$0xf]
        %v569 = vld [vmem:[%s557 + $0x2c] sm:$0xf]
        %v570 = vld [vmem:[%s557 + $0x30] sm:$0xf]
        %v571 = vld [vmem:[%s557 + $0x34] sm:$0xf]
        %v572 = vld [vmem:[%s557 + $0x38] sm:$0xf]
        %v573 = vld [vmem:[%s557 + $0x3c] sm:$0xf]
        %v574 = vunpack.c.l.b16 %v330
        %v575 = vunpack.c.l.b16 %v340
        %v576 = vunpack.c.l.b16 %v354
        %v577 = vunpack.c.l.b16 %v364
        %v578 = vunpack.c.l.b16 %v378
        %v579 = vunpack.c.l.b16 %v388
        %v580 = vunpack.c.l.b16 %v402
        %v581 = vunpack.c.l.b16 %v412
        %v582 = vunpack.c.l.b16 %v426
        %v583 = vunpack.c.l.b16 %v436
        %v584 = vunpack.c.l.b16 %v450
        %v585 = vunpack.c.l.b16 %v460
        %v586 = vunpack.c.l.b16 %v474
        %v587 = vunpack.c.l.b16 %v484
        %v588 = vunpack.c.l.b16 %v498
        %v589 = vunpack.c.l.b16 %v508
        %v590 = vunpack.c.l.b16 %v522
        %v591 = vunpack.c.l.b16 %v532
        %v592 = vunpack.c.l.b16 %v546
        %v593 = vunpack.c.l.b16 %v556
        %v594 = vpack.c.b16 %v575, %v574
        %v595 = vpack.c.b16 %v577, %v576
        %v596 = vpack.c.b16 %v579, %v578
        %v597 = vpack.c.b16 %v581, %v580
        %v598 = vpack.c.b16 %v583, %v582
        %v599 = vpack.c.b16 %v585, %v584
        %v600 = vpack.c.b16 %v587, %v586
        %v601 = vpack.c.b16 %v589, %v588
        %v602 = vpack.c.b16 %v591, %v590
        %v603 = vpack.c.b16 %v593, %v592
        %v630 = vunpack.c.l.b16 %v558
        %v631 = vunpack.c.l.b16 %v559
        %v632 = vunpack.c.l.b16 %v560
        %v633 = vunpack.c.l.b16 %v561
        %v634 = vunpack.c.l.b16 %v562
        %v635 = vunpack.c.l.b16 %v563
        %v636 = vunpack.c.l.b16 %v564
        %v637 = vunpack.c.l.b16 %v565
        %v638 = vunpack.c.l.b16 %v566
        %v639 = vunpack.c.l.b16 %v567
        %v640 = vunpack.c.l.b16 %v568
        %v641 = vunpack.c.l.b16 %v569
        %v642 = vunpack.c.l.b16 %v570
        %v643 = vunpack.c.l.b16 %v571
        %v644 = vunpack.c.l.b16 %v572
        %v645 = vunpack.c.l.b16 %v573
        %v646 = vpack.c.b16 %v631, %v630
        %v647 = vpack.c.b16 %v633, %v632
        %v648 = vpack.c.b16 %v635, %v634
        %v649 = vpack.c.b16 %v637, %v636
        %v650 = vpack.c.b16 %v639, %v638
        %v651 = vpack.c.b16 %v641, %v640
        %v652 = vpack.c.b16 %v643, %v642
        %v653 = vpack.c.b16 %v645, %v644
        %662 = vmatprep.subr.bf16.mxu0 0
        %663 = vmatpush1.bf16.msra.mxu0 %v646
        %664 = vmatprep.subr.bf16.mxu0 0
        %665 = vmatpush1.bf16.msra.mxu0 %v647
        %666 = vmatprep.subr.bf16.mxu0 0
        %667 = vmatpush1.bf16.msra.mxu0 %v648
        %668 = vmatprep.subr.bf16.mxu0 0
        %669 = vmatpush1.bf16.msra.mxu0 %v649
        %670 = vmatprep.subr.bf16.mxu0 0
        %671 = vmatpush1.bf16.msra.mxu0 %v650
        %672 = vmatprep.subr.bf16.mxu0 0
        %673 = vmatpush1.bf16.msra.mxu0 %v651
        %674 = vmatprep.subr.bf16.mxu0 0
        %675 = vmatpush1.bf16.msra.mxu0 %v652
        %676 = vmatprep.subr.bf16.mxu0 0
        %677 = vmatpush1.bf16.msra.mxu0 %v653
        %678 = vmatprep.subr.bf16.mxu0 0
        %679 = vmatpush1.bf16.msra.mxu0 0
        %680 = vmatprep.subr.bf16.mxu0 0
        %681 = vmatpush1.bf16.msra.mxu0 0
        %682 = vmatprep.subr.bf16.mxu0 0
        %683 = vmatpush1.bf16.msra.mxu0 0
        %684 = vmatprep.subr.bf16.mxu0 0
        %685 = vmatpush1.bf16.msra.mxu0 0
        %686 = vmatprep.subr.bf16.mxu0 0
        %687 = vmatpush1.bf16.msra.mxu0 0
        %688 = vmatprep.subr.bf16.mxu0 0
        %689 = vmatpush1.bf16.msra.mxu0 0
        %690 = vmatprep.subr.bf16.mxu0 0
        %691 = vmatpush1.bf16.msra.mxu0 0
        %692 = vmatprep.subr.bf16.mxu0 0
        %693 = vmatpush1.bf16.msra.mxu0 0
        %694 = vmatprep.mubr.bf16.mxu0 0
        %695 = vmatmul.mubr.bf16.gmra.mrb[0].mxu0 %v594
        %v696 = vpop.f32.mrb[0].mxu0
        %v697 = vadd.f32 0.0, %v696
        %v698 = vpop.f32.mrb[0].mxu0
        %v699 = vpop.f32.mrb[0].mxu0
        %v700 = vadd.f32 0.0, %v699
        %v701 = vpop.f32.mrb[0].mxu0
        %702 = vmatprep.mubr.bf16.mxu0 0
        %703 = vmatmul.mubr.bf16.gmra.mrb[0].mxu0 %v595
        %v704 = vpop.f32.mrb[0].mxu0
        %v705 = vadd.f32 0.0, %v704
        %v706 = vpop.f32.mrb[0].mxu0
        %v707 = vpop.f32.mrb[0].mxu0
        %v708 = vadd.f32 0.0, %v707
        %v709 = vpop.f32.mrb[0].mxu0
        %710 = vmatprep.mubr.bf16.mxu0 0
        %711 = vmatmul.mubr.bf16.gmra.mrb[0].mxu0 %v596
        %v712 = vpop.f32.mrb[0].mxu0
        %v713 = vadd.f32 0.0, %v712
        %v714 = vpop.f32.mrb[0].mxu0
        %v715 = vpop.f32.mrb[0].mxu0
        %v716 = vadd.f32 0.0, %v715
        %v717 = vpop.f32.mrb[0].mxu0
        %718 = vmatprep.mubr.bf16.mxu0 0
        %719 = vmatmul.mubr.bf16.gmra.mrb[0].mxu0 %v597
        %v720 = vpop.f32.mrb[0].mxu0
        %v721 = vadd.f32 0.0, %v720
        %v722 = vpop.f32.mrb[0].mxu0
        %v723 = vpop.f32.mrb[0].mxu0
        %v724 = vadd.f32 0.0, %v723
        %v725 = vpop.f32.mrb[0].mxu0
        %726 = vmatprep.mubr.bf16.mxu0 0
        %727 = vmatmul.mubr.bf16.gmra.mrb[0].mxu0 %v598
        %v728 = vpop.f32.mrb[0].mxu0
        %v729 = vadd.f32 0.0, %v728
        %v730 = vpop.f32.mrb[0].mxu0
        %v731 = vpop.f32.mrb[0].mxu0
        %v732 = vadd.f32 0.0, %v731
        %v733 = vpop.f32.mrb[0].mxu0
        %734 = vmatprep.mubr.bf16.mxu0 0
        %735 = vmatmul.mubr.bf16.gmra.mrb[0].mxu0 %v599
        %v736 = vpop.f32.mrb[0].mxu0
        %v737 = vadd.f32 0.0, %v736
        %v738 = vpop.f32.mrb[0].mxu0
        %v739 = vpop.f32.mrb[0].mxu0
        %v740 = vadd.f32 0.0, %v739
        %v741 = vpop.f32.mrb[0].mxu0
        %742 = vmatprep.mubr.bf16.mxu0 0
        %743 = vmatmul.mubr.bf16.gmra.mrb[0].mxu0 %v600
        %v744 = vpop.f32.mrb[0].mxu0
        %v745 = vadd.f32 0.0, %v744
        %v746 = vpop.f32.mrb[0].mxu0
        %v747 = vpop.f32.mrb[0].mxu0
        %v748 = vadd.f32 0.0, %v747
        %v749 = vpop.f32.mrb[0].mxu0
        %750 = vmatprep.mubr.bf16.mxu0 0
        %751 = vmatmul.mubr.bf16.gmra.mrb[0].mxu0 %v601
        %v752 = vpop.f32.mrb[0].mxu0
        %v753 = vadd.f32 0.0, %v752
        %v754 = vpop.f32.mrb[0].mxu0
        %v755 = vpop.f32.mrb[0].mxu0
        %v756 = vadd.f32 0.0, %v755
        %v757 = vpop.f32.mrb[0].mxu0
        %758 = vmatprep.mubr.bf16.mxu0 0
        %759 = vmatmul.mubr.bf16.gmra.mrb[0].mxu0 %v602
        %v760 = vpop.f32.mrb[0].mxu0
        %v761 = vadd.f32 0.0, %v760
        %v762 = vpop.f32.mrb[0].mxu0
        %v763 = vpop.f32.mrb[0].mxu0
        %v764 = vadd.f32 0.0, %v763
        %v765 = vpop.f32.mrb[0].mxu0
        %766 = vmatprep.mubr.bf16.mxu0 0
        %767 = vmatmul.mubr.bf16.gmra.mrb[0].mxu0 %v603
        %v768 = vpop.f32.mrb[0].mxu0
        %v769 = vadd.f32 0.0, %v768
        %v770 = vpop.f32.mrb[0].mxu0
        %v771 = vpop.f32.mrb[0].mxu0
        %v772 = vadd.f32 0.0, %v771
        %v773 = vpop.f32.mrb[0].mxu0
        %774 = vdwg.mxu0
        %v795 = vunpack.c.l.b16 %v268
        %v796 = vunpack.c.l.b16 %v269
        %v797 = vunpack.c.l.b16 %v270
        %v798 = vunpack.c.l.b16 %v271
        %v799 = vunpack.c.l.b16 %v272
        %v800 = vunpack.c.l.b16 %v273
        %v801 = vunpack.c.l.b16 %v274
        %v802 = vunpack.c.l.b16 %v275
        %v803 = vunpack.c.l.b16 %v276
        %v804 = vunpack.c.l.b16 %v277
        %v805 = vunpack.c.l.b16 %v278
        %v806 = vunpack.c.l.b16 %v279
        %v807 = vunpack.c.l.b16 %v280
        %v808 = vunpack.c.l.b16 %v281
        %v809 = vunpack.c.l.b16 %v282
        %v810 = vunpack.c.l.b16 %v283
        %v811 = vunpack.c.l.b16 %v284
        %v812 = vunpack.c.l.b16 %v285
        %v813 = vunpack.c.l.b16 %v286
        %v814 = vunpack.c.l.b16 %v287
        %v815 = vpack.c.b16 %v796, %v795
        %v816 = vpack.c.b16 %v798, %v797
        %v817 = vpack.c.b16 %v800, %v799
        %v818 = vpack.c.b16 %v802, %v801
        %v819 = vpack.c.b16 %v804, %v803
        %v820 = vpack.c.b16 %v806, %v805
        %v821 = vpack.c.b16 %v808, %v807
        %v822 = vpack.c.b16 %v810, %v809
        %v823 = vpack.c.b16 %v812, %v811
        %v824 = vpack.c.b16 %v814, %v813
        %v851 = vunpack.c.l.b16 %v288
        %v852 = vunpack.c.l.b16 %v289
        %v853 = vunpack.c.l.b16 %v290
        %v854 = vunpack.c.l.b16 %v291
        %v855 = vunpack.c.l.b16 %v292
        %v856 = vunpack.c.l.b16 %v293
        %v857 = vunpack.c.l.b16 %v294
        %v858 = vunpack.c.l.b16 %v295
        %v859 = vunpack.c.l.b16 %v296
        %v860 = vunpack.c.l.b16 %v297
        %v861 = vunpack.c.l.b16 %v298
        %v862 = vunpack.c.l.b16 %v299
        %v863 = vunpack.c.l.b16 %v300
        %v864 = vunpack.c.l.b16 %v301
        %v865 = vunpack.c.l.b16 %v302
        %v866 = vunpack.c.l.b16 %v303
        %v867 = vpack.c.b16 %v852, %v851
        %v868 = vpack.c.b16 %v854, %v853
        %v869 = vpack.c.b16 %v856, %v855
        %v870 = vpack.c.b16 %v858, %v857
        %v871 = vpack.c.b16 %v860, %v859
        %v872 = vpack.c.b16 %v862, %v861
        %v873 = vpack.c.b16 %v864, %v863
        %v874 = vpack.c.b16 %v866, %v865
        %883 = vmatprep.subr.bf16.mxu0 0
        %884 = vmatpush1.bf16.msra.mxu0 %v867
        %885 = vmatprep.subr.bf16.mxu0 0
        %886 = vmatpush1.bf16.msra.mxu0 %v868
        %887 = vmatprep.subr.bf16.mxu0 0
        %888 = vmatpush1.bf16.msra.mxu0 %v869
        %889 = vmatprep.subr.bf16.mxu0 0
        %890 = vmatpush1.bf16.msra.mxu0 %v870
        %891 = vmatprep.subr.bf16.mxu0 0
        %892 = vmatpush1.bf16.msra.mxu0 %v871
        %893 = vmatprep.subr.bf16.mxu0 0
        %894 = vmatpush1.bf16.msra.mxu0 %v872
        %895 = vmatprep.subr.bf16.mxu0 0
        %896 = vmatpush1.bf16.msra.mxu0 %v873
        %897 = vmatprep.subr.bf16.mxu0 0
        %898 = vmatpush1.bf16.msra.mxu0 %v874
        %899 = vmatprep.subr.bf16.mxu0 0
        %900 = vmatpush1.bf16.msra.mxu0 0
        %901 = vmatprep.subr.bf16.mxu0 0
        %902 = vmatpush1.bf16.msra.mxu0 0
        %903 = vmatprep.subr.bf16.mxu0 0
        %904 = vmatpush1.bf16.msra.mxu0 0
        %905 = vmatprep.subr.bf16.mxu0 0
        %906 = vmatpush1.bf16.msra.mxu0 0
        %907 = vmatprep.subr.bf16.mxu0 0
        %908 = vmatpush1.bf16.msra.mxu0 0
        %909 = vmatprep.subr.bf16.mxu0 0
        %910 = vmatpush1.bf16.msra.mxu0 0
        %911 = vmatprep.subr.bf16.mxu0 0
        %912 = vmatpush1.bf16.msra.mxu0 0
        %913 = vmatprep.subr.bf16.mxu0 0
        %914 = vmatpush1.bf16.msra.mxu0 0
        %915 = vmatprep.mubr.bf16.mxu0 0
        %916 = vmatmul.mubr.bf16.gmra.mrb[0].mxu0 %v815
        %v917 = vpop.f32.mrb[0].mxu0
        %v918 = vadd.f32 %v697, %v917
        %v919 = vpop.f32.mrb[0].mxu0
        %v920 = vpop.f32.mrb[0].mxu0
        %v921 = vadd.f32 %v700, %v920
        %v922 = vpop.f32.mrb[0].mxu0
        %923 = vmatprep.mubr.bf16.mxu0 0
        %924 = vmatmul.mubr.bf16.gmra.mrb[0].mxu0 %v816
        %v925 = vpop.f32.mrb[0].mxu0
        %v926 = vadd.f32 %v705, %v925
        %v927 = vpop.f32.mrb[0].mxu0
        %v928 = vpop.f32.mrb[0].mxu0
        %v929 = vadd.f32 %v708, %v928
        %v930 = vpop.f32.mrb[0].mxu0
        %931 = vmatprep.mubr.bf16.mxu0 0
        %932 = vmatmul.mubr.bf16.gmra.mrb[0].mxu0 %v817
        %v933 = vpop.f32.mrb[0].mxu0
        %v934 = vadd.f32 %v713, %v933
        %v935 = vpop.f32.mrb[0].mxu0
        %v936 = vpop.f32.mrb[0].mxu0
        %v937 = vadd.f32 %v716, %v936
        %v938 = vpop.f32.mrb[0].mxu0
        %939 = vmatprep.mubr.bf16.mxu0 0
        %940 = vmatmul.mubr.bf16.gmra.mrb[0].mxu0 %v818
        %v941 = vpop.f32.mrb[0].mxu0
        %v942 = vadd.f32 %v721, %v941
        %v943 = vpop.f32.mrb[0].mxu0
        %v944 = vpop.f32.mrb[0].mxu0
        %v945 = vadd.f32 %v724, %v944
        %v946 = vpop.f32.mrb[0].mxu0
        %947 = vmatprep.mubr.bf16.mxu0 0
        %948 = vmatmul.mubr.bf16.gmra.mrb[0].mxu0 %v819
        %v949 = vpop.f32.mrb[0].mxu0
        %v950 = vadd.f32 %v729, %v949
        %v951 = vpop.f32.mrb[0].mxu0
        %v952 = vpop.f32.mrb[0].mxu0
        %v953 = vadd.f32 %v732, %v952
        %v954 = vpop.f32.mrb[0].mxu0
        %955 = vmatprep.mubr.bf16.mxu0 0
        %956 = vmatmul.mubr.bf16.gmra.mrb[0].mxu0 %v820
        %v957 = vpop.f32.mrb[0].mxu0
        %v958 = vadd.f32 %v737, %v957
        %v959 = vpop.f32.mrb[0].mxu0
        %v960 = vpop.f32.mrb[0].mxu0
        %v961 = vadd.f32 %v740, %v960
        %v962 = vpop.f32.mrb[0].mxu0
        %963 = vmatprep.mubr.bf16.mxu0 0
        %964 = vmatmul.mubr.bf16.gmra.mrb[0].mxu0 %v821
        %v965 = vpop.f32.mrb[0].mxu0
        %v966 = vadd.f32 %v745, %v965
        %v967 = vpop.f32.mrb[0].mxu0
        %v968 = vpop.f32.mrb[0].mxu0
        %v969 = vadd.f32 %v748, %v968
        %v970 = vpop.f32.mrb[0].mxu0
        %971 = vmatprep.mubr.bf16.mxu0 0
        %972 = vmatmul.mubr.bf16.gmra.mrb[0].mxu0 %v822
        %v973 = vpop.f32.mrb[0].mxu0
        %v974 = vadd.f32 %v753, %v973
        %v975 = vpop.f32.mrb[0].mxu0
        %v976 = vpop.f32.mrb[0].mxu0
        %v977 = vadd.f32 %v756, %v976
        %v978 = vpop.f32.mrb[0].mxu0
        %979 = vmatprep.mubr.bf16.mxu0 0
        %980 = vmatmul.mubr.bf16.gmra.mrb[0].mxu0 %v823
        %v981 = vpop.f32.mrb[0].mxu0
        %v982 = vadd.f32 %v761, %v981
        %v983 = vpop.f32.mrb[0].mxu0
        %v984 = vpop.f32.mrb[0].mxu0
        %v985 = vadd.f32 %v764, %v984
        %v986 = vpop.f32.mrb[0].mxu0
        %987 = vmatprep.mubr.bf16.mxu0 0
        %988 = vmatmul.mubr.bf16.gmra.mrb[0].mxu0 %v824
        %v989 = vpop.f32.mrb[0].mxu0
        %v990 = vadd.f32 %v769, %v989
        %v991 = vpop.f32.mrb[0].mxu0
        %v992 = vpop.f32.mrb[0].mxu0
        %v993 = vadd.f32 %v772, %v992
        %v994 = vpop.f32.mrb[0].mxu0
        %995 = vdwg.mxu0
        %v996 = vld [vmem:[%s263] sm:$0xe]
        %v997 = vld [vmem:[%s263 + $0xc] sm:$0xe]
        %v998 = vld [vmem:[%s263 + $0x18] sm:$0xe]
        %v999 = vld [vmem:[%s263 + $0x24] sm:$0xe]
        %v1000 = vld [vmem:[%s263 + $0x30] sm:$0xe]
        %v1001 = vld [vmem:[%s263 + $0x3c] sm:$0xe]
        %v1002 = vld [vmem:[%s263 + $0x48] sm:$0xe]
        %v1003 = vld [vmem:[%s263 + $0x54] sm:$0xe]
        %v1004 = vld [vmem:[%s263 + $0x60] sm:$0xe]
        %v1005 = vld [vmem:[%s263 + $0x6c] sm:$0xe]
        %vm1026 = vcmask 1042432
        %vm1027 = vcmask 1046532
        %vm1028 = vmor %vm1026, %vm1027
        %v1029 = vrot.slane %v996, 5
        %v1030 = vrot.slane %v1029, 4
        %v1031 = vrot.slane %v269, 5
        %v1032 = vsel %vm1028, %v1030, %v1031
        %v1033 = vrot.slane %v1031, 4
        %v1034 = vrot.slane %v304, 5
        %v1035 = vsel %vm1028, %v1033, %v1034
        %v1036 = vrot.slane %v997, 5
        %v1037 = vrot.slane %v1036, 4
        %v1038 = vrot.slane %v271, 5
        %v1039 = vsel %vm1028, %v1037, %v1038
        %v1040 = vrot.slane %v1038, 4
        %v1041 = vrot.slane %v305, 5
        %v1042 = vsel %vm1028, %v1040, %v1041
        %v1043 = vrot.slane %v998, 5
        %v1044 = vrot.slane %v1043, 4
        %v1045 = vrot.slane %v273, 5
        %v1046 = vsel %vm1028, %v1044, %v1045
        %v1047 = vrot.slane %v1045, 4
        %v1048 = vrot.slane %v306, 5
        %v1049 = vsel %vm1028, %v1047, %v1048
        %v1050 = vrot.slane %v999, 5
        %v1051 = vrot.slane %v1050, 4
        %v1052 = vrot.slane %v275, 5
        %v1053 = vsel %vm1028, %v1051, %v1052
        %v1054 = vrot.slane %v1052, 4
        %v1055 = vrot.slane %v307, 5
        %v1056 = vsel %vm1028, %v1054, %v1055
        %v1057 = vrot.slane %v1000, 5
        %v1058 = vrot.slane %v1057, 4
        %v1059 = vrot.slane %v277, 5
        %v1060 = vsel %vm1028, %v1058, %v1059
        %v1061 = vrot.slane %v1059, 4
        %v1062 = vrot.slane %v308, 5
        %v1063 = vsel %vm1028, %v1061, %v1062
        %v1064 = vrot.slane %v1001, 5
        %v1065 = vrot.slane %v1064, 4
        %v1066 = vrot.slane %v279, 5
        %v1067 = vsel %vm1028, %v1065, %v1066
        %v1068 = vrot.slane %v1066, 4
        %v1069 = vrot.slane %v309, 5
        %v1070 = vsel %vm1028, %v1068, %v1069
        %v1071 = vrot.slane %v1002, 5
        %v1072 = vrot.slane %v1071, 4
        %v1073 = vrot.slane %v281, 5
        %v1074 = vsel %vm1028, %v1072, %v1073
        %v1075 = vrot.slane %v1073, 4
        %v1076 = vrot.slane %v310, 5
        %v1077 = vsel %vm1028, %v1075, %v1076
        %v1078 = vrot.slane %v1003, 5
        %v1079 = vrot.slane %v1078, 4
        %v1080 = vrot.slane %v283, 5
        %v1081 = vsel %vm1028, %v1079, %v1080
        %v1082 = vrot.slane %v1080, 4
        %v1083 = vrot.slane %v311, 5
        %v1084 = vsel %vm1028, %v1082, %v1083
        %v1085 = vrot.slane %v1004, 5
        %v1086 = vrot.slane %v1085, 4
        %v1087 = vrot.slane %v285, 5
        %v1088 = vsel %vm1028, %v1086, %v1087
        %v1089 = vrot.slane %v1087, 4
        %v1090 = vrot.slane %v312, 5
        %v1091 = vsel %vm1028, %v1089, %v1090
        %v1092 = vrot.slane %v1005, 5
        %v1093 = vrot.slane %v1092, 4
        %v1094 = vrot.slane %v287, 5
        %v1095 = vsel %vm1028, %v1093, %v1094
        %v1096 = vrot.slane %v1094, 4
        %v1097 = vrot.slane %v313, 5
        %v1098 = vsel %vm1028, %v1096, %v1097
        %s1099 = scalar_lea.vmem %s1, 128
        %v1100 = vld [vmem:[%s1099] sm:$0xf]
        %v1101 = vld [vmem:[%s1099 + $0x4] sm:$0xf]
        %v1102 = vld [vmem:[%s1099 + $0x8] sm:$0xf]
        %v1103 = vld [vmem:[%s1099 + $0xc] sm:$0xf]
        %v1104 = vld [vmem:[%s1099 + $0x10] sm:$0xf]
        %v1105 = vld [vmem:[%s1099 + $0x14] sm:$0xf]
        %v1106 = vld [vmem:[%s1099 + $0x18] sm:$0xf]
        %v1107 = vld [vmem:[%s1099 + $0x1c] sm:$0xf]
        %v1108 = vld [vmem:[%s1099 + $0x20] sm:$0xf]
        %v1109 = vld [vmem:[%s1099 + $0x24] sm:$0xf]
        %v1110 = vld [vmem:[%s1099 + $0x28] sm:$0xf]
        %v1111 = vld [vmem:[%s1099 + $0x2c] sm:$0xf]
        %v1112 = vld [vmem:[%s1099 + $0x30] sm:$0xf]
        %v1113 = vld [vmem:[%s1099 + $0x34] sm:$0xf]
        %v1114 = vld [vmem:[%s1099 + $0x38] sm:$0xf]
        %v1115 = vld [vmem:[%s1099 + $0x3c] sm:$0xf]
        %v1116 = vunpack.c.l.b16 %v1032
        %v1117 = vunpack.c.l.b16 %v1035
        %v1118 = vunpack.c.l.b16 %v1039
        %v1119 = vunpack.c.l.b16 %v1042
        %v1120 = vunpack.c.l.b16 %v1046
        %v1121 = vunpack.c.l.b16 %v1049
        %v1122 = vunpack.c.l.b16 %v1053
        %v1123 = vunpack.c.l.b16 %v1056
        %v1124 = vunpack.c.l.b16 %v1060
        %v1125 = vunpack.c.l.b16 %v1063
        %v1126 = vunpack.c.l.b16 %v1067
        %v1127 = vunpack.c.l.b16 %v1070
        %v1128 = vunpack.c.l.b16 %v1074
        %v1129 = vunpack.c.l.b16 %v1077
        %v1130 = vunpack.c.l.b16 %v1081
        %v1131 = vunpack.c.l.b16 %v1084
        %v1132 = vunpack.c.l.b16 %v1088
        %v1133 = vunpack.c.l.b16 %v1091
        %v1134 = vunpack.c.l.b16 %v1095
        %v1135 = vunpack.c.l.b16 %v1098
        %v1136 = vpack.c.b16 %v1117, %v1116
        %v1137 = vpack.c.b16 %v1119, %v1118
        %v1138 = vpack.c.b16 %v1121, %v1120
        %v1139 = vpack.c.b16 %v1123, %v1122
        %v1140 = vpack.c.b16 %v1125, %v1124
        %v1141 = vpack.c.b16 %v1127, %v1126
        %v1142 = vpack.c.b16 %v1129, %v1128
        %v1143 = vpack.c.b16 %v1131, %v1130
        %v1144 = vpack.c.b16 %v1133, %v1132
        %v1145 = vpack.c.b16 %v1135, %v1134
        %v1172 = vunpack.c.l.b16 %v1100
        %v1173 = vunpack.c.l.b16 %v1101
        %v1174 = vunpack.c.l.b16 %v1102
        %v1175 = vunpack.c.l.b16 %v1103
        %v1176 = vunpack.c.l.b16 %v1104
        %v1177 = vunpack.c.l.b16 %v1105
        %v1178 = vunpack.c.l.b16 %v1106
        %v1179 = vunpack.c.l.b16 %v1107
        %v1180 = vunpack.c.l.b16 %v1108
        %v1181 = vunpack.c.l.b16 %v1109
        %v1182 = vunpack.c.l.b16 %v1110
        %v1183 = vunpack.c.l.b16 %v1111
        %v1184 = vunpack.c.l.b16 %v1112
        %v1185 = vunpack.c.l.b16 %v1113
        %v1186 = vunpack.c.l.b16 %v1114
        %v1187 = vunpack.c.l.b16 %v1115
        %v1188 = vpack.c.b16 %v1173, %v1172
        %v1189 = vpack.c.b16 %v1175, %v1174
        %v1190 = vpack.c.b16 %v1177, %v1176
        %v1191 = vpack.c.b16 %v1179, %v1178
        %v1192 = vpack.c.b16 %v1181, %v1180
        %v1193 = vpack.c.b16 %v1183, %v1182
        %v1194 = vpack.c.b16 %v1185, %v1184
        %v1195 = vpack.c.b16 %v1187, %v1186
        %1204 = vmatprep.subr.bf16.mxu0 0
        %1205 = vmatpush1.bf16.msra.mxu0 %v1188
        %1206 = vmatprep.subr.bf16.mxu0 0
        %1207 = vmatpush1.bf16.msra.mxu0 %v1189
        %1208 = vmatprep.subr.bf16.mxu0 0
        %1209 = vmatpush1.bf16.msra.mxu0 %v1190
        %1210 = vmatprep.subr.bf16.mxu0 0
        %1211 = vmatpush1.bf16.msra.mxu0 %v1191
        %1212 = vmatprep.subr.bf16.mxu0 0
        %1213 = vmatpush1.bf16.msra.mxu0 %v1192
        %1214 = vmatprep.subr.bf16.mxu0 0
        %1215 = vmatpush1.bf16.msra.mxu0 %v1193
        %1216 = vmatprep.subr.bf16.mxu0 0
        %1217 = vmatpush1.bf16.msra.mxu0 %v1194
        %1218 = vmatprep.subr.bf16.mxu0 0
        %1219 = vmatpush1.bf16.msra.mxu0 %v1195
        %1220 = vmatprep.subr.bf16.mxu0 0
        %1221 = vmatpush1.bf16.msra.mxu0 0
        %1222 = vmatprep.subr.bf16.mxu0 0
        %1223 = vmatpush1.bf16.msra.mxu0 0
        %1224 = vmatprep.subr.bf16.mxu0 0
        %1225 = vmatpush1.bf16.msra.mxu0 0
        %1226 = vmatprep.subr.bf16.mxu0 0
        %1227 = vmatpush1.bf16.msra.mxu0 0
        %1228 = vmatprep.subr.bf16.mxu0 0
        %1229 = vmatpush1.bf16.msra.mxu0 0
        %1230 = vmatprep.subr.bf16.mxu0 0
        %1231 = vmatpush1.bf16.msra.mxu0 0
        %1232 = vmatprep.subr.bf16.mxu0 0
        %1233 = vmatpush1.bf16.msra.mxu0 0
        %1234 = vmatprep.subr.bf16.mxu0 0
        %1235 = vmatpush1.bf16.msra.mxu0 0
        %1236 = vmatprep.mubr.bf16.mxu0 0
        %1237 = vmatmul.mubr.bf16.gmra.mrb[0].mxu0 %v1136
        %v1238 = vpop.f32.mrb[0].mxu0
        %v1239 = vadd.f32 0.0, %v1238
        %v1240 = vpop.f32.mrb[0].mxu0
        %v1241 = vpop.f32.mrb[0].mxu0
        %v1242 = vadd.f32 0.0, %v1241
        %v1243 = vpop.f32.mrb[0].mxu0
        %1244 = vmatprep.mubr.bf16.mxu0 0
        %1245 = vmatmul.mubr.bf16.gmra.mrb[0].mxu0 %v1137
        %v1246 = vpop.f32.mrb[0].mxu0
        %v1247 = vadd.f32 0.0, %v1246
        %v1248 = vpop.f32.mrb[0].mxu0
        %v1249 = vpop.f32.mrb[0].mxu0
        %v1250 = vadd.f32 0.0, %v1249
        %v1251 = vpop.f32.mrb[0].mxu0
        %1252 = vmatprep.mubr.bf16.mxu0 0
        %1253 = vmatmul.mubr.bf16.gmra.mrb[0].mxu0 %v1138
        %v1254 = vpop.f32.mrb[0].mxu0
        %v1255 = vadd.f32 0.0, %v1254
        %v1256 = vpop.f32.mrb[0].mxu0
        %v1257 = vpop.f32.mrb[0].mxu0
        %v1258 = vadd.f32 0.0, %v1257
        %v1259 = vpop.f32.mrb[0].mxu0
        %1260 = vmatprep.mubr.bf16.mxu0 0
        %1261 = vmatmul.mubr.bf16.gmra.mrb[0].mxu0 %v1139
        %v1262 = vpop.f32.mrb[0].mxu0
        %v1263 = vadd.f32 0.0, %v1262
        %v1264 = vpop.f32.mrb[0].mxu0
        %v1265 = vpop.f32.mrb[0].mxu0
        %v1266 = vadd.f32 0.0, %v1265
        %v1267 = vpop.f32.mrb[0].mxu0
        %1268 = vmatprep.mubr.bf16.mxu0 0
        %1269 = vmatmul.mubr.bf16.gmra.mrb[0].mxu0 %v1140
        %v1270 = vpop.f32.mrb[0].mxu0
        %v1271 = vadd.f32 0.0, %v1270
        %v1272 = vpop.f32.mrb[0].mxu0
        %v1273 = vpop.f32.mrb[0].mxu0
        %v1274 = vadd.f32 0.0, %v1273
        %v1275 = vpop.f32.mrb[0].mxu0
        %1276 = vmatprep.mubr.bf16.mxu0 0
        %1277 = vmatmul.mubr.bf16.gmra.mrb[0].mxu0 %v1141
        %v1278 = vpop.f32.mrb[0].mxu0
        %v1279 = vadd.f32 0.0, %v1278
        %v1280 = vpop.f32.mrb[0].mxu0
        %v1281 = vpop.f32.mrb[0].mxu0
        %v1282 = vadd.f32 0.0, %v1281
        %v1283 = vpop.f32.mrb[0].mxu0
        %1284 = vmatprep.mubr.bf16.mxu0 0
        %1285 = vmatmul.mubr.bf16.gmra.mrb[0].mxu0 %v1142
        %v1286 = vpop.f32.mrb[0].mxu0
        %v1287 = vadd.f32 0.0, %v1286
        %v1288 = vpop.f32.mrb[0].mxu0
        %v1289 = vpop.f32.mrb[0].mxu0
        %v1290 = vadd.f32 0.0, %v1289
        %v1291 = vpop.f32.mrb[0].mxu0
        %1292 = vmatprep.mubr.bf16.mxu0 0
        %1293 = vmatmul.mubr.bf16.gmra.mrb[0].mxu0 %v1143
        %v1294 = vpop.f32.mrb[0].mxu0
        %v1295 = vadd.f32 0.0, %v1294
        %v1296 = vpop.f32.mrb[0].mxu0
        %v1297 = vpop.f32.mrb[0].mxu0
        %v1298 = vadd.f32 0.0, %v1297
        %v1299 = vpop.f32.mrb[0].mxu0
        %1300 = vmatprep.mubr.bf16.mxu0 0
        %1301 = vmatmul.mubr.bf16.gmra.mrb[0].mxu0 %v1144
        %v1302 = vpop.f32.mrb[0].mxu0
        %v1303 = vadd.f32 0.0, %v1302
        %v1304 = vpop.f32.mrb[0].mxu0
        %v1305 = vpop.f32.mrb[0].mxu0
        %v1306 = vadd.f32 0.0, %v1305
        %v1307 = vpop.f32.mrb[0].mxu0
        %1308 = vmatprep.mubr.bf16.mxu0 0
        %1309 = vmatmul.mubr.bf16.gmra.mrb[0].mxu0 %v1145
        %v1310 = vpop.f32.mrb[0].mxu0
        %v1311 = vadd.f32 0.0, %v1310
        %v1312 = vpop.f32.mrb[0].mxu0
        %v1313 = vpop.f32.mrb[0].mxu0
        %v1314 = vadd.f32 0.0, %v1313
        %v1315 = vpop.f32.mrb[0].mxu0
        %1316 = vdwg.mxu0
        %v1317 = vadd.f32 %v918, %v1239
        %v1318 = vadd.f32 %v921, %v1242
        %v1319 = vadd.f32 %v926, %v1247
        %v1320 = vadd.f32 %v929, %v1250
        %v1321 = vadd.f32 %v934, %v1255
        %v1322 = vadd.f32 %v937, %v1258
        %v1323 = vadd.f32 %v942, %v1263
        %v1324 = vadd.f32 %v945, %v1266
        %v1325 = vadd.f32 %v950, %v1271
        %v1326 = vadd.f32 %v953, %v1274
        %v1327 = vadd.f32 %v958, %v1279
        %v1328 = vadd.f32 %v961, %v1282
        %v1329 = vadd.f32 %v966, %v1287
        %v1330 = vadd.f32 %v969, %v1290
        %v1331 = vadd.f32 %v974, %v1295
        %v1332 = vadd.f32 %v977, %v1298
        %v1333 = vadd.f32 %v982, %v1303
        %v1334 = vadd.f32 %v985, %v1306
        %v1335 = vadd.f32 %v990, %v1311
        %v1336 = vadd.f32 %v993, %v1314
        %s1337 = scalar_lea.vmem %s263, 12
        %v1338 = vld [vmem:[%s1337] sm:$0xf]
        %v1339 = vld [vmem:[%s1337 + $0x4] sm:$0xf]
        %v1340 = vld [vmem:[%s1337 + $0xc] sm:$0xf]
        %v1341 = vld [vmem:[%s1337 + $0x10] sm:$0xf]
        %v1342 = vld [vmem:[%s1337 + $0x18] sm:$0xf]
        %v1343 = vld [vmem:[%s1337 + $0x1c] sm:$0xf]
        %v1344 = vld [vmem:[%s1337 + $0x24] sm:$0xf]
        %v1345 = vld [vmem:[%s1337 + $0x28] sm:$0xf]
        %v1346 = vld [vmem:[%s1337 + $0x30] sm:$0xf]
        %v1347 = vld [vmem:[%s1337 + $0x34] sm:$0xf]
        %v1348 = vld [vmem:[%s1337 + $0x3c] sm:$0xf]
        %v1349 = vld [vmem:[%s1337 + $0x40] sm:$0xf]
        %v1350 = vld [vmem:[%s1337 + $0x48] sm:$0xf]
        %v1351 = vld [vmem:[%s1337 + $0x4c] sm:$0xf]
        %v1352 = vld [vmem:[%s1337 + $0x54] sm:$0xf]
        %v1353 = vld [vmem:[%s1337 + $0x58] sm:$0xf]
        %v1354 = vld [vmem:[%s1337 + $0x60] sm:$0xf]
        %v1355 = vld [vmem:[%s1337 + $0x64] sm:$0xf]
        %v1356 = vld [vmem:[%s1337 + $0x6c] sm:$0xf]
        %v1357 = vld [vmem:[%s1337 + $0x70] sm:$0xf]
        %s1358 = scalar_lea.vmem %s1, 192
        %v1359 = vld [vmem:[%s1358] sm:$0xf]
        %v1360 = vld [vmem:[%s1358 + $0x4] sm:$0xf]
        %v1361 = vld [vmem:[%s1358 + $0x8] sm:$0xf]
        %v1362 = vld [vmem:[%s1358 + $0xc] sm:$0xf]
        %v1363 = vld [vmem:[%s1358 + $0x10] sm:$0xf]
        %v1364 = vld [vmem:[%s1358 + $0x14] sm:$0xf]
        %v1365 = vld [vmem:[%s1358 + $0x18] sm:$0xf]
        %v1366 = vld [vmem:[%s1358 + $0x1c] sm:$0xf]
        %v1367 = vld [vmem:[%s1358 + $0x20] sm:$0xf]
        %v1368 = vld [vmem:[%s1358 + $0x24] sm:$0xf]
        %v1369 = vld [vmem:[%s1358 + $0x28] sm:$0xf]
        %v1370 = vld [vmem:[%s1358 + $0x2c] sm:$0xf]
        %v1371 = vld [vmem:[%s1358 + $0x30] sm:$0xf]
        %v1372 = vld [vmem:[%s1358 + $0x34] sm:$0xf]
        %v1373 = vld [vmem:[%s1358 + $0x38] sm:$0xf]
        %v1374 = vld [vmem:[%s1358 + $0x3c] sm:$0xf]
        %v1395 = vunpack.c.l.b16 %v1338
        %v1396 = vunpack.c.l.b16 %v1339
        %v1397 = vunpack.c.l.b16 %v1340
        %v1398 = vunpack.c.l.b16 %v1341
        %v1399 = vunpack.c.l.b16 %v1342
        %v1400 = vunpack.c.l.b16 %v1343
        %v1401 = vunpack.c.l.b16 %v1344
        %v1402 = vunpack.c.l.b16 %v1345
        %v1403 = vunpack.c.l.b16 %v1346
        %v1404 = vunpack.c.l.b16 %v1347
        %v1405 = vunpack.c.l.b16 %v1348
        %v1406 = vunpack.c.l.b16 %v1349
        %v1407 = vunpack.c.l.b16 %v1350
        %v1408 = vunpack.c.l.b16 %v1351
        %v1409 = vunpack.c.l.b16 %v1352
        %v1410 = vunpack.c.l.b16 %v1353
        %v1411 = vunpack.c.l.b16 %v1354
        %v1412 = vunpack.c.l.b16 %v1355
        %v1413 = vunpack.c.l.b16 %v1356
        %v1414 = vunpack.c.l.b16 %v1357
        %v1415 = vpack.c.b16 %v1396, %v1395
        %v1416 = vpack.c.b16 %v1398, %v1397
        %v1417 = vpack.c.b16 %v1400, %v1399
        %v1418 = vpack.c.b16 %v1402, %v1401
        %v1419 = vpack.c.b16 %v1404, %v1403
        %v1420 = vpack.c.b16 %v1406, %v1405
        %v1421 = vpack.c.b16 %v1408, %v1407
        %v1422 = vpack.c.b16 %v1410, %v1409
        %v1423 = vpack.c.b16 %v1412, %v1411
        %v1424 = vpack.c.b16 %v1414, %v1413
        %v1451 = vunpack.c.l.b16 %v1359
        %v1452 = vunpack.c.l.b16 %v1360
        %v1453 = vunpack.c.l.b16 %v1361
        %v1454 = vunpack.c.l.b16 %v1362
        %v1455 = vunpack.c.l.b16 %v1363
        %v1456 = vunpack.c.l.b16 %v1364
        %v1457 = vunpack.c.l.b16 %v1365
        %v1458 = vunpack.c.l.b16 %v1366
        %v1459 = vunpack.c.l.b16 %v1367
        %v1460 = vunpack.c.l.b16 %v1368
        %v1461 = vunpack.c.l.b16 %v1369
        %v1462 = vunpack.c.l.b16 %v1370
        %v1463 = vunpack.c.l.b16 %v1371
        %v1464 = vunpack.c.l.b16 %v1372
        %v1465 = vunpack.c.l.b16 %v1373
        %v1466 = vunpack.c.l.b16 %v1374
        %v1467 = vpack.c.b16 %v1452, %v1451
        %v1468 = vpack.c.b16 %v1454, %v1453
        %v1469 = vpack.c.b16 %v1456, %v1455
        %v1470 = vpack.c.b16 %v1458, %v1457
        %v1471 = vpack.c.b16 %v1460, %v1459
        %v1472 = vpack.c.b16 %v1462, %v1461
        %v1473 = vpack.c.b16 %v1464, %v1463
        %v1474 = vpack.c.b16 %v1466, %v1465
        %1483 = vmatprep.subr.bf16.mxu0 0
        %1484 = vmatpush1.bf16.msra.mxu0 %v1467
        %1485 = vmatprep.subr.bf16.mxu0 0
        %1486 = vmatpush1.bf16.msra.mxu0 %v1468
        %1487 = vmatprep.subr.bf16.mxu0 0
        %1488 = vmatpush1.bf16.msra.mxu0 %v1469
        %1489 = vmatprep.subr.bf16.mxu0 0
        %1490 = vmatpush1.bf16.msra.mxu0 %v1470
        %1491 = vmatprep.subr.bf16.mxu0 0
        %1492 = vmatpush1.bf16.msra.mxu0 %v1471
        %1493 = vmatprep.subr.bf16.mxu0 0
        %1494 = vmatpush1.bf16.msra.mxu0 %v1472
        %1495 = vmatprep.subr.bf16.mxu0 0
        %1496 = vmatpush1.bf16.msra.mxu0 %v1473
        %1497 = vmatprep.subr.bf16.mxu0 0
        %1498 = vmatpush1.bf16.msra.mxu0 %v1474
        %1499 = vmatprep.subr.bf16.mxu0 0
        %1500 = vmatpush1.bf16.msra.mxu0 0
        %1501 = vmatprep.subr.bf16.mxu0 0
        %1502 = vmatpush1.bf16.msra.mxu0 0
        %1503 = vmatprep.subr.bf16.mxu0 0
        %1504 = vmatpush1.bf16.msra.mxu0 0
        %1505 = vmatprep.subr.bf16.mxu0 0
        %1506 = vmatpush1.bf16.msra.mxu0 0
        %1507 = vmatprep.subr.bf16.mxu0 0
        %1508 = vmatpush1.bf16.msra.mxu0 0
        %1509 = vmatprep.subr.bf16.mxu0 0
        %1510 = vmatpush1.bf16.msra.mxu0 0
        %1511 = vmatprep.subr.bf16.mxu0 0
        %1512 = vmatpush1.bf16.msra.mxu0 0
        %1513 = vmatprep.subr.bf16.mxu0 0
        %1514 = vmatpush1.bf16.msra.mxu0 0
        %1515 = vmatprep.mubr.bf16.mxu0 0
        %1516 = vmatmul.mubr.bf16.gmra.mrb[0].mxu0 %v1415
        %v1517 = vpop.f32.mrb[0].mxu0
        %v1518 = vadd.f32 0.0, %v1517
        %v1519 = vpop.f32.mrb[0].mxu0
        %v1520 = vpop.f32.mrb[0].mxu0
        %v1521 = vadd.f32 0.0, %v1520
        %v1522 = vpop.f32.mrb[0].mxu0
        %1523 = vmatprep.mubr.bf16.mxu0 0
        %1524 = vmatmul.mubr.bf16.gmra.mrb[0].mxu0 %v1416
        %v1525 = vpop.f32.mrb[0].mxu0
        %v1526 = vadd.f32 0.0, %v1525
        %v1527 = vpop.f32.mrb[0].mxu0
        %v1528 = vpop.f32.mrb[0].mxu0
        %v1529 = vadd.f32 0.0, %v1528
        %v1530 = vpop.f32.mrb[0].mxu0
        %1531 = vmatprep.mubr.bf16.mxu0 0
        %1532 = vmatmul.mubr.bf16.gmra.mrb[0].mxu0 %v1417
        %v1533 = vpop.f32.mrb[0].mxu0
        %v1534 = vadd.f32 0.0, %v1533
        %v1535 = vpop.f32.mrb[0].mxu0
        %v1536 = vpop.f32.mrb[0].mxu0
        %v1537 = vadd.f32 0.0, %v1536
        %v1538 = vpop.f32.mrb[0].mxu0
        %1539 = vmatprep.mubr.bf16.mxu0 0
        %1540 = vmatmul.mubr.bf16.gmra.mrb[0].mxu0 %v1418
        %v1541 = vpop.f32.mrb[0].mxu0
        %v1542 = vadd.f32 0.0, %v1541
        %v1543 = vpop.f32.mrb[0].mxu0
        %v1544 = vpop.f32.mrb[0].mxu0
        %v1545 = vadd.f32 0.0, %v1544
        %v1546 = vpop.f32.mrb[0].mxu0
        %1547 = vmatprep.mubr.bf16.mxu0 0
        %1548 = vmatmul.mubr.bf16.gmra.mrb[0].mxu0 %v1419
        %v1549 = vpop.f32.mrb[0].mxu0
        %v1550 = vadd.f32 0.0, %v1549
        %v1551 = vpop.f32.mrb[0].mxu0
        %v1552 = vpop.f32.mrb[0].mxu0
        %v1553 = vadd.f32 0.0, %v1552
        %v1554 = vpop.f32.mrb[0].mxu0
        %1555 = vmatprep.mubr.bf16.mxu0 0
        %1556 = vmatmul.mubr.bf16.gmra.mrb[0].mxu0 %v1420
        %v1557 = vpop.f32.mrb[0].mxu0
        %v1558 = vadd.f32 0.0, %v1557
        %v1559 = vpop.f32.mrb[0].mxu0
        %v1560 = vpop.f32.mrb[0].mxu0
        %v1561 = vadd.f32 0.0, %v1560
        %v1562 = vpop.f32.mrb[0].mxu0
        %1563 = vmatprep.mubr.bf16.mxu0 0
        %1564 = vmatmul.mubr.bf16.gmra.mrb[0].mxu0 %v1421
        %v1565 = vpop.f32.mrb[0].mxu0
        %v1566 = vadd.f32 0.0, %v1565
        %v1567 = vpop.f32.mrb[0].mxu0
        %v1568 = vpop.f32.mrb[0].mxu0
        %v1569 = vadd.f32 0.0, %v1568
        %v1570 = vpop.f32.mrb[0].mxu0
        %1571 = vmatprep.mubr.bf16.mxu0 0
        %1572 = vmatmul.mubr.bf16.gmra.mrb[0].mxu0 %v1422
        %v1573 = vpop.f32.mrb[0].mxu0
        %v1574 = vadd.f32 0.0, %v1573
        %v1575 = vpop.f32.mrb[0].mxu0
        %v1576 = vpop.f32.mrb[0].mxu0
        %v1577 = vadd.f32 0.0, %v1576
        %v1578 = vpop.f32.mrb[0].mxu0
        %1579 = vmatprep.mubr.bf16.mxu0 0
        %1580 = vmatmul.mubr.bf16.gmra.mrb[0].mxu0 %v1423
        %v1581 = vpop.f32.mrb[0].mxu0
        %v1582 = vadd.f32 0.0, %v1581
        %v1583 = vpop.f32.mrb[0].mxu0
        %v1584 = vpop.f32.mrb[0].mxu0
        %v1585 = vadd.f32 0.0, %v1584
        %v1586 = vpop.f32.mrb[0].mxu0
        %1587 = vmatprep.mubr.bf16.mxu0 0
        %1588 = vmatmul.mubr.bf16.gmra.mrb[0].mxu0 %v1424
        %v1589 = vpop.f32.mrb[0].mxu0
        %v1590 = vadd.f32 0.0, %v1589
        %v1591 = vpop.f32.mrb[0].mxu0
        %v1592 = vpop.f32.mrb[0].mxu0
        %v1593 = vadd.f32 0.0, %v1592
        %v1594 = vpop.f32.mrb[0].mxu0
        %1595 = vdwg.mxu0
        %v1596 = vadd.f32 %v1317, %v1518
        %v1597 = vadd.f32 %v1318, %v1521
        %v1598 = vadd.f32 %v1319, %v1526
        %v1599 = vadd.f32 %v1320, %v1529
        %v1600 = vadd.f32 %v1321, %v1534
        %v1601 = vadd.f32 %v1322, %v1537
        %v1602 = vadd.f32 %v1323, %v1542
        %v1603 = vadd.f32 %v1324, %v1545
        %v1604 = vadd.f32 %v1325, %v1550
        %v1605 = vadd.f32 %v1326, %v1553
        %v1606 = vadd.f32 %v1327, %v1558
        %v1607 = vadd.f32 %v1328, %v1561
        %v1608 = vadd.f32 %v1329, %v1566
        %v1609 = vadd.f32 %v1330, %v1569
        %v1610 = vadd.f32 %v1331, %v1574
        %v1611 = vadd.f32 %v1332, %v1577
        %v1612 = vadd.f32 %v1333, %v1582
        %v1613 = vadd.f32 %v1334, %v1585
        %v1614 = vadd.f32 %v1335, %v1590
        %v1615 = vadd.f32 %v1336, %v1593
        %v1616 = vld [vmem:[%s1337] sm:$0xf]
        %v1617 = vld [vmem:[%s1337 + $0x4] sm:$0xf]
        %v1618 = vld [vmem:[%s1337 + $0x8] sm:$0x1]
        %v1619 = vld [vmem:[%s1337 + $0xc] sm:$0xf]
        %v1620 = vld [vmem:[%s1337 + $0x10] sm:$0xf]
        %v1621 = vld [vmem:[%s1337 + $0x14] sm:$0x1]
        %v1622 = vld [vmem:[%s1337 + $0x18] sm:$0xf]
        %v1623 = vld [vmem:[%s1337 + $0x1c] sm:$0xf]
        %v1624 = vld [vmem:[%s1337 + $0x20] sm:$0x1]
        %v1625 = vld [vmem:[%s1337 + $0x24] sm:$0xf]
        %v1626 = vld [vmem:[%s1337 + $0x28] sm:$0xf]
        %v1627 = vld [vmem:[%s1337 + $0x2c] sm:$0x1]
        %v1628 = vld [vmem:[%s1337 + $0x30] sm:$0xf]
        %v1629 = vld [vmem:[%s1337 + $0x34] sm:$0xf]
        %v1630 = vld [vmem:[%s1337 + $0x38] sm:$0x1]
        %v1631 = vld [vmem:[%s1337 + $0x3c] sm:$0xf]
        %v1632 = vld [vmem:[%s1337 + $0x40] sm:$0xf]
        %v1633 = vld [vmem:[%s1337 + $0x44] sm:$0x1]
        %v1634 = vld [vmem:[%s1337 + $0x48] sm:$0xf]
        %v1635 = vld [vmem:[%s1337 + $0x4c] sm:$0xf]
        %v1636 = vld [vmem:[%s1337 + $0x50] sm:$0x1]
        %v1637 = vld [vmem:[%s1337 + $0x54] sm:$0xf]
        %v1638 = vld [vmem:[%s1337 + $0x58] sm:$0xf]
        %v1639 = vld [vmem:[%s1337 + $0x5c] sm:$0x1]
        %v1640 = vld [vmem:[%s1337 + $0x60] sm:$0xf]
        %v1641 = vld [vmem:[%s1337 + $0x64] sm:$0xf]
        %v1642 = vld [vmem:[%s1337 + $0x68] sm:$0x1]
        %v1643 = vld [vmem:[%s1337 + $0x6c] sm:$0xf]
        %v1644 = vld [vmem:[%s1337 + $0x70] sm:$0xf]
        %v1645 = vld [vmem:[%s1337 + $0x74] sm:$0x1]
        %v1647 = vshrl.u32 %v1616, 16
        %v1649 = vrot.slane %v1647, 4
        %v1650 = vshll.u32 %v1616, 16
        %v1652 = vrot.slane %v1650, 5
        %v1653 = vor.u32 %v1649, %v1652
        %v1654 = vrot.slane %v1653, 4
        %v1656 = vshll.u32 %v1617, 16
        %v1658 = vrot.slane %v1656, 5
        %v1659 = vsel %vm316, %v1654, %v1658
        %v1660 = vshrl.u32 %v1617, 16
        %v1662 = vrot.slane %v1660, 4
        %v1663 = vor.u32 %v1662, %v1658
        %v1664 = vrot.slane %v1663, 4
        %v1666 = vshll.u32 %v1618, 16
        %v1668 = vrot.slane %v1666, 5
        %v1669 = vsel %vm316, %v1664, %v1668
        %v1671 = vshrl.u32 %v1619, 16
        %v1673 = vrot.slane %v1671, 4
        %v1674 = vshll.u32 %v1619, 16
        %v1676 = vrot.slane %v1674, 5
        %v1677 = vor.u32 %v1673, %v1676
        %v1678 = vrot.slane %v1677, 4
        %v1680 = vshll.u32 %v1620, 16
        %v1682 = vrot.slane %v1680, 5
        %v1683 = vsel %vm316, %v1678, %v1682
        %v1684 = vshrl.u32 %v1620, 16
        %v1686 = vrot.slane %v1684, 4
        %v1687 = vor.u32 %v1686, %v1682
        %v1688 = vrot.slane %v1687, 4
        %v1690 = vshll.u32 %v1621, 16
        %v1692 = vrot.slane %v1690, 5
        %v1693 = vsel %vm316, %v1688, %v1692
        %v1695 = vshrl.u32 %v1622, 16
        %v1697 = vrot.slane %v1695, 4
        %v1698 = vshll.u32 %v1622, 16
        %v1700 = vrot.slane %v1698, 5
        %v1701 = vor.u32 %v1697, %v1700
        %v1702 = vrot.slane %v1701, 4
        %v1704 = vshll.u32 %v1623, 16
        %v1706 = vrot.slane %v1704, 5
        %v1707 = vsel %vm316, %v1702, %v1706
        %v1708 = vshrl.u32 %v1623, 16
        %v1710 = vrot.slane %v1708, 4
        %v1711 = vor.u32 %v1710, %v1706
        %v1712 = vrot.slane %v1711, 4
        %v1714 = vshll.u32 %v1624, 16
        %v1716 = vrot.slane %v1714, 5
        %v1717 = vsel %vm316, %v1712, %v1716
        %v1719 = vshrl.u32 %v1625, 16
        %v1721 = vrot.slane %v1719, 4
        %v1722 = vshll.u32 %v1625, 16
        %v1724 = vrot.slane %v1722, 5
        %v1725 = vor.u32 %v1721, %v1724
        %v1726 = vrot.slane %v1725, 4
        %v1728 = vshll.u32 %v1626, 16
        %v1730 = vrot.slane %v1728, 5
        %v1731 = vsel %vm316, %v1726, %v1730
        %v1732 = vshrl.u32 %v1626, 16
        %v1734 = vrot.slane %v1732, 4
        %v1735 = vor.u32 %v1734, %v1730
        %v1736 = vrot.slane %v1735, 4
        %v1738 = vshll.u32 %v1627, 16
        %v1740 = vrot.slane %v1738, 5
        %v1741 = vsel %vm316, %v1736, %v1740
        %v1743 = vshrl.u32 %v1628, 16
        %v1745 = vrot.slane %v1743, 4
        %v1746 = vshll.u32 %v1628, 16
        %v1748 = vrot.slane %v1746, 5
        %v1749 = vor.u32 %v1745, %v1748
        %v1750 = vrot.slane %v1749, 4
        %v1752 = vshll.u32 %v1629, 16
        %v1754 = vrot.slane %v1752, 5
        %v1755 = vsel %vm316, %v1750, %v1754
        %v1756 = vshrl.u32 %v1629, 16
        %v1758 = vrot.slane %v1756, 4
        %v1759 = vor.u32 %v1758, %v1754
        %v1760 = vrot.slane %v1759, 4
        %v1762 = vshll.u32 %v1630, 16
        %v1764 = vrot.slane %v1762, 5
        %v1765 = vsel %vm316, %v1760, %v1764
        %v1767 = vshrl.u32 %v1631, 16
        %v1769 = vrot.slane %v1767, 4
        %v1770 = vshll.u32 %v1631, 16
        %v1772 = vrot.slane %v1770, 5
        %v1773 = vor.u32 %v1769, %v1772
        %v1774 = vrot.slane %v1773, 4
        %v1776 = vshll.u32 %v1632, 16
        %v1778 = vrot.slane %v1776, 5
        %v1779 = vsel %vm316, %v1774, %v1778
        %v1780 = vshrl.u32 %v1632, 16
        %v1782 = vrot.slane %v1780, 4
        %v1783 = vor.u32 %v1782, %v1778
        %v1784 = vrot.slane %v1783, 4
        %v1786 = vshll.u32 %v1633, 16
        %v1788 = vrot.slane %v1786, 5
        %v1789 = vsel %vm316, %v1784, %v1788
        %v1791 = vshrl.u32 %v1634, 16
        %v1793 = vrot.slane %v1791, 4
        %v1794 = vshll.u32 %v1634, 16
        %v1796 = vrot.slane %v1794, 5
        %v1797 = vor.u32 %v1793, %v1796
        %v1798 = vrot.slane %v1797, 4
        %v1800 = vshll.u32 %v1635, 16
        %v1802 = vrot.slane %v1800, 5
        %v1803 = vsel %vm316, %v1798, %v1802
        %v1804 = vshrl.u32 %v1635, 16
        %v1806 = vrot.slane %v1804, 4
        %v1807 = vor.u32 %v1806, %v1802
        %v1808 = vrot.slane %v1807, 4
        %v1810 = vshll.u32 %v1636, 16
        %v1812 = vrot.slane %v1810, 5
        %v1813 = vsel %vm316, %v1808, %v1812
        %v1815 = vshrl.u32 %v1637, 16
        %v1817 = vrot.slane %v1815, 4
        %v1818 = vshll.u32 %v1637, 16
        %v1820 = vrot.slane %v1818, 5
        %v1821 = vor.u32 %v1817, %v1820
        %v1822 = vrot.slane %v1821, 4
        %v1824 = vshll.u32 %v1638, 16
        %v1826 = vrot.slane %v1824, 5
        %v1827 = vsel %vm316, %v1822, %v1826
        %v1828 = vshrl.u32 %v1638, 16
        %v1830 = vrot.slane %v1828, 4
        %v1831 = vor.u32 %v1830, %v1826
        %v1832 = vrot.slane %v1831, 4
        %v1834 = vshll.u32 %v1639, 16
        %v1836 = vrot.slane %v1834, 5
        %v1837 = vsel %vm316, %v1832, %v1836
        %v1839 = vshrl.u32 %v1640, 16
        %v1841 = vrot.slane %v1839, 4
        %v1842 = vshll.u32 %v1640, 16
        %v1844 = vrot.slane %v1842, 5
        %v1845 = vor.u32 %v1841, %v1844
        %v1846 = vrot.slane %v1845, 4
        %v1848 = vshll.u32 %v1641, 16
        %v1850 = vrot.slane %v1848, 5
        %v1851 = vsel %vm316, %v1846, %v1850
        %v1852 = vshrl.u32 %v1641, 16
        %v1854 = vrot.slane %v1852, 4
        %v1855 = vor.u32 %v1854, %v1850
        %v1856 = vrot.slane %v1855, 4
        %v1858 = vshll.u32 %v1642, 16
        %v1860 = vrot.slane %v1858, 5
        %v1861 = vsel %vm316, %v1856, %v1860
        %v1863 = vshrl.u32 %v1643, 16
        %v1865 = vrot.slane %v1863, 4
        %v1866 = vshll.u32 %v1643, 16
        %v1868 = vrot.slane %v1866, 5
        %v1869 = vor.u32 %v1865, %v1868
        %v1870 = vrot.slane %v1869, 4
        %v1872 = vshll.u32 %v1644, 16
        %v1874 = vrot.slane %v1872, 5
        %v1875 = vsel %vm316, %v1870, %v1874
        %v1876 = vshrl.u32 %v1644, 16
        %v1878 = vrot.slane %v1876, 4
        %v1879 = vor.u32 %v1878, %v1874
        %v1880 = vrot.slane %v1879, 4
        %v1882 = vshll.u32 %v1645, 16
        %v1884 = vrot.slane %v1882, 5
        %v1885 = vsel %vm316, %v1880, %v1884
        %s1886 = scalar_lea.vmem %s1, 256
        %v1887 = vld [vmem:[%s1886] sm:$0xf]
        %v1888 = vld [vmem:[%s1886 + $0x4] sm:$0xf]
        %v1889 = vld [vmem:[%s1886 + $0x8] sm:$0xf]
        %v1890 = vld [vmem:[%s1886 + $0xc] sm:$0xf]
        %v1891 = vld [vmem:[%s1886 + $0x10] sm:$0xf]
        %v1892 = vld [vmem:[%s1886 + $0x14] sm:$0xf]
        %v1893 = vld [vmem:[%s1886 + $0x18] sm:$0xf]
        %v1894 = vld [vmem:[%s1886 + $0x1c] sm:$0xf]
        %v1895 = vld [vmem:[%s1886 + $0x20] sm:$0xf]
        %v1896 = vld [vmem:[%s1886 + $0x24] sm:$0xf]
        %v1897 = vld [vmem:[%s1886 + $0x28] sm:$0xf]
        %v1898 = vld [vmem:[%s1886 + $0x2c] sm:$0xf]
        %v1899 = vld [vmem:[%s1886 + $0x30] sm:$0xf]
        %v1900 = vld [vmem:[%s1886 + $0x34] sm:$0xf]
        %v1901 = vld [vmem:[%s1886 + $0x38] sm:$0xf]
        %v1902 = vld [vmem:[%s1886 + $0x3c] sm:$0xf]
        %v1903 = vunpack.c.l.b16 %v1659
        %v1904 = vunpack.c.l.b16 %v1669
        %v1905 = vunpack.c.l.b16 %v1683
        %v1906 = vunpack.c.l.b16 %v1693
        %v1907 = vunpack.c.l.b16 %v1707
        %v1908 = vunpack.c.l.b16 %v1717
        %v1909 = vunpack.c.l.b16 %v1731
        %v1910 = vunpack.c.l.b16 %v1741
        %v1911 = vunpack.c.l.b16 %v1755
        %v1912 = vunpack.c.l.b16 %v1765
        %v1913 = vunpack.c.l.b16 %v1779
        %v1914 = vunpack.c.l.b16 %v1789
        %v1915 = vunpack.c.l.b16 %v1803
        %v1916 = vunpack.c.l.b16 %v1813
        %v1917 = vunpack.c.l.b16 %v1827
        %v1918 = vunpack.c.l.b16 %v1837
        %v1919 = vunpack.c.l.b16 %v1851
        %v1920 = vunpack.c.l.b16 %v1861
        %v1921 = vunpack.c.l.b16 %v1875
        %v1922 = vunpack.c.l.b16 %v1885
        %v1923 = vpack.c.b16 %v1904, %v1903
        %v1924 = vpack.c.b16 %v1906, %v1905
        %v1925 = vpack.c.b16 %v1908, %v1907
        %v1926 = vpack.c.b16 %v1910, %v1909
        %v1927 = vpack.c.b16 %v1912, %v1911
        %v1928 = vpack.c.b16 %v1914, %v1913
        %v1929 = vpack.c.b16 %v1916, %v1915
        %v1930 = vpack.c.b16 %v1918, %v1917
        %v1931 = vpack.c.b16 %v1920, %v1919
        %v1932 = vpack.c.b16 %v1922, %v1921
        %v1959 = vunpack.c.l.b16 %v1887
        %v1960 = vunpack.c.l.b16 %v1888
        %v1961 = vunpack.c.l.b16 %v1889
        %v1962 = vunpack.c.l.b16 %v1890
        %v1963 = vunpack.c.l.b16 %v1891
        %v1964 = vunpack.c.l.b16 %v1892
        %v1965 = vunpack.c.l.b16 %v1893
        %v1966 = vunpack.c.l.b16 %v1894
        %v1967 = vunpack.c.l.b16 %v1895
        %v1968 = vunpack.c.l.b16 %v1896
        %v1969 = vunpack.c.l.b16 %v1897
        %v1970 = vunpack.c.l.b16 %v1898
        %v1971 = vunpack.c.l.b16 %v1899
        %v1972 = vunpack.c.l.b16 %v1900
        %v1973 = vunpack.c.l.b16 %v1901
        %v1974 = vunpack.c.l.b16 %v1902
        %v1975 = vpack.c.b16 %v1960, %v1959
        %v1976 = vpack.c.b16 %v1962, %v1961
        %v1977 = vpack.c.b16 %v1964, %v1963
        %v1978 = vpack.c.b16 %v1966, %v1965
        %v1979 = vpack.c.b16 %v1968, %v1967
        %v1980 = vpack.c.b16 %v1970, %v1969
        %v1981 = vpack.c.b16 %v1972, %v1971
        %v1982 = vpack.c.b16 %v1974, %v1973
        %1991 = vmatprep.subr.bf16.mxu0 0
        %1992 = vmatpush1.bf16.msra.mxu0 %v1975
        %1993 = vmatprep.subr.bf16.mxu0 0
        %1994 = vmatpush1.bf16.msra.mxu0 %v1976
        %1995 = vmatprep.subr.bf16.mxu0 0
        %1996 = vmatpush1.bf16.msra.mxu0 %v1977
        %1997 = vmatprep.subr.bf16.mxu0 0
        %1998 = vmatpush1.bf16.msra.mxu0 %v1978
        %1999 = vmatprep.subr.bf16.mxu0 0
        %2000 = vmatpush1.bf16.msra.mxu0 %v1979
        %2001 = vmatprep.subr.bf16.mxu0 0
        %2002 = vmatpush1.bf16.msra.mxu0 %v1980
        %2003 = vmatprep.subr.bf16.mxu0 0
        %2004 = vmatpush1.bf16.msra.mxu0 %v1981
        %2005 = vmatprep.subr.bf16.mxu0 0
        %2006 = vmatpush1.bf16.msra.mxu0 %v1982
        %2007 = vmatprep.subr.bf16.mxu0 0
        %2008 = vmatpush1.bf16.msra.mxu0 0
        %2009 = vmatprep.subr.bf16.mxu0 0
        %2010 = vmatpush1.bf16.msra.mxu0 0
        %2011 = vmatprep.subr.bf16.mxu0 0
        %2012 = vmatpush1.bf16.msra.mxu0 0
        %2013 = vmatprep.subr.bf16.mxu0 0
        %2014 = vmatpush1.bf16.msra.mxu0 0
        %2015 = vmatprep.subr.bf16.mxu0 0
        %2016 = vmatpush1.bf16.msra.mxu0 0
        %2017 = vmatprep.subr.bf16.mxu0 0
        %2018 = vmatpush1.bf16.msra.mxu0 0
        %2019 = vmatprep.subr.bf16.mxu0 0
        %2020 = vmatpush1.bf16.msra.mxu0 0
        %2021 = vmatprep.subr.bf16.mxu0 0
        %2022 = vmatpush1.bf16.msra.mxu0 0
        %2023 = vmatprep.mubr.bf16.mxu0 0
        %2024 = vmatmul.mubr.bf16.gmra.mrb[0].mxu0 %v1923
        %v2025 = vpop.f32.mrb[0].mxu0
        %v2026 = vadd.f32 0.0, %v2025
        %v2027 = vpop.f32.mrb[0].mxu0
        %v2028 = vpop.f32.mrb[0].mxu0
        %v2029 = vadd.f32 0.0, %v2028
        %v2030 = vpop.f32.mrb[0].mxu0
        %2031 = vmatprep.mubr.bf16.mxu0 0
        %2032 = vmatmul.mubr.bf16.gmra.mrb[0].mxu0 %v1924
        %v2033 = vpop.f32.mrb[0].mxu0
        %v2034 = vadd.f32 0.0, %v2033
        %v2035 = vpop.f32.mrb[0].mxu0
        %v2036 = vpop.f32.mrb[0].mxu0
        %v2037 = vadd.f32 0.0, %v2036
        %v2038 = vpop.f32.mrb[0].mxu0
        %2039 = vmatprep.mubr.bf16.mxu0 0
        %2040 = vmatmul.mubr.bf16.gmra.mrb[0].mxu0 %v1925
        %v2041 = vpop.f32.mrb[0].mxu0
        %v2042 = vadd.f32 0.0, %v2041
        %v2043 = vpop.f32.mrb[0].mxu0
        %v2044 = vpop.f32.mrb[0].mxu0
        %v2045 = vadd.f32 0.0, %v2044
        %v2046 = vpop.f32.mrb[0].mxu0
        %2047 = vmatprep.mubr.bf16.mxu0 0
        %2048 = vmatmul.mubr.bf16.gmra.mrb[0].mxu0 %v1926
        %v2049 = vpop.f32.mrb[0].mxu0
        %v2050 = vadd.f32 0.0, %v2049
        %v2051 = vpop.f32.mrb[0].mxu0
        %v2052 = vpop.f32.mrb[0].mxu0
        %v2053 = vadd.f32 0.0, %v2052
        %v2054 = vpop.f32.mrb[0].mxu0
        %2055 = vmatprep.mubr.bf16.mxu0 0
        %2056 = vmatmul.mubr.bf16.gmra.mrb[0].mxu0 %v1927
        %v2057 = vpop.f32.mrb[0].mxu0
        %v2058 = vadd.f32 0.0, %v2057
        %v2059 = vpop.f32.mrb[0].mxu0
        %v2060 = vpop.f32.mrb[0].mxu0
        %v2061 = vadd.f32 0.0, %v2060
        %v2062 = vpop.f32.mrb[0].mxu0
        %2063 = vmatprep.mubr.bf16.mxu0 0
        %2064 = vmatmul.mubr.bf16.gmra.mrb[0].mxu0 %v1928
        %v2065 = vpop.f32.mrb[0].mxu0
        %v2066 = vadd.f32 0.0, %v2065
        %v2067 = vpop.f32.mrb[0].mxu0
        %v2068 = vpop.f32.mrb[0].mxu0
        %v2069 = vadd.f32 0.0, %v2068
        %v2070 = vpop.f32.mrb[0].mxu0
        %2071 = vmatprep.mubr.bf16.mxu0 0
        %2072 = vmatmul.mubr.bf16.gmra.mrb[0].mxu0 %v1929
        %v2073 = vpop.f32.mrb[0].mxu0
        %v2074 = vadd.f32 0.0, %v2073
        %v2075 = vpop.f32.mrb[0].mxu0
        %v2076 = vpop.f32.mrb[0].mxu0
        %v2077 = vadd.f32 0.0, %v2076
        %v2078 = vpop.f32.mrb[0].mxu0
        %2079 = vmatprep.mubr.bf16.mxu0 0
        %2080 = vmatmul.mubr.bf16.gmra.mrb[0].mxu0 %v1930
        %v2081 = vpop.f32.mrb[0].mxu0
        %v2082 = vadd.f32 0.0, %v2081
        %v2083 = vpop.f32.mrb[0].mxu0
        %v2084 = vpop.f32.mrb[0].mxu0
        %v2085 = vadd.f32 0.0, %v2084
        %v2086 = vpop.f32.mrb[0].mxu0
        %2087 = vmatprep.mubr.bf16.mxu0 0
        %2088 = vmatmul.mubr.bf16.gmra.mrb[0].mxu0 %v1931
        %v2089 = vpop.f32.mrb[0].mxu0
        %v2090 = vadd.f32 0.0, %v2089
        %v2091 = vpop.f32.mrb[0].mxu0
        %v2092 = vpop.f32.mrb[0].mxu0
        %v2093 = vadd.f32 0.0, %v2092
        %v2094 = vpop.f32.mrb[0].mxu0
        %2095 = vmatprep.mubr.bf16.mxu0 0
        %2096 = vmatmul.mubr.bf16.gmra.mrb[0].mxu0 %v1932
        %v2097 = vpop.f32.mrb[0].mxu0
        %v2098 = vadd.f32 0.0, %v2097
        %v2099 = vpop.f32.mrb[0].mxu0
        %v2100 = vpop.f32.mrb[0].mxu0
        %v2101 = vadd.f32 0.0, %v2100
        %v2102 = vpop.f32.mrb[0].mxu0
        %2103 = vdwg.mxu0
        %v2104 = vadd.f32 %v1596, %v2026
        %v2105 = vadd.f32 %v1597, %v2029
        %v2106 = vadd.f32 %v1598, %v2034
        %v2107 = vadd.f32 %v1599, %v2037
        %v2108 = vadd.f32 %v1600, %v2042
        %v2109 = vadd.f32 %v1601, %v2045
        %v2110 = vadd.f32 %v1602, %v2050
        %v2111 = vadd.f32 %v1603, %v2053
        %v2112 = vadd.f32 %v1604, %v2058
        %v2113 = vadd.f32 %v1605, %v2061
        %v2114 = vadd.f32 %v1606, %v2066
        %v2115 = vadd.f32 %v1607, %v2069
        %v2116 = vadd.f32 %v1608, %v2074
        %v2117 = vadd.f32 %v1609, %v2077
        %v2118 = vadd.f32 %v1610, %v2082
        %v2119 = vadd.f32 %v1611, %v2085
        %v2120 = vadd.f32 %v1612, %v2090
        %v2121 = vadd.f32 %v1613, %v2093
        %v2122 = vadd.f32 %v1614, %v2098
        %v2123 = vadd.f32 %v1615, %v2101
        %v2124 = vld [vmem:[%s1337] sm:$0xe]
        %v2125 = vld [vmem:[%s1337 + $0xc] sm:$0xe]
        %v2126 = vld [vmem:[%s1337 + $0x18] sm:$0xe]
        %v2127 = vld [vmem:[%s1337 + $0x24] sm:$0xe]
        %v2128 = vld [vmem:[%s1337 + $0x30] sm:$0xe]
        %v2129 = vld [vmem:[%s1337 + $0x3c] sm:$0xe]
        %v2130 = vld [vmem:[%s1337 + $0x48] sm:$0xe]
        %v2131 = vld [vmem:[%s1337 + $0x54] sm:$0xe]
        %v2132 = vld [vmem:[%s1337 + $0x60] sm:$0xe]
        %v2133 = vld [vmem:[%s1337 + $0x6c] sm:$0xe]
        %v2164 = vrot.slane %v2124, 5
        %v2165 = vrot.slane %v2164, 4
        %v2166 = vrot.slane %v1617, 5
        %v2167 = vsel %vm1028, %v2165, %v2166
        %v2168 = vrot.slane %v2166, 4
        %v2169 = vrot.slane %v1618, 5
        %v2170 = vsel %vm1028, %v2168, %v2169
        %v2171 = vrot.slane %v2125, 5
        %v2172 = vrot.slane %v2171, 4
        %v2173 = vrot.slane %v1620, 5
        %v2174 = vsel %vm1028, %v2172, %v2173
        %v2175 = vrot.slane %v2173, 4
        %v2176 = vrot.slane %v1621, 5
        %v2177 = vsel %vm1028, %v2175, %v2176
        %v2178 = vrot.slane %v2126, 5
        %v2179 = vrot.slane %v2178, 4
        %v2180 = vrot.slane %v1623, 5
        %v2181 = vsel %vm1028, %v2179, %v2180
        %v2182 = vrot.slane %v2180, 4
        %v2183 = vrot.slane %v1624, 5
        %v2184 = vsel %vm1028, %v2182, %v2183
        %v2185 = vrot.slane %v2127, 5
        %v2186 = vrot.slane %v2185, 4
        %v2187 = vrot.slane %v1626, 5
        %v2188 = vsel %vm1028, %v2186, %v2187
        %v2189 = vrot.slane %v2187, 4
        %v2190 = vrot.slane %v1627, 5
        %v2191 = vsel %vm1028, %v2189, %v2190
        %v2192 = vrot.slane %v2128, 5
        %v2193 = vrot.slane %v2192, 4
        %v2194 = vrot.slane %v1629, 5
        %v2195 = vsel %vm1028, %v2193, %v2194
        %v2196 = vrot.slane %v2194, 4
        %v2197 = vrot.slane %v1630, 5
        %v2198 = vsel %vm1028, %v2196, %v2197
        %v2199 = vrot.slane %v2129, 5
        %v2200 = vrot.slane %v2199, 4
        %v2201 = vrot.slane %v1632, 5
        %v2202 = vsel %vm1028, %v2200, %v2201
        %v2203 = vrot.slane %v2201, 4
        %v2204 = vrot.slane %v1633, 5
        %v2205 = vsel %vm1028, %v2203, %v2204
        %v2206 = vrot.slane %v2130, 5
        %v2207 = vrot.slane %v2206, 4
        %v2208 = vrot.slane %v1635, 5
        %v2209 = vsel %vm1028, %v2207, %v2208
        %v2210 = vrot.slane %v2208, 4
        %v2211 = vrot.slane %v1636, 5
        %v2212 = vsel %vm1028, %v2210, %v2211
        %v2213 = vrot.slane %v2131, 5
        %v2214 = vrot.slane %v2213, 4
        %v2215 = vrot.slane %v1638, 5
        %v2216 = vsel %vm1028, %v2214, %v2215
        %v2217 = vrot.slane %v2215, 4
        %v2218 = vrot.slane %v1639, 5
        %v2219 = vsel %vm1028, %v2217, %v2218
        %v2220 = vrot.slane %v2132, 5
        %v2221 = vrot.slane %v2220, 4
        %v2222 = vrot.slane %v1641, 5
        %v2223 = vsel %vm1028, %v2221, %v2222
        %v2224 = vrot.slane %v2222, 4
        %v2225 = vrot.slane %v1642, 5
        %v2226 = vsel %vm1028, %v2224, %v2225
        %v2227 = vrot.slane %v2133, 5
        %v2228 = vrot.slane %v2227, 4
        %v2229 = vrot.slane %v1644, 5
        %v2230 = vsel %vm1028, %v2228, %v2229
        %v2231 = vrot.slane %v2229, 4
        %v2232 = vrot.slane %v1645, 5
        %v2233 = vsel %vm1028, %v2231, %v2232
        %s2234 = scalar_lea.vmem %s1, 320
        %v2235 = vld [vmem:[%s2234] sm:$0xf]
        %v2236 = vld [vmem:[%s2234 + $0x4] sm:$0xf]
        %v2237 = vld [vmem:[%s2234 + $0x8] sm:$0xf]
        %v2238 = vld [vmem:[%s2234 + $0xc] sm:$0xf]
        %v2239 = vld [vmem:[%s2234 + $0x10] sm:$0xf]
        %v2240 = vld [vmem:[%s2234 + $0x14] sm:$0xf]
        %v2241 = vld [vmem:[%s2234 + $0x18] sm:$0xf]
        %v2242 = vld [vmem:[%s2234 + $0x1c] sm:$0xf]
        %v2243 = vld [vmem:[%s2234 + $0x20] sm:$0xf]
        %v2244 = vld [vmem:[%s2234 + $0x24] sm:$0xf]
        %v2245 = vld [vmem:[%s2234 + $0x28] sm:$0xf]
        %v2246 = vld [vmem:[%s2234 + $0x2c] sm:$0xf]
        %v2247 = vld [vmem:[%s2234 + $0x30] sm:$0xf]
        %v2248 = vld [vmem:[%s2234 + $0x34] sm:$0xf]
        %v2249 = vld [vmem:[%s2234 + $0x38] sm:$0xf]
        %v2250 = vld [vmem:[%s2234 + $0x3c] sm:$0xf]
        %v2251 = vunpack.c.l.b16 %v2167
        %v2252 = vunpack.c.l.b16 %v2170
        %v2253 = vunpack.c.l.b16 %v2174
        %v2254 = vunpack.c.l.b16 %v2177
        %v2255 = vunpack.c.l.b16 %v2181
        %v2256 = vunpack.c.l.b16 %v2184
        %v2257 = vunpack.c.l.b16 %v2188
        %v2258 = vunpack.c.l.b16 %v2191
        %v2259 = vunpack.c.l.b16 %v2195
        %v2260 = vunpack.c.l.b16 %v2198
        %v2261 = vunpack.c.l.b16 %v2202
        %v2262 = vunpack.c.l.b16 %v2205
        %v2263 = vunpack.c.l.b16 %v2209
        %v2264 = vunpack.c.l.b16 %v2212
        %v2265 = vunpack.c.l.b16 %v2216
        %v2266 = vunpack.c.l.b16 %v2219
        %v2267 = vunpack.c.l.b16 %v2223
        %v2268 = vunpack.c.l.b16 %v2226
        %v2269 = vunpack.c.l.b16 %v2230
        %v2270 = vunpack.c.l.b16 %v2233
        %v2271 = vpack.c.b16 %v2252, %v2251
        %v2272 = vpack.c.b16 %v2254, %v2253
        %v2273 = vpack.c.b16 %v2256, %v2255
        %v2274 = vpack.c.b16 %v2258, %v2257
        %v2275 = vpack.c.b16 %v2260, %v2259
        %v2276 = vpack.c.b16 %v2262, %v2261
        %v2277 = vpack.c.b16 %v2264, %v2263
        %v2278 = vpack.c.b16 %v2266, %v2265
        %v2279 = vpack.c.b16 %v2268, %v2267
        %v2280 = vpack.c.b16 %v2270, %v2269
        %v2307 = vunpack.c.l.b16 %v2235
        %v2308 = vunpack.c.l.b16 %v2236
        %v2309 = vunpack.c.l.b16 %v2237
        %v2310 = vunpack.c.l.b16 %v2238
        %v2311 = vunpack.c.l.b16 %v2239
        %v2312 = vunpack.c.l.b16 %v2240
        %v2313 = vunpack.c.l.b16 %v2241
        %v2314 = vunpack.c.l.b16 %v2242
        %v2315 = vunpack.c.l.b16 %v2243
        %v2316 = vunpack.c.l.b16 %v2244
        %v2317 = vunpack.c.l.b16 %v2245
        %v2318 = vunpack.c.l.b16 %v2246
        %v2319 = vunpack.c.l.b16 %v2247
        %v2320 = vunpack.c.l.b16 %v2248
        %v2321 = vunpack.c.l.b16 %v2249
        %v2322 = vunpack.c.l.b16 %v2250
        %v2323 = vpack.c.b16 %v2308, %v2307
        %v2324 = vpack.c.b16 %v2310, %v2309
        %v2325 = vpack.c.b16 %v2312, %v2311
        %v2326 = vpack.c.b16 %v2314, %v2313
        %v2327 = vpack.c.b16 %v2316, %v2315
        %v2328 = vpack.c.b16 %v2318, %v2317
        %v2329 = vpack.c.b16 %v2320, %v2319
        %v2330 = vpack.c.b16 %v2322, %v2321
        %2339 = vmatprep.subr.bf16.mxu0 0
        %2340 = vmatpush1.bf16.msra.mxu0 %v2323
        %2341 = vmatprep.subr.bf16.mxu0 0
        %2342 = vmatpush1.bf16.msra.mxu0 %v2324
        %2343 = vmatprep.subr.bf16.mxu0 0
        %2344 = vmatpush1.bf16.msra.mxu0 %v2325
        %2345 = vmatprep.subr.bf16.mxu0 0
        %2346 = vmatpush1.bf16.msra.mxu0 %v2326
        %2347 = vmatprep.subr.bf16.mxu0 0
        %2348 = vmatpush1.bf16.msra.mxu0 %v2327
        %2349 = vmatprep.subr.bf16.mxu0 0
        %2350 = vmatpush1.bf16.msra.mxu0 %v2328
        %2351 = vmatprep.subr.bf16.mxu0 0
        %2352 = vmatpush1.bf16.msra.mxu0 %v2329
        %2353 = vmatprep.subr.bf16.mxu0 0
        %2354 = vmatpush1.bf16.msra.mxu0 %v2330
        %2355 = vmatprep.subr.bf16.mxu0 0
        %2356 = vmatpush1.bf16.msra.mxu0 0
        %2357 = vmatprep.subr.bf16.mxu0 0
        %2358 = vmatpush1.bf16.msra.mxu0 0
        %2359 = vmatprep.subr.bf16.mxu0 0
        %2360 = vmatpush1.bf16.msra.mxu0 0
        %2361 = vmatprep.subr.bf16.mxu0 0
        %2362 = vmatpush1.bf16.msra.mxu0 0
        %2363 = vmatprep.subr.bf16.mxu0 0
        %2364 = vmatpush1.bf16.msra.mxu0 0
        %2365 = vmatprep.subr.bf16.mxu0 0
        %2366 = vmatpush1.bf16.msra.mxu0 0
        %2367 = vmatprep.subr.bf16.mxu0 0
        %2368 = vmatpush1.bf16.msra.mxu0 0
        %2369 = vmatprep.subr.bf16.mxu0 0
        %2370 = vmatpush1.bf16.msra.mxu0 0
        %2371 = vmatprep.mubr.bf16.mxu0 0
        %2372 = vmatmul.mubr.bf16.gmra.mrb[0].mxu0 %v2271
        %v2373 = vpop.f32.mrb[0].mxu0
        %v2374 = vadd.f32 0.0, %v2373
        %v2375 = vpop.f32.mrb[0].mxu0
        %v2376 = vpop.f32.mrb[0].mxu0
        %v2377 = vadd.f32 0.0, %v2376
        %v2378 = vpop.f32.mrb[0].mxu0
        %2379 = vmatprep.mubr.bf16.mxu0 0
        %2380 = vmatmul.mubr.bf16.gmra.mrb[0].mxu0 %v2272
        %v2381 = vpop.f32.mrb[0].mxu0
        %v2382 = vadd.f32 0.0, %v2381
        %v2383 = vpop.f32.mrb[0].mxu0
        %v2384 = vpop.f32.mrb[0].mxu0
        %v2385 = vadd.f32 0.0, %v2384
        %v2386 = vpop.f32.mrb[0].mxu0
        %2387 = vmatprep.mubr.bf16.mxu0 0
        %2388 = vmatmul.mubr.bf16.gmra.mrb[0].mxu0 %v2273
        %v2389 = vpop.f32.mrb[0].mxu0
        %v2390 = vadd.f32 0.0, %v2389
        %v2391 = vpop.f32.mrb[0].mxu0
        %v2392 = vpop.f32.mrb[0].mxu0
        %v2393 = vadd.f32 0.0, %v2392
        %v2394 = vpop.f32.mrb[0].mxu0
        %2395 = vmatprep.mubr.bf16.mxu0 0
        %2396 = vmatmul.mubr.bf16.gmra.mrb[0].mxu0 %v2274
        %v2397 = vpop.f32.mrb[0].mxu0
        %v2398 = vadd.f32 0.0, %v2397
        %v2399 = vpop.f32.mrb[0].mxu0
        %v2400 = vpop.f32.mrb[0].mxu0
        %v2401 = vadd.f32 0.0, %v2400
        %v2402 = vpop.f32.mrb[0].mxu0
        %2403 = vmatprep.mubr.bf16.mxu0 0
        %2404 = vmatmul.mubr.bf16.gmra.mrb[0].mxu0 %v2275
        %v2405 = vpop.f32.mrb[0].mxu0
        %v2406 = vadd.f32 0.0, %v2405
        %v2407 = vpop.f32.mrb[0].mxu0
        %v2408 = vpop.f32.mrb[0].mxu0
        %v2409 = vadd.f32 0.0, %v2408
        %v2410 = vpop.f32.mrb[0].mxu0
        %2411 = vmatprep.mubr.bf16.mxu0 0
        %2412 = vmatmul.mubr.bf16.gmra.mrb[0].mxu0 %v2276
        %v2413 = vpop.f32.mrb[0].mxu0
        %v2414 = vadd.f32 0.0, %v2413
        %v2415 = vpop.f32.mrb[0].mxu0
        %v2416 = vpop.f32.mrb[0].mxu0
        %v2417 = vadd.f32 0.0, %v2416
        %v2418 = vpop.f32.mrb[0].mxu0
        %2419 = vmatprep.mubr.bf16.mxu0 0
        %2420 = vmatmul.mubr.bf16.gmra.mrb[0].mxu0 %v2277
        %v2421 = vpop.f32.mrb[0].mxu0
        %v2422 = vadd.f32 0.0, %v2421
        %v2423 = vpop.f32.mrb[0].mxu0
        %v2424 = vpop.f32.mrb[0].mxu0
        %v2425 = vadd.f32 0.0, %v2424
        %v2426 = vpop.f32.mrb[0].mxu0
        %2427 = vmatprep.mubr.bf16.mxu0 0
        %2428 = vmatmul.mubr.bf16.gmra.mrb[0].mxu0 %v2278
        %v2429 = vpop.f32.mrb[0].mxu0
        %v2430 = vadd.f32 0.0, %v2429
        %v2431 = vpop.f32.mrb[0].mxu0
        %v2432 = vpop.f32.mrb[0].mxu0
        %v2433 = vadd.f32 0.0, %v2432
        %v2434 = vpop.f32.mrb[0].mxu0
        %2435 = vmatprep.mubr.bf16.mxu0 0
        %2436 = vmatmul.mubr.bf16.gmra.mrb[0].mxu0 %v2279
        %v2437 = vpop.f32.mrb[0].mxu0
        %v2438 = vadd.f32 0.0, %v2437
        %v2439 = vpop.f32.mrb[0].mxu0
        %v2440 = vpop.f32.mrb[0].mxu0
        %v2441 = vadd.f32 0.0, %v2440
        %v2442 = vpop.f32.mrb[0].mxu0
        %2443 = vmatprep.mubr.bf16.mxu0 0
        %2444 = vmatmul.mubr.bf16.gmra.mrb[0].mxu0 %v2280
        %v2445 = vpop.f32.mrb[0].mxu0
        %v2446 = vadd.f32 0.0, %v2445
        %v2447 = vpop.f32.mrb[0].mxu0
        %v2448 = vpop.f32.mrb[0].mxu0
        %v2449 = vadd.f32 0.0, %v2448
        %v2450 = vpop.f32.mrb[0].mxu0
        %2451 = vdwg.mxu0
        %v2452 = vadd.f32 %v2104, %v2374
        %v2453 = vadd.f32 %v2105, %v2377
        %v2454 = vadd.f32 %v2106, %v2382
        %v2455 = vadd.f32 %v2107, %v2385
        %v2456 = vadd.f32 %v2108, %v2390
        %v2457 = vadd.f32 %v2109, %v2393
        %v2458 = vadd.f32 %v2110, %v2398
        %v2459 = vadd.f32 %v2111, %v2401
        %v2460 = vadd.f32 %v2112, %v2406
        %v2461 = vadd.f32 %v2113, %v2409
        %v2462 = vadd.f32 %v2114, %v2414
        %v2463 = vadd.f32 %v2115, %v2417
        %v2464 = vadd.f32 %v2116, %v2422
        %v2465 = vadd.f32 %v2117, %v2425
        %v2466 = vadd.f32 %v2118, %v2430
        %v2467 = vadd.f32 %v2119, %v2433
        %v2468 = vadd.f32 %v2120, %v2438
        %v2469 = vadd.f32 %v2121, %v2441
        %v2470 = vadd.f32 %v2122, %v2446
        %v2471 = vadd.f32 %v2123, %v2449
        %s2472 = scalar_lea.vmem %s263, 24
        %v2473 = vld [vmem:[%s2472] sm:$0xf]
        %v2474 = vld [vmem:[%s2472 + $0x4] sm:$0xf]
        %v2475 = vld [vmem:[%s2472 + $0xc] sm:$0xf]
        %v2476 = vld [vmem:[%s2472 + $0x10] sm:$0xf]
        %v2477 = vld [vmem:[%s2472 + $0x18] sm:$0xf]
        %v2478 = vld [vmem:[%s2472 + $0x1c] sm:$0xf]
        %v2479 = vld [vmem:[%s2472 + $0x24] sm:$0xf]
        %v2480 = vld [vmem:[%s2472 + $0x28] sm:$0xf]
        %v2481 = vld [vmem:[%s2472 + $0x30] sm:$0xf]
        %v2482 = vld [vmem:[%s2472 + $0x34] sm:$0xf]
        %v2483 = vld [vmem:[%s2472 + $0x3c] sm:$0xf]
        %v2484 = vld [vmem:[%s2472 + $0x40] sm:$0xf]
        %v2485 = vld [vmem:[%s2472 + $0x48] sm:$0xf]
        %v2486 = vld [vmem:[%s2472 + $0x4c] sm:$0xf]
        %v2487 = vld [vmem:[%s2472 + $0x54] sm:$0xf]
        %v2488 = vld [vmem:[%s2472 + $0x58] sm:$0xf]
        %v2489 = vld [vmem:[%s2472 + $0x60] sm:$0xf]
        %v2490 = vld [vmem:[%s2472 + $0x64] sm:$0xf]
        %v2491 = vld [vmem:[%s2472 + $0x6c] sm:$0xf]
        %v2492 = vld [vmem:[%s2472 + $0x70] sm:$0xf]
        %s2493 = scalar_lea.vmem %s1, 384
        %v2494 = vld [vmem:[%s2493] sm:$0xf]
        %v2495 = vld [vmem:[%s2493 + $0x4] sm:$0xf]
        %v2496 = vld [vmem:[%s2493 + $0x8] sm:$0xf]
        %v2497 = vld [vmem:[%s2493 + $0xc] sm:$0xf]
        %v2498 = vld [vmem:[%s2493 + $0x10] sm:$0xf]
        %v2499 = vld [vmem:[%s2493 + $0x14] sm:$0xf]
        %v2500 = vld [vmem:[%s2493 + $0x18] sm:$0xf]
        %v2501 = vld [vmem:[%s2493 + $0x1c] sm:$0xf]
        %v2502 = vld [vmem:[%s2493 + $0x20] sm:$0xf]
        %v2503 = vld [vmem:[%s2493 + $0x24] sm:$0xf]
        %v2504 = vld [vmem:[%s2493 + $0x28] sm:$0xf]
        %v2505 = vld [vmem:[%s2493 + $0x2c] sm:$0xf]
        %v2506 = vld [vmem:[%s2493 + $0x30] sm:$0xf]
        %v2507 = vld [vmem:[%s2493 + $0x34] sm:$0xf]
        %v2508 = vld [vmem:[%s2493 + $0x38] sm:$0xf]
        %v2509 = vld [vmem:[%s2493 + $0x3c] sm:$0xf]
        %v2530 = vunpack.c.l.b16 %v2473
        %v2531 = vunpack.c.l.b16 %v2474
        %v2532 = vunpack.c.l.b16 %v2475
        %v2533 = vunpack.c.l.b16 %v2476
        %v2534 = vunpack.c.l.b16 %v2477
        %v2535 = vunpack.c.l.b16 %v2478
        %v2536 = vunpack.c.l.b16 %v2479
        %v2537 = vunpack.c.l.b16 %v2480
        %v2538 = vunpack.c.l.b16 %v2481
        %v2539 = vunpack.c.l.b16 %v2482
        %v2540 = vunpack.c.l.b16 %v2483
        %v2541 = vunpack.c.l.b16 %v2484
        %v2542 = vunpack.c.l.b16 %v2485
        %v2543 = vunpack.c.l.b16 %v2486
        %v2544 = vunpack.c.l.b16 %v2487
        %v2545 = vunpack.c.l.b16 %v2488
        %v2546 = vunpack.c.l.b16 %v2489
        %v2547 = vunpack.c.l.b16 %v2490
        %v2548 = vunpack.c.l.b16 %v2491
        %v2549 = vunpack.c.l.b16 %v2492
        %v2550 = vpack.c.b16 %v2531, %v2530
        %v2551 = vpack.c.b16 %v2533, %v2532
        %v2552 = vpack.c.b16 %v2535, %v2534
        %v2553 = vpack.c.b16 %v2537, %v2536
        %v2554 = vpack.c.b16 %v2539, %v2538
        %v2555 = vpack.c.b16 %v2541, %v2540
        %v2556 = vpack.c.b16 %v2543, %v2542
        %v2557 = vpack.c.b16 %v2545, %v2544
        %v2558 = vpack.c.b16 %v2547, %v2546
        %v2559 = vpack.c.b16 %v2549, %v2548
        %v2586 = vunpack.c.l.b16 %v2494
        %v2587 = vunpack.c.l.b16 %v2495
        %v2588 = vunpack.c.l.b16 %v2496
        %v2589 = vunpack.c.l.b16 %v2497
        %v2590 = vunpack.c.l.b16 %v2498
        %v2591 = vunpack.c.l.b16 %v2499
        %v2592 = vunpack.c.l.b16 %v2500
        %v2593 = vunpack.c.l.b16 %v2501
        %v2594 = vunpack.c.l.b16 %v2502
        %v2595 = vunpack.c.l.b16 %v2503
        %v2596 = vunpack.c.l.b16 %v2504
        %v2597 = vunpack.c.l.b16 %v2505
        %v2598 = vunpack.c.l.b16 %v2506
        %v2599 = vunpack.c.l.b16 %v2507
        %v2600 = vunpack.c.l.b16 %v2508
        %v2601 = vunpack.c.l.b16 %v2509
        %v2602 = vpack.c.b16 %v2587, %v2586
        %v2603 = vpack.c.b16 %v2589, %v2588
        %v2604 = vpack.c.b16 %v2591, %v2590
        %v2605 = vpack.c.b16 %v2593, %v2592
        %v2606 = vpack.c.b16 %v2595, %v2594
        %v2607 = vpack.c.b16 %v2597, %v2596
        %v2608 = vpack.c.b16 %v2599, %v2598
        %v2609 = vpack.c.b16 %v2601, %v2600
        %2618 = vmatprep.subr.bf16.mxu0 0
        %2619 = vmatpush1.bf16.msra.mxu0 %v2602
        %2620 = vmatprep.subr.bf16.mxu0 0
        %2621 = vmatpush1.bf16.msra.mxu0 %v2603
        %2622 = vmatprep.subr.bf16.mxu0 0
        %2623 = vmatpush1.bf16.msra.mxu0 %v2604
        %2624 = vmatprep.subr.bf16.mxu0 0
        %2625 = vmatpush1.bf16.msra.mxu0 %v2605
        %2626 = vmatprep.subr.bf16.mxu0 0
        %2627 = vmatpush1.bf16.msra.mxu0 %v2606
        %2628 = vmatprep.subr.bf16.mxu0 0
        %2629 = vmatpush1.bf16.msra.mxu0 %v2607
        %2630 = vmatprep.subr.bf16.mxu0 0
        %2631 = vmatpush1.bf16.msra.mxu0 %v2608
        %2632 = vmatprep.subr.bf16.mxu0 0
        %2633 = vmatpush1.bf16.msra.mxu0 %v2609
        %2634 = vmatprep.subr.bf16.mxu0 0
        %2635 = vmatpush1.bf16.msra.mxu0 0
        %2636 = vmatprep.subr.bf16.mxu0 0
        %2637 = vmatpush1.bf16.msra.mxu0 0
        %2638 = vmatprep.subr.bf16.mxu0 0
        %2639 = vmatpush1.bf16.msra.mxu0 0
        %2640 = vmatprep.subr.bf16.mxu0 0
        %2641 = vmatpush1.bf16.msra.mxu0 0
        %2642 = vmatprep.subr.bf16.mxu0 0
        %2643 = vmatpush1.bf16.msra.mxu0 0
        %2644 = vmatprep.subr.bf16.mxu0 0
        %2645 = vmatpush1.bf16.msra.mxu0 0
        %2646 = vmatprep.subr.bf16.mxu0 0
        %2647 = vmatpush1.bf16.msra.mxu0 0
        %2648 = vmatprep.subr.bf16.mxu0 0
        %2649 = vmatpush1.bf16.msra.mxu0 0
        %2650 = vmatprep.mubr.bf16.mxu0 0
        %2651 = vmatmul.mubr.bf16.gmra.mrb[0].mxu0 %v2550
        %v2652 = vpop.f32.mrb[0].mxu0
        %v2653 = vadd.f32 0.0, %v2652
        %v2654 = vpop.f32.mrb[0].mxu0
        %v2655 = vpop.f32.mrb[0].mxu0
        %v2656 = vadd.f32 0.0, %v2655
        %v2657 = vpop.f32.mrb[0].mxu0
        %2658 = vmatprep.mubr.bf16.mxu0 0
        %2659 = vmatmul.mubr.bf16.gmra.mrb[0].mxu0 %v2551
        %v2660 = vpop.f32.mrb[0].mxu0
        %v2661 = vadd.f32 0.0, %v2660
        %v2662 = vpop.f32.mrb[0].mxu0
        %v2663 = vpop.f32.mrb[0].mxu0
        %v2664 = vadd.f32 0.0, %v2663
        %v2665 = vpop.f32.mrb[0].mxu0
        %2666 = vmatprep.mubr.bf16.mxu0 0
        %2667 = vmatmul.mubr.bf16.gmra.mrb[0].mxu0 %v2552
        %v2668 = vpop.f32.mrb[0].mxu0
        %v2669 = vadd.f32 0.0, %v2668
        %v2670 = vpop.f32.mrb[0].mxu0
        %v2671 = vpop.f32.mrb[0].mxu0
        %v2672 = vadd.f32 0.0, %v2671
        %v2673 = vpop.f32.mrb[0].mxu0
        %2674 = vmatprep.mubr.bf16.mxu0 0
        %2675 = vmatmul.mubr.bf16.gmra.mrb[0].mxu0 %v2553
        %v2676 = vpop.f32.mrb[0].mxu0
        %v2677 = vadd.f32 0.0, %v2676
        %v2678 = vpop.f32.mrb[0].mxu0
        %v2679 = vpop.f32.mrb[0].mxu0
        %v2680 = vadd.f32 0.0, %v2679
        %v2681 = vpop.f32.mrb[0].mxu0
        %2682 = vmatprep.mubr.bf16.mxu0 0
        %2683 = vmatmul.mubr.bf16.gmra.mrb[0].mxu0 %v2554
        %v2684 = vpop.f32.mrb[0].mxu0
        %v2685 = vadd.f32 0.0, %v2684
        %v2686 = vpop.f32.mrb[0].mxu0
        %v2687 = vpop.f32.mrb[0].mxu0
        %v2688 = vadd.f32 0.0, %v2687
        %v2689 = vpop.f32.mrb[0].mxu0
        %2690 = vmatprep.mubr.bf16.mxu0 0
        %2691 = vmatmul.mubr.bf16.gmra.mrb[0].mxu0 %v2555
        %v2692 = vpop.f32.mrb[0].mxu0
        %v2693 = vadd.f32 0.0, %v2692
        %v2694 = vpop.f32.mrb[0].mxu0
        %v2695 = vpop.f32.mrb[0].mxu0
        %v2696 = vadd.f32 0.0, %v2695
        %v2697 = vpop.f32.mrb[0].mxu0
        %2698 = vmatprep.mubr.bf16.mxu0 0
        %2699 = vmatmul.mubr.bf16.gmra.mrb[0].mxu0 %v2556
        %v2700 = vpop.f32.mrb[0].mxu0
        %v2701 = vadd.f32 0.0, %v2700
        %v2702 = vpop.f32.mrb[0].mxu0
        %v2703 = vpop.f32.mrb[0].mxu0
        %v2704 = vadd.f32 0.0, %v2703
        %v2705 = vpop.f32.mrb[0].mxu0
        %2706 = vmatprep.mubr.bf16.mxu0 0
        %2707 = vmatmul.mubr.bf16.gmra.mrb[0].mxu0 %v2557
        %v2708 = vpop.f32.mrb[0].mxu0
        %v2709 = vadd.f32 0.0, %v2708
        %v2710 = vpop.f32.mrb[0].mxu0
        %v2711 = vpop.f32.mrb[0].mxu0
        %v2712 = vadd.f32 0.0, %v2711
        %v2713 = vpop.f32.mrb[0].mxu0
        %2714 = vmatprep.mubr.bf16.mxu0 0
        %2715 = vmatmul.mubr.bf16.gmra.mrb[0].mxu0 %v2558
        %v2716 = vpop.f32.mrb[0].mxu0
        %v2717 = vadd.f32 0.0, %v2716
        %v2718 = vpop.f32.mrb[0].mxu0
        %v2719 = vpop.f32.mrb[0].mxu0
        %v2720 = vadd.f32 0.0, %v2719
        %v2721 = vpop.f32.mrb[0].mxu0
        %2722 = vmatprep.mubr.bf16.mxu0 0
        %2723 = vmatmul.mubr.bf16.gmra.mrb[0].mxu0 %v2559
        %v2724 = vpop.f32.mrb[0].mxu0
        %v2725 = vadd.f32 0.0, %v2724
        %v2726 = vpop.f32.mrb[0].mxu0
        %v2727 = vpop.f32.mrb[0].mxu0
        %v2728 = vadd.f32 0.0, %v2727
        %v2729 = vpop.f32.mrb[0].mxu0
        %2730 = vdwg.mxu0
        %v2731 = vadd.f32 %v2452, %v2653
        %v2732 = vadd.f32 %v2453, %v2656
        %v2733 = vadd.f32 %v2454, %v2661
        %v2734 = vadd.f32 %v2455, %v2664
        %v2735 = vadd.f32 %v2456, %v2669
        %v2736 = vadd.f32 %v2457, %v2672
        %v2737 = vadd.f32 %v2458, %v2677
        %v2738 = vadd.f32 %v2459, %v2680
        %v2739 = vadd.f32 %v2460, %v2685
        %v2740 = vadd.f32 %v2461, %v2688
        %v2741 = vadd.f32 %v2462, %v2693
        %v2742 = vadd.f32 %v2463, %v2696
        %v2743 = vadd.f32 %v2464, %v2701
        %v2744 = vadd.f32 %v2465, %v2704
        %v2745 = vadd.f32 %v2466, %v2709
        %v2746 = vadd.f32 %v2467, %v2712
        %v2747 = vadd.f32 %v2468, %v2717
        %v2748 = vadd.f32 %v2469, %v2720
        %v2749 = vadd.f32 %v2470, %v2725
        %v2750 = vadd.f32 %v2471, %v2728
        %v2751 = vld [vmem:[%s2472] sm:$0xf]
        %v2752 = vld [vmem:[%s2472 + $0x4] sm:$0xf]
        %v2753 = vld [vmem:[%s2472 + $0x8] sm:$0x1]
        %v2754 = vld [vmem:[%s2472 + $0xc] sm:$0xf]
        %v2755 = vld [vmem:[%s2472 + $0x10] sm:$0xf]
        %v2756 = vld [vmem:[%s2472 + $0x14] sm:$0x1]
        %v2757 = vld [vmem:[%s2472 + $0x18] sm:$0xf]
        %v2758 = vld [vmem:[%s2472 + $0x1c] sm:$0xf]
        %v2759 = vld [vmem:[%s2472 + $0x20] sm:$0x1]
        %v2760 = vld [vmem:[%s2472 + $0x24] sm:$0xf]
        %v2761 = vld [vmem:[%s2472 + $0x28] sm:$0xf]
        %v2762 = vld [vmem:[%s2472 + $0x2c] sm:$0x1]
        %v2763 = vld [vmem:[%s2472 + $0x30] sm:$0xf]
        %v2764 = vld [vmem:[%s2472 + $0x34] sm:$0xf]
        %v2765 = vld [vmem:[%s2472 + $0x38] sm:$0x1]
        %v2766 = vld [vmem:[%s2472 + $0x3c] sm:$0xf]
        %v2767 = vld [vmem:[%s2472 + $0x40] sm:$0xf]
        %v2768 = vld [vmem:[%s2472 + $0x44] sm:$0x1]
        %v2769 = vld [vmem:[%s2472 + $0x48] sm:$0xf]
        %v2770 = vld [vmem:[%s2472 + $0x4c] sm:$0xf]
        %v2771 = vld [vmem:[%s2472 + $0x50] sm:$0x1]
        %v2772 = vld [vmem:[%s2472 + $0x54] sm:$0xf]
        %v2773 = vld [vmem:[%s2472 + $0x58] sm:$0xf]
        %v2774 = vld [vmem:[%s2472 + $0x5c] sm:$0x1]
        %v2775 = vld [vmem:[%s2472 + $0x60] sm:$0xf]
        %v2776 = vld [vmem:[%s2472 + $0x64] sm:$0xf]
        %v2777 = vld [vmem:[%s2472 + $0x68] sm:$0x1]
        %v2778 = vld [vmem:[%s2472 + $0x6c] sm:$0xf]
        %v2779 = vld [vmem:[%s2472 + $0x70] sm:$0xf]
        %v2780 = vld [vmem:[%s2472 + $0x74] sm:$0x1]
        %v2782 = vshrl.u32 %v2751, 16
        %v2784 = vrot.slane %v2782, 4
        %v2785 = vshll.u32 %v2751, 16
        %v2787 = vrot.slane %v2785, 5
        %v2788 = vor.u32 %v2784, %v2787
        %v2789 = vrot.slane %v2788, 4
        %v2791 = vshll.u32 %v2752, 16
        %v2793 = vrot.slane %v2791, 5
        %v2794 = vsel %vm316, %v2789, %v2793
        %v2795 = vshrl.u32 %v2752, 16
        %v2797 = vrot.slane %v2795, 4
        %v2798 = vor.u32 %v2797, %v2793
        %v2799 = vrot.slane %v2798, 4
        %v2801 = vshll.u32 %v2753, 16
        %v2803 = vrot.slane %v2801, 5
        %v2804 = vsel %vm316, %v2799, %v2803
        %v2806 = vshrl.u32 %v2754, 16
        %v2808 = vrot.slane %v2806, 4
        %v2809 = vshll.u32 %v2754, 16
        %v2811 = vrot.slane %v2809, 5
        %v2812 = vor.u32 %v2808, %v2811
        %v2813 = vrot.slane %v2812, 4
        %v2815 = vshll.u32 %v2755, 16
        %v2817 = vrot.slane %v2815, 5
        %v2818 = vsel %vm316, %v2813, %v2817
        %v2819 = vshrl.u32 %v2755, 16
        %v2821 = vrot.slane %v2819, 4
        %v2822 = vor.u32 %v2821, %v2817
        %v2823 = vrot.slane %v2822, 4
        %v2825 = vshll.u32 %v2756, 16
        %v2827 = vrot.slane %v2825, 5
        %v2828 = vsel %vm316, %v2823, %v2827
        %v2830 = vshrl.u32 %v2757, 16
        %v2832 = vrot.slane %v2830, 4
        %v2833 = vshll.u32 %v2757, 16
        %v2835 = vrot.slane %v2833, 5
        %v2836 = vor.u32 %v2832, %v2835
        %v2837 = vrot.slane %v2836, 4
        %v2839 = vshll.u32 %v2758, 16
        %v2841 = vrot.slane %v2839, 5
        %v2842 = vsel %vm316, %v2837, %v2841
        %v2843 = vshrl.u32 %v2758, 16
        %v2845 = vrot.slane %v2843, 4
        %v2846 = vor.u32 %v2845, %v2841
        %v2847 = vrot.slane %v2846, 4
        %v2849 = vshll.u32 %v2759, 16
        %v2851 = vrot.slane %v2849, 5
        %v2852 = vsel %vm316, %v2847, %v2851
        %v2854 = vshrl.u32 %v2760, 16
        %v2856 = vrot.slane %v2854, 4
        %v2857 = vshll.u32 %v2760, 16
        %v2859 = vrot.slane %v2857, 5
        %v2860 = vor.u32 %v2856, %v2859
        %v2861 = vrot.slane %v2860, 4
        %v2863 = vshll.u32 %v2761, 16
        %v2865 = vrot.slane %v2863, 5
        %v2866 = vsel %vm316, %v2861, %v2865
        %v2867 = vshrl.u32 %v2761, 16
        %v2869 = vrot.slane %v2867, 4
        %v2870 = vor.u32 %v2869, %v2865
        %v2871 = vrot.slane %v2870, 4
        %v2873 = vshll.u32 %v2762, 16
        %v2875 = vrot.slane %v2873, 5
        %v2876 = vsel %vm316, %v2871, %v2875
        %v2878 = vshrl.u32 %v2763, 16
        %v2880 = vrot.slane %v2878, 4
        %v2881 = vshll.u32 %v2763, 16
        %v2883 = vrot.slane %v2881, 5
        %v2884 = vor.u32 %v2880, %v2883
        %v2885 = vrot.slane %v2884, 4
        %v2887 = vshll.u32 %v2764, 16
        %v2889 = vrot.slane %v2887, 5
        %v2890 = vsel %vm316, %v2885, %v2889
        %v2891 = vshrl.u32 %v2764, 16
        %v2893 = vrot.slane %v2891, 4
        %v2894 = vor.u32 %v2893, %v2889
        %v2895 = vrot.slane %v2894, 4
        %v2897 = vshll.u32 %v2765, 16
        %v2899 = vrot.slane %v2897, 5
        %v2900 = vsel %vm316, %v2895, %v2899
        %v2902 = vshrl.u32 %v2766, 16
        %v2904 = vrot.slane %v2902, 4
        %v2905 = vshll.u32 %v2766, 16
        %v2907 = vrot.slane %v2905, 5
        %v2908 = vor.u32 %v2904, %v2907
        %v2909 = vrot.slane %v2908, 4
        %v2911 = vshll.u32 %v2767, 16
        %v2913 = vrot.slane %v2911, 5
        %v2914 = vsel %vm316, %v2909, %v2913
        %v2915 = vshrl.u32 %v2767, 16
        %v2917 = vrot.slane %v2915, 4
        %v2918 = vor.u32 %v2917, %v2913
        %v2919 = vrot.slane %v2918, 4
        %v2921 = vshll.u32 %v2768, 16
        %v2923 = vrot.slane %v2921, 5
        %v2924 = vsel %vm316, %v2919, %v2923
        %v2926 = vshrl.u32 %v2769, 16
        %v2928 = vrot.slane %v2926, 4
        %v2929 = vshll.u32 %v2769, 16
        %v2931 = vrot.slane %v2929, 5
        %v2932 = vor.u32 %v2928, %v2931
        %v2933 = vrot.slane %v2932, 4
        %v2935 = vshll.u32 %v2770, 16
        %v2937 = vrot.slane %v2935, 5
        %v2938 = vsel %vm316, %v2933, %v2937
        %v2939 = vshrl.u32 %v2770, 16
        %v2941 = vrot.slane %v2939, 4
        %v2942 = vor.u32 %v2941, %v2937
        %v2943 = vrot.slane %v2942, 4
        %v2945 = vshll.u32 %v2771, 16
        %v2947 = vrot.slane %v2945, 5
        %v2948 = vsel %vm316, %v2943, %v2947
        %v2950 = vshrl.u32 %v2772, 16
        %v2952 = vrot.slane %v2950, 4
        %v2953 = vshll.u32 %v2772, 16
        %v2955 = vrot.slane %v2953, 5
        %v2956 = vor.u32 %v2952, %v2955
        %v2957 = vrot.slane %v2956, 4
        %v2959 = vshll.u32 %v2773, 16
        %v2961 = vrot.slane %v2959, 5
        %v2962 = vsel %vm316, %v2957, %v2961
        %v2963 = vshrl.u32 %v2773, 16
        %v2965 = vrot.slane %v2963, 4
        %v2966 = vor.u32 %v2965, %v2961
        %v2967 = vrot.slane %v2966, 4
        %v2969 = vshll.u32 %v2774, 16
        %v2971 = vrot.slane %v2969, 5
        %v2972 = vsel %vm316, %v2967, %v2971
        %v2974 = vshrl.u32 %v2775, 16
        %v2976 = vrot.slane %v2974, 4
        %v2977 = vshll.u32 %v2775, 16
        %v2979 = vrot.slane %v2977, 5
        %v2980 = vor.u32 %v2976, %v2979
        %v2981 = vrot.slane %v2980, 4
        %v2983 = vshll.u32 %v2776, 16
        %v2985 = vrot.slane %v2983, 5
        %v2986 = vsel %vm316, %v2981, %v2985
        %v2987 = vshrl.u32 %v2776, 16
        %v2989 = vrot.slane %v2987, 4
        %v2990 = vor.u32 %v2989, %v2985
        %v2991 = vrot.slane %v2990, 4
        %v2993 = vshll.u32 %v2777, 16
        %v2995 = vrot.slane %v2993, 5
        %v2996 = vsel %vm316, %v2991, %v2995
        %v2998 = vshrl.u32 %v2778, 16
        %v3000 = vrot.slane %v2998, 4
        %v3001 = vshll.u32 %v2778, 16
        %v3003 = vrot.slane %v3001, 5
        %v3004 = vor.u32 %v3000, %v3003
        %v3005 = vrot.slane %v3004, 4
        %v3007 = vshll.u32 %v2779, 16
        %v3009 = vrot.slane %v3007, 5
        %v3010 = vsel %vm316, %v3005, %v3009
        %v3011 = vshrl.u32 %v2779, 16
        %v3013 = vrot.slane %v3011, 4
        %v3014 = vor.u32 %v3013, %v3009
        %v3015 = vrot.slane %v3014, 4
        %v3017 = vshll.u32 %v2780, 16
        %v3019 = vrot.slane %v3017, 5
        %v3020 = vsel %vm316, %v3015, %v3019
        %s3021 = scalar_lea.vmem %s1, 448
        %v3022 = vld [vmem:[%s3021] sm:$0xf]
        %v3023 = vld [vmem:[%s3021 + $0x4] sm:$0xf]
        %v3024 = vld [vmem:[%s3021 + $0x8] sm:$0xf]
        %v3025 = vld [vmem:[%s3021 + $0xc] sm:$0xf]
        %v3026 = vld [vmem:[%s3021 + $0x10] sm:$0xf]
        %v3027 = vld [vmem:[%s3021 + $0x14] sm:$0xf]
        %v3028 = vld [vmem:[%s3021 + $0x18] sm:$0xf]
        %v3029 = vld [vmem:[%s3021 + $0x1c] sm:$0xf]
        %v3030 = vld [vmem:[%s3021 + $0x20] sm:$0xf]
        %v3031 = vld [vmem:[%s3021 + $0x24] sm:$0xf]
        %v3032 = vld [vmem:[%s3021 + $0x28] sm:$0xf]
        %v3033 = vld [vmem:[%s3021 + $0x2c] sm:$0xf]
        %v3034 = vld [vmem:[%s3021 + $0x30] sm:$0xf]
        %v3035 = vld [vmem:[%s3021 + $0x34] sm:$0xf]
        %v3036 = vld [vmem:[%s3021 + $0x38] sm:$0xf]
        %v3037 = vld [vmem:[%s3021 + $0x3c] sm:$0xf]
        %v3038 = vunpack.c.l.b16 %v2794
        %v3039 = vunpack.c.l.b16 %v2804
        %v3040 = vunpack.c.l.b16 %v2818
        %v3041 = vunpack.c.l.b16 %v2828
        %v3042 = vunpack.c.l.b16 %v2842
        %v3043 = vunpack.c.l.b16 %v2852
        %v3044 = vunpack.c.l.b16 %v2866
        %v3045 = vunpack.c.l.b16 %v2876
        %v3046 = vunpack.c.l.b16 %v2890
        %v3047 = vunpack.c.l.b16 %v2900
        %v3048 = vunpack.c.l.b16 %v2914
        %v3049 = vunpack.c.l.b16 %v2924
        %v3050 = vunpack.c.l.b16 %v2938
        %v3051 = vunpack.c.l.b16 %v2948
        %v3052 = vunpack.c.l.b16 %v2962
        %v3053 = vunpack.c.l.b16 %v2972
        %v3054 = vunpack.c.l.b16 %v2986
        %v3055 = vunpack.c.l.b16 %v2996
        %v3056 = vunpack.c.l.b16 %v3010
        %v3057 = vunpack.c.l.b16 %v3020
        %v3058 = vpack.c.b16 %v3039, %v3038
        %v3059 = vpack.c.b16 %v3041, %v3040
        %v3060 = vpack.c.b16 %v3043, %v3042
        %v3061 = vpack.c.b16 %v3045, %v3044
        %v3062 = vpack.c.b16 %v3047, %v3046
        %v3063 = vpack.c.b16 %v3049, %v3048
        %v3064 = vpack.c.b16 %v3051, %v3050
        %v3065 = vpack.c.b16 %v3053, %v3052
        %v3066 = vpack.c.b16 %v3055, %v3054
        %v3067 = vpack.c.b16 %v3057, %v3056
        %v3094 = vunpack.c.l.b16 %v3022
        %v3095 = vunpack.c.l.b16 %v3023
        %v3096 = vunpack.c.l.b16 %v3024
        %v3097 = vunpack.c.l.b16 %v3025
        %v3098 = vunpack.c.l.b16 %v3026
        %v3099 = vunpack.c.l.b16 %v3027
        %v3100 = vunpack.c.l.b16 %v3028
        %v3101 = vunpack.c.l.b16 %v3029
        %v3102 = vunpack.c.l.b16 %v3030
        %v3103 = vunpack.c.l.b16 %v3031
        %v3104 = vunpack.c.l.b16 %v3032
        %v3105 = vunpack.c.l.b16 %v3033
        %v3106 = vunpack.c.l.b16 %v3034
        %v3107 = vunpack.c.l.b16 %v3035
        %v3108 = vunpack.c.l.b16 %v3036
        %v3109 = vunpack.c.l.b16 %v3037
        %v3110 = vpack.c.b16 %v3095, %v3094
        %v3111 = vpack.c.b16 %v3097, %v3096
        %v3112 = vpack.c.b16 %v3099, %v3098
        %v3113 = vpack.c.b16 %v3101, %v3100
        %v3114 = vpack.c.b16 %v3103, %v3102
        %v3115 = vpack.c.b16 %v3105, %v3104
        %v3116 = vpack.c.b16 %v3107, %v3106
        %v3117 = vpack.c.b16 %v3109, %v3108
        %3126 = vmatprep.subr.bf16.mxu0 0
        %3127 = vmatpush1.bf16.msra.mxu0 %v3110
        %3128 = vmatprep.subr.bf16.mxu0 0
        %3129 = vmatpush1.bf16.msra.mxu0 %v3111
        %3130 = vmatprep.subr.bf16.mxu0 0
        %3131 = vmatpush1.bf16.msra.mxu0 %v3112
        %3132 = vmatprep.subr.bf16.mxu0 0
        %3133 = vmatpush1.bf16.msra.mxu0 %v3113
        %3134 = vmatprep.subr.bf16.mxu0 0
        %3135 = vmatpush1.bf16.msra.mxu0 %v3114
        %3136 = vmatprep.subr.bf16.mxu0 0
        %3137 = vmatpush1.bf16.msra.mxu0 %v3115
        %3138 = vmatprep.subr.bf16.mxu0 0
        %3139 = vmatpush1.bf16.msra.mxu0 %v3116
        %3140 = vmatprep.subr.bf16.mxu0 0
        %3141 = vmatpush1.bf16.msra.mxu0 %v3117
        %3142 = vmatprep.subr.bf16.mxu0 0
        %3143 = vmatpush1.bf16.msra.mxu0 0
        %3144 = vmatprep.subr.bf16.mxu0 0
        %3145 = vmatpush1.bf16.msra.mxu0 0
        %3146 = vmatprep.subr.bf16.mxu0 0
        %3147 = vmatpush1.bf16.msra.mxu0 0
        %3148 = vmatprep.subr.bf16.mxu0 0
        %3149 = vmatpush1.bf16.msra.mxu0 0
        %3150 = vmatprep.subr.bf16.mxu0 0
        %3151 = vmatpush1.bf16.msra.mxu0 0
        %3152 = vmatprep.subr.bf16.mxu0 0
        %3153 = vmatpush1.bf16.msra.mxu0 0
        %3154 = vmatprep.subr.bf16.mxu0 0
        %3155 = vmatpush1.bf16.msra.mxu0 0
        %3156 = vmatprep.subr.bf16.mxu0 0
        %3157 = vmatpush1.bf16.msra.mxu0 0
        %3158 = vmatprep.mubr.bf16.mxu0 0
        %3159 = vmatmul.mubr.bf16.gmra.mrb[0].mxu0 %v3058
        %v3160 = vpop.f32.mrb[0].mxu0
        %v3161 = vadd.f32 0.0, %v3160
        %v3162 = vpop.f32.mrb[0].mxu0
        %v3163 = vpop.f32.mrb[0].mxu0
        %v3164 = vadd.f32 0.0, %v3163
        %v3165 = vpop.f32.mrb[0].mxu0
        %3166 = vmatprep.mubr.bf16.mxu0 0
        %3167 = vmatmul.mubr.bf16.gmra.mrb[0].mxu0 %v3059
        %v3168 = vpop.f32.mrb[0].mxu0
        %v3169 = vadd.f32 0.0, %v3168
        %v3170 = vpop.f32.mrb[0].mxu0
        %v3171 = vpop.f32.mrb[0].mxu0
        %v3172 = vadd.f32 0.0, %v3171
        %v3173 = vpop.f32.mrb[0].mxu0
        %3174 = vmatprep.mubr.bf16.mxu0 0
        %3175 = vmatmul.mubr.bf16.gmra.mrb[0].mxu0 %v3060
        %v3176 = vpop.f32.mrb[0].mxu0
        %v3177 = vadd.f32 0.0, %v3176
        %v3178 = vpop.f32.mrb[0].mxu0
        %v3179 = vpop.f32.mrb[0].mxu0
        %v3180 = vadd.f32 0.0, %v3179
        %v3181 = vpop.f32.mrb[0].mxu0
        %3182 = vmatprep.mubr.bf16.mxu0 0
        %3183 = vmatmul.mubr.bf16.gmra.mrb[0].mxu0 %v3061
        %v3184 = vpop.f32.mrb[0].mxu0
        %v3185 = vadd.f32 0.0, %v3184
        %v3186 = vpop.f32.mrb[0].mxu0
        %v3187 = vpop.f32.mrb[0].mxu0
        %v3188 = vadd.f32 0.0, %v3187
        %v3189 = vpop.f32.mrb[0].mxu0
        %3190 = vmatprep.mubr.bf16.mxu0 0
        %3191 = vmatmul.mubr.bf16.gmra.mrb[0].mxu0 %v3062
        %v3192 = vpop.f32.mrb[0].mxu0
        %v3193 = vadd.f32 0.0, %v3192
        %v3194 = vpop.f32.mrb[0].mxu0
        %v3195 = vpop.f32.mrb[0].mxu0
        %v3196 = vadd.f32 0.0, %v3195
        %v3197 = vpop.f32.mrb[0].mxu0
        %3198 = vmatprep.mubr.bf16.mxu0 0
        %3199 = vmatmul.mubr.bf16.gmra.mrb[0].mxu0 %v3063
        %v3200 = vpop.f32.mrb[0].mxu0
        %v3201 = vadd.f32 0.0, %v3200
        %v3202 = vpop.f32.mrb[0].mxu0
        %v3203 = vpop.f32.mrb[0].mxu0
        %v3204 = vadd.f32 0.0, %v3203
        %v3205 = vpop.f32.mrb[0].mxu0
        %3206 = vmatprep.mubr.bf16.mxu0 0
        %3207 = vmatmul.mubr.bf16.gmra.mrb[0].mxu0 %v3064
        %v3208 = vpop.f32.mrb[0].mxu0
        %v3209 = vadd.f32 0.0, %v3208
        %v3210 = vpop.f32.mrb[0].mxu0
        %v3211 = vpop.f32.mrb[0].mxu0
        %v3212 = vadd.f32 0.0, %v3211
        %v3213 = vpop.f32.mrb[0].mxu0
        %3214 = vmatprep.mubr.bf16.mxu0 0
        %3215 = vmatmul.mubr.bf16.gmra.mrb[0].mxu0 %v3065
        %v3216 = vpop.f32.mrb[0].mxu0
        %v3217 = vadd.f32 0.0, %v3216
        %v3218 = vpop.f32.mrb[0].mxu0
        %v3219 = vpop.f32.mrb[0].mxu0
        %v3220 = vadd.f32 0.0, %v3219
        %v3221 = vpop.f32.mrb[0].mxu0
        %3222 = vmatprep.mubr.bf16.mxu0 0
        %3223 = vmatmul.mubr.bf16.gmra.mrb[0].mxu0 %v3066
        %v3224 = vpop.f32.mrb[0].mxu0
        %v3225 = vadd.f32 0.0, %v3224
        %v3226 = vpop.f32.mrb[0].mxu0
        %v3227 = vpop.f32.mrb[0].mxu0
        %v3228 = vadd.f32 0.0, %v3227
        %v3229 = vpop.f32.mrb[0].mxu0
        %3230 = vmatprep.mubr.bf16.mxu0 0
        %3231 = vmatmul.mubr.bf16.gmra.mrb[0].mxu0 %v3067
        %v3232 = vpop.f32.mrb[0].mxu0
        %v3233 = vadd.f32 0.0, %v3232
        %v3234 = vpop.f32.mrb[0].mxu0
        %v3235 = vpop.f32.mrb[0].mxu0
        %v3236 = vadd.f32 0.0, %v3235
        %v3237 = vpop.f32.mrb[0].mxu0
        %3238 = vdwg.mxu0
        %v3239 = vadd.f32 %v2731, %v3161
        %v3240 = vadd.f32 %v2732, %v3164
        %v3241 = vadd.f32 %v2733, %v3169
        %v3242 = vadd.f32 %v2734, %v3172
        %v3243 = vadd.f32 %v2735, %v3177
        %v3244 = vadd.f32 %v2736, %v3180
        %v3245 = vadd.f32 %v2737, %v3185
        %v3246 = vadd.f32 %v2738, %v3188
        %v3247 = vadd.f32 %v2739, %v3193
        %v3248 = vadd.f32 %v2740, %v3196
        %v3249 = vadd.f32 %v2741, %v3201
        %v3250 = vadd.f32 %v2742, %v3204
        %v3251 = vadd.f32 %v2743, %v3209
        %v3252 = vadd.f32 %v2744, %v3212
        %v3253 = vadd.f32 %v2745, %v3217
        %v3254 = vadd.f32 %v2746, %v3220
        %v3255 = vadd.f32 %v2747, %v3225
        %v3256 = vadd.f32 %v2748, %v3228
        %v3257 = vadd.f32 %v2749, %v3233
        %v3258 = vadd.f32 %v2750, %v3236
        %v3259 = vld [vmem:[%s2472] sm:$0xe]
        %v3260 = vld [vmem:[%s2472 + $0xc] sm:$0xe]
        %v3261 = vld [vmem:[%s2472 + $0x18] sm:$0xe]
        %v3262 = vld [vmem:[%s2472 + $0x24] sm:$0xe]
        %v3263 = vld [vmem:[%s2472 + $0x30] sm:$0xe]
        %v3264 = vld [vmem:[%s2472 + $0x3c] sm:$0xe]
        %v3265 = vld [vmem:[%s2472 + $0x48] sm:$0xe]
        %v3266 = vld [vmem:[%s2472 + $0x54] sm:$0xe]
        %v3267 = vld [vmem:[%s2472 + $0x60] sm:$0xe]
        %v3268 = vld [vmem:[%s2472 + $0x6c] sm:$0xe]
        %v3299 = vrot.slane %v3259, 5
        %v3300 = vrot.slane %v3299, 4
        %v3301 = vrot.slane %v2752, 5
        %v3302 = vsel %vm1028, %v3300, %v3301
        %v3303 = vrot.slane %v3301, 4
        %v3304 = vrot.slane %v2753, 5
        %v3305 = vsel %vm1028, %v3303, %v3304
        %v3306 = vrot.slane %v3260, 5
        %v3307 = vrot.slane %v3306, 4
        %v3308 = vrot.slane %v2755, 5
        %v3309 = vsel %vm1028, %v3307, %v3308
        %v3310 = vrot.slane %v3308, 4
        %v3311 = vrot.slane %v2756, 5
        %v3312 = vsel %vm1028, %v3310, %v3311
        %v3313 = vrot.slane %v3261, 5
        %v3314 = vrot.slane %v3313, 4
        %v3315 = vrot.slane %v2758, 5
        %v3316 = vsel %vm1028, %v3314, %v3315
        %v3317 = vrot.slane %v3315, 4
        %v3318 = vrot.slane %v2759, 5
        %v3319 = vsel %vm1028, %v3317, %v3318
        %v3320 = vrot.slane %v3262, 5
        %v3321 = vrot.slane %v3320, 4
        %v3322 = vrot.slane %v2761, 5
        %v3323 = vsel %vm1028, %v3321, %v3322
        %v3324 = vrot.slane %v3322, 4
        %v3325 = vrot.slane %v2762, 5
        %v3326 = vsel %vm1028, %v3324, %v3325
        %v3327 = vrot.slane %v3263, 5
        %v3328 = vrot.slane %v3327, 4
        %v3329 = vrot.slane %v2764, 5
        %v3330 = vsel %vm1028, %v3328, %v3329
        %v3331 = vrot.slane %v3329, 4
        %v3332 = vrot.slane %v2765, 5
        %v3333 = vsel %vm1028, %v3331, %v3332
        %v3334 = vrot.slane %v3264, 5
        %v3335 = vrot.slane %v3334, 4
        %v3336 = vrot.slane %v2767, 5
        %v3337 = vsel %vm1028, %v3335, %v3336
        %v3338 = vrot.slane %v3336, 4
        %v3339 = vrot.slane %v2768, 5
        %v3340 = vsel %vm1028, %v3338, %v3339
        %v3341 = vrot.slane %v3265, 5
        %v3342 = vrot.slane %v3341, 4
        %v3343 = vrot.slane %v2770, 5
        %v3344 = vsel %vm1028, %v3342, %v3343
        %v3345 = vrot.slane %v3343, 4
        %v3346 = vrot.slane %v2771, 5
        %v3347 = vsel %vm1028, %v3345, %v3346
        %v3348 = vrot.slane %v3266, 5
        %v3349 = vrot.slane %v3348, 4
        %v3350 = vrot.slane %v2773, 5
        %v3351 = vsel %vm1028, %v3349, %v3350
        %v3352 = vrot.slane %v3350, 4
        %v3353 = vrot.slane %v2774, 5
        %v3354 = vsel %vm1028, %v3352, %v3353
        %v3355 = vrot.slane %v3267, 5
        %v3356 = vrot.slane %v3355, 4
        %v3357 = vrot.slane %v2776, 5
        %v3358 = vsel %vm1028, %v3356, %v3357
        %v3359 = vrot.slane %v3357, 4
        %v3360 = vrot.slane %v2777, 5
        %v3361 = vsel %vm1028, %v3359, %v3360
        %v3362 = vrot.slane %v3268, 5
        %v3363 = vrot.slane %v3362, 4
        %v3364 = vrot.slane %v2779, 5
        %v3365 = vsel %vm1028, %v3363, %v3364
        %v3366 = vrot.slane %v3364, 4
        %v3367 = vrot.slane %v2780, 5
        %v3368 = vsel %vm1028, %v3366, %v3367
        %s3369 = scalar_lea.vmem %s1, 512
        %v3370 = vld [vmem:[%s3369] sm:$0xf]
        %v3371 = vld [vmem:[%s3369 + $0x4] sm:$0xf]
        %v3372 = vld [vmem:[%s3369 + $0x8] sm:$0xf]
        %v3373 = vld [vmem:[%s3369 + $0xc] sm:$0xf]
        %v3374 = vld [vmem:[%s3369 + $0x10] sm:$0xf]
        %v3375 = vld [vmem:[%s3369 + $0x14] sm:$0xf]
        %v3376 = vld [vmem:[%s3369 + $0x18] sm:$0xf]
        %v3377 = vld [vmem:[%s3369 + $0x1c] sm:$0xf]
        %v3378 = vld [vmem:[%s3369 + $0x20] sm:$0xf]
        %v3379 = vld [vmem:[%s3369 + $0x24] sm:$0xf]
        %v3380 = vld [vmem:[%s3369 + $0x28] sm:$0xf]
        %v3381 = vld [vmem:[%s3369 + $0x2c] sm:$0xf]
        %v3382 = vld [vmem:[%s3369 + $0x30] sm:$0xf]
        %v3383 = vld [vmem:[%s3369 + $0x34] sm:$0xf]
        %v3384 = vld [vmem:[%s3369 + $0x38] sm:$0xf]
        %v3385 = vld [vmem:[%s3369 + $0x3c] sm:$0xf]
        %v3386 = vunpack.c.l.b16 %v3302
        %v3387 = vunpack.c.l.b16 %v3305
        %v3388 = vunpack.c.l.b16 %v3309
        %v3389 = vunpack.c.l.b16 %v3312
        %v3390 = vunpack.c.l.b16 %v3316
        %v3391 = vunpack.c.l.b16 %v3319
        %v3392 = vunpack.c.l.b16 %v3323
        %v3393 = vunpack.c.l.b16 %v3326
        %v3394 = vunpack.c.l.b16 %v3330
        %v3395 = vunpack.c.l.b16 %v3333
        %v3396 = vunpack.c.l.b16 %v3337
        %v3397 = vunpack.c.l.b16 %v3340
        %v3398 = vunpack.c.l.b16 %v3344
        %v3399 = vunpack.c.l.b16 %v3347
        %v3400 = vunpack.c.l.b16 %v3351
        %v3401 = vunpack.c.l.b16 %v3354
        %v3402 = vunpack.c.l.b16 %v3358
        %v3403 = vunpack.c.l.b16 %v3361
        %v3404 = vunpack.c.l.b16 %v3365
        %v3405 = vunpack.c.l.b16 %v3368
        %v3406 = vpack.c.b16 %v3387, %v3386
        %v3407 = vpack.c.b16 %v3389, %v3388
        %v3408 = vpack.c.b16 %v3391, %v3390
        %v3409 = vpack.c.b16 %v3393, %v3392
        %v3410 = vpack.c.b16 %v3395, %v3394
        %v3411 = vpack.c.b16 %v3397, %v3396
        %v3412 = vpack.c.b16 %v3399, %v3398
        %v3413 = vpack.c.b16 %v3401, %v3400
        %v3414 = vpack.c.b16 %v3403, %v3402
        %v3415 = vpack.c.b16 %v3405, %v3404
        %v3442 = vunpack.c.l.b16 %v3370
        %v3443 = vunpack.c.l.b16 %v3371
        %v3444 = vunpack.c.l.b16 %v3372
        %v3445 = vunpack.c.l.b16 %v3373
        %v3446 = vunpack.c.l.b16 %v3374
        %v3447 = vunpack.c.l.b16 %v3375
        %v3448 = vunpack.c.l.b16 %v3376
        %v3449 = vunpack.c.l.b16 %v3377
        %v3450 = vunpack.c.l.b16 %v3378
        %v3451 = vunpack.c.l.b16 %v3379
        %v3452 = vunpack.c.l.b16 %v3380
        %v3453 = vunpack.c.l.b16 %v3381
        %v3454 = vunpack.c.l.b16 %v3382
        %v3455 = vunpack.c.l.b16 %v3383
        %v3456 = vunpack.c.l.b16 %v3384
        %v3457 = vunpack.c.l.b16 %v3385
        %v3458 = vpack.c.b16 %v3443, %v3442
        %v3459 = vpack.c.b16 %v3445, %v3444
        %v3460 = vpack.c.b16 %v3447, %v3446
        %v3461 = vpack.c.b16 %v3449, %v3448
        %v3462 = vpack.c.b16 %v3451, %v3450
        %v3463 = vpack.c.b16 %v3453, %v3452
        %v3464 = vpack.c.b16 %v3455, %v3454
        %v3465 = vpack.c.b16 %v3457, %v3456
        %3474 = vmatprep.subr.bf16.mxu0 0
        %3475 = vmatpush1.bf16.msra.mxu0 %v3458
        %3476 = vmatprep.subr.bf16.mxu0 0
        %3477 = vmatpush1.bf16.msra.mxu0 %v3459
        %3478 = vmatprep.subr.bf16.mxu0 0
        %3479 = vmatpush1.bf16.msra.mxu0 %v3460
        %3480 = vmatprep.subr.bf16.mxu0 0
        %3481 = vmatpush1.bf16.msra.mxu0 %v3461
        %3482 = vmatprep.subr.bf16.mxu0 0
        %3483 = vmatpush1.bf16.msra.mxu0 %v3462
        %3484 = vmatprep.subr.bf16.mxu0 0
        %3485 = vmatpush1.bf16.msra.mxu0 %v3463
        %3486 = vmatprep.subr.bf16.mxu0 0
        %3487 = vmatpush1.bf16.msra.mxu0 %v3464
        %3488 = vmatprep.subr.bf16.mxu0 0
        %3489 = vmatpush1.bf16.msra.mxu0 %v3465
        %3490 = vmatprep.subr.bf16.mxu0 0
        %3491 = vmatpush1.bf16.msra.mxu0 0
        %3492 = vmatprep.subr.bf16.mxu0 0
        %3493 = vmatpush1.bf16.msra.mxu0 0
        %3494 = vmatprep.subr.bf16.mxu0 0
        %3495 = vmatpush1.bf16.msra.mxu0 0
        %3496 = vmatprep.subr.bf16.mxu0 0
        %3497 = vmatpush1.bf16.msra.mxu0 0
        %3498 = vmatprep.subr.bf16.mxu0 0
        %3499 = vmatpush1.bf16.msra.mxu0 0
        %3500 = vmatprep.subr.bf16.mxu0 0
        %3501 = vmatpush1.bf16.msra.mxu0 0
        %3502 = vmatprep.subr.bf16.mxu0 0
        %3503 = vmatpush1.bf16.msra.mxu0 0
        %3504 = vmatprep.subr.bf16.mxu0 0
        %3505 = vmatpush1.bf16.msra.mxu0 0
        %3506 = vmatprep.mubr.bf16.mxu0 0
        %3507 = vmatmul.mubr.bf16.gmra.mrb[0].mxu0 %v3406
        %v3508 = vpop.f32.mrb[0].mxu0
        %v3509 = vadd.f32 0.0, %v3508
        %v3510 = vpop.f32.mrb[0].mxu0
        %v3511 = vpop.f32.mrb[0].mxu0
        %v3512 = vadd.f32 0.0, %v3511
        %v3513 = vpop.f32.mrb[0].mxu0
        %3514 = vmatprep.mubr.bf16.mxu0 0
        %3515 = vmatmul.mubr.bf16.gmra.mrb[0].mxu0 %v3407
        %v3516 = vpop.f32.mrb[0].mxu0
        %v3517 = vadd.f32 0.0, %v3516
        %v3518 = vpop.f32.mrb[0].mxu0
        %v3519 = vpop.f32.mrb[0].mxu0
        %v3520 = vadd.f32 0.0, %v3519
        %v3521 = vpop.f32.mrb[0].mxu0
        %3522 = vmatprep.mubr.bf16.mxu0 0
        %3523 = vmatmul.mubr.bf16.gmra.mrb[0].mxu0 %v3408
        %v3524 = vpop.f32.mrb[0].mxu0
        %v3525 = vadd.f32 0.0, %v3524
        %v3526 = vpop.f32.mrb[0].mxu0
        %v3527 = vpop.f32.mrb[0].mxu0
        %v3528 = vadd.f32 0.0, %v3527
        %v3529 = vpop.f32.mrb[0].mxu0
        %3530 = vmatprep.mubr.bf16.mxu0 0
        %3531 = vmatmul.mubr.bf16.gmra.mrb[0].mxu0 %v3409
        %v3532 = vpop.f32.mrb[0].mxu0
        %v3533 = vadd.f32 0.0, %v3532
        %v3534 = vpop.f32.mrb[0].mxu0
        %v3535 = vpop.f32.mrb[0].mxu0
        %v3536 = vadd.f32 0.0, %v3535
        %v3537 = vpop.f32.mrb[0].mxu0
        %3538 = vmatprep.mubr.bf16.mxu0 0
        %3539 = vmatmul.mubr.bf16.gmra.mrb[0].mxu0 %v3410
        %v3540 = vpop.f32.mrb[0].mxu0
        %v3541 = vadd.f32 0.0, %v3540
        %v3542 = vpop.f32.mrb[0].mxu0
        %v3543 = vpop.f32.mrb[0].mxu0
        %v3544 = vadd.f32 0.0, %v3543
        %v3545 = vpop.f32.mrb[0].mxu0
        %3546 = vmatprep.mubr.bf16.mxu0 0
        %3547 = vmatmul.mubr.bf16.gmra.mrb[0].mxu0 %v3411
        %v3548 = vpop.f32.mrb[0].mxu0
        %v3549 = vadd.f32 0.0, %v3548
        %v3550 = vpop.f32.mrb[0].mxu0
        %v3551 = vpop.f32.mrb[0].mxu0
        %v3552 = vadd.f32 0.0, %v3551
        %v3553 = vpop.f32.mrb[0].mxu0
        %3554 = vmatprep.mubr.bf16.mxu0 0
        %3555 = vmatmul.mubr.bf16.gmra.mrb[0].mxu0 %v3412
        %v3556 = vpop.f32.mrb[0].mxu0
        %v3557 = vadd.f32 0.0, %v3556
        %v3558 = vpop.f32.mrb[0].mxu0
        %v3559 = vpop.f32.mrb[0].mxu0
        %v3560 = vadd.f32 0.0, %v3559
        %v3561 = vpop.f32.mrb[0].mxu0
        %3562 = vmatprep.mubr.bf16.mxu0 0
        %3563 = vmatmul.mubr.bf16.gmra.mrb[0].mxu0 %v3413
        %v3564 = vpop.f32.mrb[0].mxu0
        %v3565 = vadd.f32 0.0, %v3564
        %v3566 = vpop.f32.mrb[0].mxu0
        %v3567 = vpop.f32.mrb[0].mxu0
        %v3568 = vadd.f32 0.0, %v3567
        %v3569 = vpop.f32.mrb[0].mxu0
        %3570 = vmatprep.mubr.bf16.mxu0 0
        %3571 = vmatmul.mubr.bf16.gmra.mrb[0].mxu0 %v3414
        %v3572 = vpop.f32.mrb[0].mxu0
        %v3573 = vadd.f32 0.0, %v3572
        %v3574 = vpop.f32.mrb[0].mxu0
        %v3575 = vpop.f32.mrb[0].mxu0
        %v3576 = vadd.f32 0.0, %v3575
        %v3577 = vpop.f32.mrb[0].mxu0
        %3578 = vmatprep.mubr.bf16.mxu0 0
        %3579 = vmatmul.mubr.bf16.gmra.mrb[0].mxu0 %v3415
        %v3580 = vpop.f32.mrb[0].mxu0
        %v3581 = vadd.f32 0.0, %v3580
        %v3582 = vpop.f32.mrb[0].mxu0
        %v3583 = vpop.f32.mrb[0].mxu0
        %v3584 = vadd.f32 0.0, %v3583
        %v3585 = vpop.f32.mrb[0].mxu0
        %3586 = vdwg.mxu0
        %v3587 = vadd.f32 %v3239, %v3509
        %v3588 = vadd.f32 %v3240, %v3512
        %v3589 = vadd.f32 %v3241, %v3517
        %v3590 = vadd.f32 %v3242, %v3520
        %v3591 = vadd.f32 %v3243, %v3525
        %v3592 = vadd.f32 %v3244, %v3528
        %v3593 = vadd.f32 %v3245, %v3533
        %v3594 = vadd.f32 %v3246, %v3536
        %v3595 = vadd.f32 %v3247, %v3541
        %v3596 = vadd.f32 %v3248, %v3544
        %v3597 = vadd.f32 %v3249, %v3549
        %v3598 = vadd.f32 %v3250, %v3552
        %v3599 = vadd.f32 %v3251, %v3557
        %v3600 = vadd.f32 %v3252, %v3560
        %v3601 = vadd.f32 %v3253, %v3565
        %v3602 = vadd.f32 %v3254, %v3568
        %v3603 = vadd.f32 %v3255, %v3573
        %v3604 = vadd.f32 %v3256, %v3576
        %v3605 = vadd.f32 %v3257, %v3581
        %v3606 = vadd.f32 %v3258, %v3584
        %v3607 = vld [vmem:[%s2] sm:$0x1]
        %v3609 = vlaneseq
        %v3610 = vshrl.u32 %v3609, 7
        %v3611 = vsub.s32 0, %v3610
        %v3612 = vrot.slane %v3607, %v3611
        %v3614 = vadd.f32 %v3587, %v3612
        %v3615 = vadd.f32 %v3588, %v3612
        %v3616 = vadd.f32 %v3589, %v3612
        %v3617 = vadd.f32 %v3590, %v3612
        %v3618 = vadd.f32 %v3591, %v3612
        %v3619 = vadd.f32 %v3592, %v3612
        %v3620 = vadd.f32 %v3593, %v3612
        %v3621 = vadd.f32 %v3594, %v3612
        %v3622 = vadd.f32 %v3595, %v3612
        %v3623 = vadd.f32 %v3596, %v3612
        %v3624 = vadd.f32 %v3597, %v3612
        %v3625 = vadd.f32 %v3598, %v3612
        %v3626 = vadd.f32 %v3599, %v3612
        %v3627 = vadd.f32 %v3600, %v3612
        %v3628 = vadd.f32 %v3601, %v3612
        %v3629 = vadd.f32 %v3602, %v3612
        %v3630 = vadd.f32 %v3603, %v3612
        %v3631 = vadd.f32 %v3604, %v3612
        %v3632 = vadd.f32 %v3605, %v3612
        %v3633 = vadd.f32 %v3606, %v3612
        %v3634 = vmax.f32 %v3614, 0.0
        %v3635 = vmax.f32 %v3615, 0.0
        %v3636 = vmax.f32 %v3616, 0.0
        %v3637 = vmax.f32 %v3617, 0.0
        %v3638 = vmax.f32 %v3618, 0.0
        %v3639 = vmax.f32 %v3619, 0.0
        %v3640 = vmax.f32 %v3620, 0.0
        %v3641 = vmax.f32 %v3621, 0.0
        %v3642 = vmax.f32 %v3622, 0.0
        %v3643 = vmax.f32 %v3623, 0.0
        %v3644 = vmax.f32 %v3624, 0.0
        %v3645 = vmax.f32 %v3625, 0.0
        %v3646 = vmax.f32 %v3626, 0.0
        %v3647 = vmax.f32 %v3627, 0.0
        %v3648 = vmax.f32 %v3628, 0.0
        %v3649 = vmax.f32 %v3629, 0.0
        %v3650 = vmax.f32 %v3630, 0.0
        %v3651 = vmax.f32 %v3631, 0.0
        %v3652 = vmax.f32 %v3632, 0.0
        %v3653 = vmax.f32 %v3633, 0.0
        %v3654 = vpack.c.bf16 %v3635, %v3634
        %v3655 = vpack.c.bf16 %v3637, %v3636
        %v3656 = vpack.c.bf16 %v3639, %v3638
        %v3657 = vpack.c.bf16 %v3641, %v3640
        %v3658 = vpack.c.bf16 %v3643, %v3642
        %v3659 = vpack.c.bf16 %v3645, %v3644
        %v3660 = vpack.c.bf16 %v3647, %v3646
        %v3661 = vpack.c.bf16 %v3649, %v3648
        %v3662 = vpack.c.bf16 %v3651, %v3650
        %v3663 = vpack.c.bf16 %v3653, %v3652
        %v3674 = vunpack.c.l.b16 %v3654
        %v3675 = vunpack.c.h.b16 %v3654
        %v3676 = vunpack.c.l.b16 %v3655
        %v3677 = vunpack.c.h.b16 %v3655
        %v3678 = vunpack.c.l.b16 %v3656
        %v3679 = vunpack.c.h.b16 %v3656
        %v3680 = vunpack.c.l.b16 %v3657
        %v3681 = vunpack.c.h.b16 %v3657
        %v3682 = vunpack.c.l.b16 %v3658
        %v3683 = vunpack.c.h.b16 %v3658
        %v3684 = vunpack.c.l.b16 %v3659
        %v3685 = vunpack.c.h.b16 %v3659
        %v3686 = vunpack.c.l.b16 %v3660
        %v3687 = vunpack.c.h.b16 %v3660
        %v3688 = vunpack.c.l.b16 %v3661
        %v3689 = vunpack.c.h.b16 %v3661
        %v3690 = vunpack.c.l.b16 %v3662
        %v3691 = vunpack.c.h.b16 %v3662
        %v3692 = vunpack.c.l.b16 %v3663
        %v3693 = vunpack.c.h.b16 %v3663
        %v3694 = vpack.c.b16 %v3674, %v3674
        %v3695 = vpack.c.b16 %v3675, %v3675
        %v3696 = vpack.c.b16 %v3676, %v3676
        %v3697 = vpack.c.b16 %v3677, %v3677
        %v3698 = vpack.c.b16 %v3678, %v3678
        %v3699 = vpack.c.b16 %v3679, %v3679
        %v3700 = vpack.c.b16 %v3680, %v3680
        %v3701 = vpack.c.b16 %v3681, %v3681
        %v3702 = vpack.c.b16 %v3682, %v3682
        %v3703 = vpack.c.b16 %v3683, %v3683
        %v3704 = vpack.c.b16 %v3684, %v3684
        %v3705 = vpack.c.b16 %v3685, %v3685
        %v3706 = vpack.c.b16 %v3686, %v3686
        %v3707 = vpack.c.b16 %v3687, %v3687
        %v3708 = vpack.c.b16 %v3688, %v3688
        %v3709 = vpack.c.b16 %v3689, %v3689
        %v3710 = vpack.c.b16 %v3690, %v3690
        %v3711 = vpack.c.b16 %v3691, %v3691
        %v3712 = vpack.c.b16 %v3692, %v3692
        %v3713 = vpack.c.b16 %v3693, %v3693
        %vm3714 = vsmask.f32 256
        %vm3715 = vsmask.f32 4368
        %vm3716 = vmor %vm3714, %vm3715
        %v3718 = vshrl.u32 %v3694, 16
        %v3720 = vrot.slane %v3718, 7
        %v3721 = vshll.u32 %v3694, 16
        %v3723 = vor.u32 %v3720, %v3721
        %v3724 = vrot.slane %v3720, 4
        %v3726 = vshrl.u32 %v3695, 16
        %v3728 = vrot.slane %v3726, 7
        %v3729 = vshll.u32 %v3695, 16
        %v3731 = vor.u32 %v3728, %v3729
        %v3732 = vsel %vm3716, %v3724, %v3731
        %v3733 = vrot.slane %v3728, 4
        %v3735 = vshrl.u32 %v3696, 16
        %v3737 = vrot.slane %v3735, 7
        %v3738 = vshll.u32 %v3696, 16
        %v3740 = vor.u32 %v3737, %v3738
        %v3741 = vrot.slane %v3737, 4
        %v3743 = vshrl.u32 %v3697, 16
        %v3745 = vrot.slane %v3743, 7
        %v3746 = vshll.u32 %v3697, 16
        %v3748 = vor.u32 %v3745, %v3746
        %v3749 = vsel %vm3716, %v3741, %v3748
        %v3750 = vrot.slane %v3745, 4
        %v3752 = vshrl.u32 %v3698, 16
        %v3754 = vrot.slane %v3752, 7
        %v3755 = vshll.u32 %v3698, 16
        %v3757 = vor.u32 %v3754, %v3755
        %v3758 = vrot.slane %v3754, 4
        %v3760 = vshrl.u32 %v3699, 16
        %v3762 = vrot.slane %v3760, 7
        %v3763 = vshll.u32 %v3699, 16
        %v3765 = vor.u32 %v3762, %v3763
        %v3766 = vsel %vm3716, %v3758, %v3765
        %v3767 = vrot.slane %v3762, 4
        %v3769 = vshrl.u32 %v3700, 16
        %v3771 = vrot.slane %v3769, 7
        %v3772 = vshll.u32 %v3700, 16
        %v3774 = vor.u32 %v3771, %v3772
        %v3775 = vrot.slane %v3771, 4
        %v3777 = vshrl.u32 %v3701, 16
        %v3779 = vrot.slane %v3777, 7
        %v3780 = vshll.u32 %v3701, 16
        %v3782 = vor.u32 %v3779, %v3780
        %v3783 = vsel %vm3716, %v3775, %v3782
        %v3784 = vrot.slane %v3779, 4
        %v3786 = vshrl.u32 %v3702, 16
        %v3788 = vrot.slane %v3786, 7
        %v3789 = vshll.u32 %v3702, 16
        %v3791 = vor.u32 %v3788, %v3789
        %v3792 = vrot.slane %v3788, 4
        %v3794 = vshrl.u32 %v3703, 16
        %v3796 = vrot.slane %v3794, 7
        %v3797 = vshll.u32 %v3703, 16
        %v3799 = vor.u32 %v3796, %v3797
        %v3800 = vsel %vm3716, %v3792, %v3799
        %v3801 = vrot.slane %v3796, 4
        %v3803 = vshrl.u32 %v3704, 16
        %v3805 = vrot.slane %v3803, 7
        %v3806 = vshll.u32 %v3704, 16
        %v3808 = vor.u32 %v3805, %v3806
        %v3809 = vrot.slane %v3805, 4
        %v3811 = vshrl.u32 %v3705, 16
        %v3813 = vrot.slane %v3811, 7
        %v3814 = vshll.u32 %v3705, 16
        %v3816 = vor.u32 %v3813, %v3814
        %v3817 = vsel %vm3716, %v3809, %v3816
        %v3818 = vrot.slane %v3813, 4
        %v3820 = vshrl.u32 %v3706, 16
        %v3822 = vrot.slane %v3820, 7
        %v3823 = vshll.u32 %v3706, 16
        %v3825 = vor.u32 %v3822, %v3823
        %v3826 = vrot.slane %v3822, 4
        %v3828 = vshrl.u32 %v3707, 16
        %v3830 = vrot.slane %v3828, 7
        %v3831 = vshll.u32 %v3707, 16
        %v3833 = vor.u32 %v3830, %v3831
        %v3834 = vsel %vm3716, %v3826, %v3833
        %v3835 = vrot.slane %v3830, 4
        %v3837 = vshrl.u32 %v3708, 16
        %v3839 = vrot.slane %v3837, 7
        %v3840 = vshll.u32 %v3708, 16
        %v3842 = vor.u32 %v3839, %v3840
        %v3843 = vrot.slane %v3839, 4
        %v3845 = vshrl.u32 %v3709, 16
        %v3847 = vrot.slane %v3845, 7
        %v3848 = vshll.u32 %v3709, 16
        %v3850 = vor.u32 %v3847, %v3848
        %v3851 = vsel %vm3716, %v3843, %v3850
        %v3852 = vrot.slane %v3847, 4
        %v3854 = vshrl.u32 %v3710, 16
        %v3856 = vrot.slane %v3854, 7
        %v3857 = vshll.u32 %v3710, 16
        %v3859 = vor.u32 %v3856, %v3857
        %v3860 = vrot.slane %v3856, 4
        %v3862 = vshrl.u32 %v3711, 16
        %v3864 = vrot.slane %v3862, 7
        %v3865 = vshll.u32 %v3711, 16
        %v3867 = vor.u32 %v3864, %v3865
        %v3868 = vsel %vm3716, %v3860, %v3867
        %v3869 = vrot.slane %v3864, 4
        %v3871 = vshrl.u32 %v3712, 16
        %v3873 = vrot.slane %v3871, 7
        %v3874 = vshll.u32 %v3712, 16
        %v3876 = vor.u32 %v3873, %v3874
        %v3877 = vrot.slane %v3873, 4
        %v3879 = vshrl.u32 %v3713, 16
        %v3881 = vrot.slane %v3879, 7
        %v3882 = vshll.u32 %v3713, 16
        %v3884 = vor.u32 %v3881, %v3882
        %v3885 = vsel %vm3716, %v3877, %v3884
        %v3886 = vrot.slane %v3881, 4
        %vm3917 = vcmask 1043456
        %vm3918 = vsmask.f32 7938
        %vm3919 = vmand %vm3917, %vm3918
        %v3920 = vld [vmem:[#allocation2] sm:$0xf]
        %v3921 = vsel %vm3919, %v3723, %v3920
        %3922 = vst [vmem:[#allocation2] sm:$0xf] %v3921
        %3923 = vst [vmem:[#allocation2 + $0x4] sm:$0xf] %v3732
        %vm3924 = vcmask 1040384
        %vm3925 = vmand %vm3924, %vm3714
        %v3926 = vld [vmem:[#allocation2 + $0x8] sm:$0x1]
        %v3927 = vsel %vm3925, %v3733, %v3926
        %3928 = vst [vmem:[#allocation2 + $0x8] sm:$0x1] %v3927
        %v3929 = vld [vmem:[#allocation2 + $0xc] sm:$0xf]
        %v3930 = vsel %vm3919, %v3740, %v3929
        %3931 = vst [vmem:[#allocation2 + $0xc] sm:$0xf] %v3930
        %3932 = vst [vmem:[#allocation2 + $0x10] sm:$0xf] %v3749
        %v3933 = vld [vmem:[#allocation2 + $0x14] sm:$0x1]
        %v3934 = vsel %vm3925, %v3750, %v3933
        %3935 = vst [vmem:[#allocation2 + $0x14] sm:$0x1] %v3934
        %v3936 = vld [vmem:[#allocation2 + $0x18] sm:$0xf]
        %v3937 = vsel %vm3919, %v3757, %v3936
        %3938 = vst [vmem:[#allocation2 + $0x18] sm:$0xf] %v3937
        %3939 = vst [vmem:[#allocation2 + $0x1c] sm:$0xf] %v3766
        %v3940 = vld [vmem:[#allocation2 + $0x20] sm:$0x1]
        %v3941 = vsel %vm3925, %v3767, %v3940
        %3942 = vst [vmem:[#allocation2 + $0x20] sm:$0x1] %v3941
        %v3943 = vld [vmem:[#allocation2 + $0x24] sm:$0xf]
        %v3944 = vsel %vm3919, %v3774, %v3943
        %3945 = vst [vmem:[#allocation2 + $0x24] sm:$0xf] %v3944
        %3946 = vst [vmem:[#allocation2 + $0x28] sm:$0xf] %v3783
        %v3947 = vld [vmem:[#allocation2 + $0x2c] sm:$0x1]
        %v3948 = vsel %vm3925, %v3784, %v3947
        %3949 = vst [vmem:[#allocation2 + $0x2c] sm:$0x1] %v3948
        %v3950 = vld [vmem:[#allocation2 + $0x30] sm:$0xf]
        %v3951 = vsel %vm3919, %v3791, %v3950
        %3952 = vst [vmem:[#allocation2 + $0x30] sm:$0xf] %v3951
        %3953 = vst [vmem:[#allocation2 + $0x34] sm:$0xf] %v3800
        %v3954 = vld [vmem:[#allocation2 + $0x38] sm:$0x1]
        %v3955 = vsel %vm3925, %v3801, %v3954
        %3956 = vst [vmem:[#allocation2 + $0x38] sm:$0x1] %v3955
        %v3957 = vld [vmem:[#allocation2 + $0x3c] sm:$0xf]
        %v3958 = vsel %vm3919, %v3808, %v3957
        %3959 = vst [vmem:[#allocation2 + $0x3c] sm:$0xf] %v3958
        %3960 = vst [vmem:[#allocation2 + $0x40] sm:$0xf] %v3817
        %v3961 = vld [vmem:[#allocation2 + $0x44] sm:$0x1]
        %v3962 = vsel %vm3925, %v3818, %v3961
        %3963 = vst [vmem:[#allocation2 + $0x44] sm:$0x1] %v3962
        %v3964 = vld [vmem:[#allocation2 + $0x48] sm:$0xf]
        %v3965 = vsel %vm3919, %v3825, %v3964
        %3966 = vst [vmem:[#allocation2 + $0x48] sm:$0xf] %v3965
        %3967 = vst [vmem:[#allocation2 + $0x4c] sm:$0xf] %v3834
        %v3968 = vld [vmem:[#allocation2 + $0x50] sm:$0x1]
        %v3969 = vsel %vm3925, %v3835, %v3968
        %3970 = vst [vmem:[#allocation2 + $0x50] sm:$0x1] %v3969
        %v3971 = vld [vmem:[#allocation2 + $0x54] sm:$0xf]
        %v3972 = vsel %vm3919, %v3842, %v3971
        %3973 = vst [vmem:[#allocation2 + $0x54] sm:$0xf] %v3972
        %3974 = vst [vmem:[#allocation2 + $0x58] sm:$0xf] %v3851
        %v3975 = vld [vmem:[#allocation2 + $0x5c] sm:$0x1]
        %v3976 = vsel %vm3925, %v3852, %v3975
        %3977 = vst [vmem:[#allocation2 + $0x5c] sm:$0x1] %v3976
        %v3978 = vld [vmem:[#allocation2 + $0x60] sm:$0xf]
        %v3979 = vsel %vm3919, %v3859, %v3978
        %3980 = vst [vmem:[#allocation2 + $0x60] sm:$0xf] %v3979
        %3981 = vst [vmem:[#allocation2 + $0x64] sm:$0xf] %v3868
        %v3982 = vld [vmem:[#allocation2 + $0x68] sm:$0x1]
        %v3983 = vsel %vm3925, %v3869, %v3982
        %3984 = vst [vmem:[#allocation2 + $0x68] sm:$0x1] %v3983
        %v3985 = vld [vmem:[#allocation2 + $0x6c] sm:$0xf]
        %v3986 = vsel %vm3919, %v3876, %v3985
        %3987 = vst [vmem:[#allocation2 + $0x6c] sm:$0xf] %v3986
        %3988 = vst [vmem:[#allocation2 + $0x70] sm:$0xf] %v3885
        %v3989 = vld [vmem:[#allocation2 + $0x74] sm:$0x1]
        %v3990 = vsel %vm3925, %v3886, %v3989
        %3991 = vst [vmem:[#allocation2 + $0x74] sm:$0x1] %v3990
        %v3992 = vld [vmem:[#allocation2] sm:$0x1]
        %v3993 = vsel %vm3925, 0, %v3992
        %3994 = vst [vmem:[#allocation2] sm:$0x1] %v3993
        %v3995 = vld [vmem:[#allocation2 + $0xc] sm:$0x1]
        %v3996 = vsel %vm3925, 0, %v3995
        %3997 = vst [vmem:[#allocation2 + $0xc] sm:$0x1] %v3996
        %v3998 = vld [vmem:[#allocation2 + $0x18] sm:$0x1]
        %v3999 = vsel %vm3925, 0, %v3998
        %4000 = vst [vmem:[#allocation2 + $0x18] sm:$0x1] %v3999
        %v4001 = vld [vmem:[#allocation2 + $0x24] sm:$0x1]
        %v4002 = vsel %vm3925, 0, %v4001
        %4003 = vst [vmem:[#allocation2 + $0x24] sm:$0x1] %v4002
        %v4004 = vld [vmem:[#allocation2 + $0x30] sm:$0x1]
        %v4005 = vsel %vm3925, 0, %v4004
        %4006 = vst [vmem:[#allocation2 + $0x30] sm:$0x1] %v4005
        %v4007 = vld [vmem:[#allocation2 + $0x3c] sm:$0x1]
        %v4008 = vsel %vm3925, 0, %v4007
        %4009 = vst [vmem:[#allocation2 + $0x3c] sm:$0x1] %v4008
        %v4010 = vld [vmem:[#allocation2 + $0x48] sm:$0x1]
        %v4011 = vsel %vm3925, 0, %v4010
        %4012 = vst [vmem:[#allocation2 + $0x48] sm:$0x1] %v4011
        %v4013 = vld [vmem:[#allocation2 + $0x54] sm:$0x1]
        %v4014 = vsel %vm3925, 0, %v4013
        %4015 = vst [vmem:[#allocation2 + $0x54] sm:$0x1] %v4014
        %v4016 = vld [vmem:[#allocation2 + $0x60] sm:$0x1]
        %v4017 = vsel %vm3925, 0, %v4016
        %4018 = vst [vmem:[#allocation2 + $0x60] sm:$0x1] %v4017
        %v4019 = vld [vmem:[#allocation2 + $0x6c] sm:$0x1]
        %v4020 = vsel %vm3925, 0, %v4019
        %4021 = vst [vmem:[#allocation2 + $0x6c] sm:$0x1] %v4020
        %vm4022 = vmand %vm3924, %vm3918
        %v4023 = vld [vmem:[#allocation2 + $0x8] sm:$0x1]
        %v4024 = vsel %vm4022, 0, %v4023
        %4025 = vst [vmem:[#allocation2 + $0x8] sm:$0x1] %v4024
        %v4026 = vld [vmem:[#allocation2 + $0x14] sm:$0x1]
        %v4027 = vsel %vm4022, 0, %v4026
        %4028 = vst [vmem:[#allocation2 + $0x14] sm:$0x1] %v4027
        %v4029 = vld [vmem:[#allocation2 + $0x20] sm:$0x1]
        %v4030 = vsel %vm4022, 0, %v4029
        %4031 = vst [vmem:[#allocation2 + $0x20] sm:$0x1] %v4030
        %v4032 = vld [vmem:[#allocation2 + $0x2c] sm:$0x1]
        %v4033 = vsel %vm4022, 0, %v4032
        %4034 = vst [vmem:[#allocation2 + $0x2c] sm:$0x1] %v4033
        %v4035 = vld [vmem:[#allocation2 + $0x38] sm:$0x1]
        %v4036 = vsel %vm4022, 0, %v4035
        %4037 = vst [vmem:[#allocation2 + $0x38] sm:$0x1] %v4036
        %v4038 = vld [vmem:[#allocation2 + $0x44] sm:$0x1]
        %v4039 = vsel %vm4022, 0, %v4038
        %4040 = vst [vmem:[#allocation2 + $0x44] sm:$0x1] %v4039
        %v4041 = vld [vmem:[#allocation2 + $0x50] sm:$0x1]
        %v4042 = vsel %vm4022, 0, %v4041
        %4043 = vst [vmem:[#allocation2 + $0x50] sm:$0x1] %v4042
        %v4044 = vld [vmem:[#allocation2 + $0x5c] sm:$0x1]
        %v4045 = vsel %vm4022, 0, %v4044
        %4046 = vst [vmem:[#allocation2 + $0x5c] sm:$0x1] %v4045
        %v4047 = vld [vmem:[#allocation2 + $0x68] sm:$0x1]
        %v4048 = vsel %vm4022, 0, %v4047
        %4049 = vst [vmem:[#allocation2 + $0x68] sm:$0x1] %v4048
        %v4050 = vld [vmem:[#allocation2 + $0x74] sm:$0x1]
        %v4051 = vsel %vm4022, 0, %v4050
        %4052 = vst [vmem:[#allocation2 + $0x74] sm:$0x1] %v4051
        %p4053 = scmp.eq.s32.totalorder %s25, 0
        // Predicated region
        $region45: #{tpu_custom_call.1} parent=39 // pred_check
          %p4054 = pneg %p4053
        $region46: #{tpu_custom_call.1} parent=39 // pred_check_branch
          %4056 = sbr.rel (%p4054) target = $region48
        $region47: #{tpu_custom_call.1} parent=39 // pred_region
          %4057 = vst [vmem:[#allocation2] sm:$0xf] 0
          %4058 = vst [vmem:[#allocation2 + $0x4] sm:$0xf] 0
          %4059 = vst [vmem:[#allocation2 + $0x8] sm:$0x1] 0
        $region48: #{tpu_custom_call.1} parent=39 // pred_fallthru
          _
        %p4060 = scmp.eq.s32.totalorder %s25, 1
        // Predicated region
        $region49: #{tpu_custom_call.1} parent=39 // pred_check
          %p4061 = pneg %p4060
        $region50: #{tpu_custom_call.1} parent=39 // pred_check_branch
          %4063 = sbr.rel (%p4061) target = $region52
        $region51: #{tpu_custom_call.1} parent=39 // pred_region
          %s4064 = scalar_lea.vmem [#allocation2], 108
          %4065 = vst [vmem:[%s4064] sm:$0xf] 0
          %4066 = vst [vmem:[%s4064 + $0x4] sm:$0xf] 0
          %4067 = vst [vmem:[%s4064 + $0x8] sm:$0x1] 0
        $region52: #{tpu_custom_call.1} parent=39 // pred_fallthru
          _
        %v4068 = vld [vmem:[#allocation2] sm:$0xf]
        %v4069 = vld [vmem:[#allocation2 + $0x4] sm:$0xf]
        %v4070 = vld [vmem:[#allocation2 + $0xc] sm:$0xf]
        %v4071 = vld [vmem:[#allocation2 + $0x10] sm:$0xf]
        %v4072 = vld [vmem:[#allocation2 + $0x18] sm:$0xf]
        %v4073 = vld [vmem:[#allocation2 + $0x1c] sm:$0xf]
        %v4074 = vld [vmem:[#allocation2 + $0x24] sm:$0xf]
        %v4075 = vld [vmem:[#allocation2 + $0x28] sm:$0xf]
        %v4076 = vld [vmem:[#allocation2 + $0x30] sm:$0xf]
        %v4077 = vld [vmem:[#allocation2 + $0x34] sm:$0xf]
        %v4078 = vld [vmem:[#allocation2 + $0x3c] sm:$0xf]
        %v4079 = vld [vmem:[#allocation2 + $0x40] sm:$0xf]
        %v4080 = vld [vmem:[#allocation2 + $0x48] sm:$0xf]
        %v4081 = vld [vmem:[#allocation2 + $0x4c] sm:$0xf]
        %v4082 = vld [vmem:[#allocation2 + $0x54] sm:$0xf]
        %v4083 = vld [vmem:[#allocation2 + $0x58] sm:$0xf]
        %v4084 = vld [vmem:[#allocation3] sm:$0xf]
        %v4085 = vld [vmem:[#allocation3 + $0x4] sm:$0xf]
        %v4086 = vld [vmem:[#allocation3 + $0x8] sm:$0xf]
        %v4087 = vld [vmem:[#allocation3 + $0xc] sm:$0xf]
        %v4088 = vld [vmem:[#allocation3 + $0x10] sm:$0xf]
        %v4089 = vld [vmem:[#allocation3 + $0x14] sm:$0xf]
        %v4090 = vld [vmem:[#allocation3 + $0x18] sm:$0xf]
        %v4091 = vld [vmem:[#allocation3 + $0x1c] sm:$0xf]
        %v4092 = vld [vmem:[#allocation3 + $0x20] sm:$0xf]
        %v4093 = vld [vmem:[#allocation3 + $0x24] sm:$0xf]
        %v4094 = vld [vmem:[#allocation3 + $0x28] sm:$0xf]
        %v4095 = vld [vmem:[#allocation3 + $0x2c] sm:$0xf]
        %v4096 = vld [vmem:[#allocation3 + $0x30] sm:$0xf]
        %v4097 = vld [vmem:[#allocation3 + $0x34] sm:$0xf]
        %v4098 = vld [vmem:[#allocation3 + $0x38] sm:$0xf]
        %v4099 = vld [vmem:[#allocation3 + $0x3c] sm:$0xf]
        %v4100 = vld [vmem:[#allocation2 + $0x8] sm:$0x1]
        %v4101 = vld [vmem:[#allocation2 + $0x14] sm:$0x1]
        %v4102 = vld [vmem:[#allocation2 + $0x20] sm:$0x1]
        %v4103 = vld [vmem:[#allocation2 + $0x2c] sm:$0x1]
        %v4104 = vld [vmem:[#allocation2 + $0x38] sm:$0x1]
        %v4105 = vld [vmem:[#allocation2 + $0x44] sm:$0x1]
        %v4106 = vld [vmem:[#allocation2 + $0x50] sm:$0x1]
        %v4107 = vld [vmem:[#allocation2 + $0x5c] sm:$0x1]
        %v4109 = vshrl.u32 %v4068, 16
        %v4111 = vrot.slane %v4109, 4
        %v4112 = vshll.u32 %v4068, 16
        %v4114 = vrot.slane %v4112, 5
        %v4115 = vor.u32 %v4111, %v4114
        %v4116 = vrot.slane %v4115, 4
        %v4118 = vshll.u32 %v4069, 16
        %v4120 = vrot.slane %v4118, 5
        %v4121 = vsel %vm316, %v4116, %v4120
        %v4122 = vshrl.u32 %v4069, 16
        %v4124 = vrot.slane %v4122, 4
        %v4125 = vor.u32 %v4124, %v4120
        %v4126 = vrot.slane %v4125, 4
        %v4128 = vshll.u32 %v4100, 16
        %v4130 = vrot.slane %v4128, 5
        %v4131 = vsel %vm316, %v4126, %v4130
        %v4133 = vshrl.u32 %v4070, 16
        %v4135 = vrot.slane %v4133, 4
        %v4136 = vshll.u32 %v4070, 16
        %v4138 = vrot.slane %v4136, 5
        %v4139 = vor.u32 %v4135, %v4138
        %v4140 = vrot.slane %v4139, 4
        %v4142 = vshll.u32 %v4071, 16
        %v4144 = vrot.slane %v4142, 5
        %v4145 = vsel %vm316, %v4140, %v4144
        %v4146 = vshrl.u32 %v4071, 16
        %v4148 = vrot.slane %v4146, 4
        %v4149 = vor.u32 %v4148, %v4144
        %v4150 = vrot.slane %v4149, 4
        %v4152 = vshll.u32 %v4101, 16
        %v4154 = vrot.slane %v4152, 5
        %v4155 = vsel %vm316, %v4150, %v4154
        %v4157 = vshrl.u32 %v4072, 16
        %v4159 = vrot.slane %v4157, 4
        %v4160 = vshll.u32 %v4072, 16
        %v4162 = vrot.slane %v4160, 5
        %v4163 = vor.u32 %v4159, %v4162
        %v4164 = vrot.slane %v4163, 4
        %v4166 = vshll.u32 %v4073, 16
        %v4168 = vrot.slane %v4166, 5
        %v4169 = vsel %vm316, %v4164, %v4168
        %v4170 = vshrl.u32 %v4073, 16
        %v4172 = vrot.slane %v4170, 4
        %v4173 = vor.u32 %v4172, %v4168
        %v4174 = vrot.slane %v4173, 4
        %v4176 = vshll.u32 %v4102, 16
        %v4178 = vrot.slane %v4176, 5
        %v4179 = vsel %vm316, %v4174, %v4178
        %v4181 = vshrl.u32 %v4074, 16
        %v4183 = vrot.slane %v4181, 4
        %v4184 = vshll.u32 %v4074, 16
        %v4186 = vrot.slane %v4184, 5
        %v4187 = vor.u32 %v4183, %v4186
        %v4188 = vrot.slane %v4187, 4
        %v4190 = vshll.u32 %v4075, 16
        %v4192 = vrot.slane %v4190, 5
        %v4193 = vsel %vm316, %v4188, %v4192
        %v4194 = vshrl.u32 %v4075, 16
        %v4196 = vrot.slane %v4194, 4
        %v4197 = vor.u32 %v4196, %v4192
        %v4198 = vrot.slane %v4197, 4
        %v4200 = vshll.u32 %v4103, 16
        %v4202 = vrot.slane %v4200, 5
        %v4203 = vsel %vm316, %v4198, %v4202
        %v4205 = vshrl.u32 %v4076, 16
        %v4207 = vrot.slane %v4205, 4
        %v4208 = vshll.u32 %v4076, 16
        %v4210 = vrot.slane %v4208, 5
        %v4211 = vor.u32 %v4207, %v4210
        %v4212 = vrot.slane %v4211, 4
        %v4214 = vshll.u32 %v4077, 16
        %v4216 = vrot.slane %v4214, 5
        %v4217 = vsel %vm316, %v4212, %v4216
        %v4218 = vshrl.u32 %v4077, 16
        %v4220 = vrot.slane %v4218, 4
        %v4221 = vor.u32 %v4220, %v4216
        %v4222 = vrot.slane %v4221, 4
        %v4224 = vshll.u32 %v4104, 16
        %v4226 = vrot.slane %v4224, 5
        %v4227 = vsel %vm316, %v4222, %v4226
        %v4229 = vshrl.u32 %v4078, 16
        %v4231 = vrot.slane %v4229, 4
        %v4232 = vshll.u32 %v4078, 16
        %v4234 = vrot.slane %v4232, 5
        %v4235 = vor.u32 %v4231, %v4234
        %v4236 = vrot.slane %v4235, 4
        %v4238 = vshll.u32 %v4079, 16
        %v4240 = vrot.slane %v4238, 5
        %v4241 = vsel %vm316, %v4236, %v4240
        %v4242 = vshrl.u32 %v4079, 16
        %v4244 = vrot.slane %v4242, 4
        %v4245 = vor.u32 %v4244, %v4240
        %v4246 = vrot.slane %v4245, 4
        %v4248 = vshll.u32 %v4105, 16
        %v4250 = vrot.slane %v4248, 5
        %v4251 = vsel %vm316, %v4246, %v4250
        %v4253 = vshrl.u32 %v4080, 16
        %v4255 = vrot.slane %v4253, 4
        %v4256 = vshll.u32 %v4080, 16
        %v4258 = vrot.slane %v4256, 5
        %v4259 = vor.u32 %v4255, %v4258
        %v4260 = vrot.slane %v4259, 4
        %v4262 = vshll.u32 %v4081, 16
        %v4264 = vrot.slane %v4262, 5
        %v4265 = vsel %vm316, %v4260, %v4264
        %v4266 = vshrl.u32 %v4081, 16
        %v4268 = vrot.slane %v4266, 4
        %v4269 = vor.u32 %v4268, %v4264
        %v4270 = vrot.slane %v4269, 4
        %v4272 = vshll.u32 %v4106, 16
        %v4274 = vrot.slane %v4272, 5
        %v4275 = vsel %vm316, %v4270, %v4274
        %v4277 = vshrl.u32 %v4082, 16
        %v4279 = vrot.slane %v4277, 4
        %v4280 = vshll.u32 %v4082, 16
        %v4282 = vrot.slane %v4280, 5
        %v4283 = vor.u32 %v4279, %v4282
        %v4284 = vrot.slane %v4283, 4
        %v4286 = vshll.u32 %v4083, 16
        %v4288 = vrot.slane %v4286, 5
        %v4289 = vsel %vm316, %v4284, %v4288
        %v4290 = vshrl.u32 %v4083, 16
        %v4292 = vrot.slane %v4290, 4
        %v4293 = vor.u32 %v4292, %v4288
        %v4294 = vrot.slane %v4293, 4
        %v4296 = vshll.u32 %v4107, 16
        %v4298 = vrot.slane %v4296, 5
        %v4299 = vsel %vm316, %v4294, %v4298
        %s4300 = scalar_lea.vmem [#allocation3], 64
        %v4301 = vld [vmem:[%s4300] sm:$0xf]
        %v4302 = vld [vmem:[%s4300 + $0x4] sm:$0xf]
        %v4303 = vld [vmem:[%s4300 + $0x8] sm:$0xf]
        %v4304 = vld [vmem:[%s4300 + $0xc] sm:$0xf]
        %v4305 = vld [vmem:[%s4300 + $0x10] sm:$0xf]
        %v4306 = vld [vmem:[%s4300 + $0x14] sm:$0xf]
        %v4307 = vld [vmem:[%s4300 + $0x18] sm:$0xf]
        %v4308 = vld [vmem:[%s4300 + $0x1c] sm:$0xf]
        %v4309 = vld [vmem:[%s4300 + $0x20] sm:$0xf]
        %v4310 = vld [vmem:[%s4300 + $0x24] sm:$0xf]
        %v4311 = vld [vmem:[%s4300 + $0x28] sm:$0xf]
        %v4312 = vld [vmem:[%s4300 + $0x2c] sm:$0xf]
        %v4313 = vld [vmem:[%s4300 + $0x30] sm:$0xf]
        %v4314 = vld [vmem:[%s4300 + $0x34] sm:$0xf]
        %v4315 = vld [vmem:[%s4300 + $0x38] sm:$0xf]
        %v4316 = vld [vmem:[%s4300 + $0x3c] sm:$0xf]
        %v4317 = vunpack.c.l.b16 %v4121
        %v4318 = vunpack.c.l.b16 %v4131
        %v4319 = vunpack.c.l.b16 %v4145
        %v4320 = vunpack.c.l.b16 %v4155
        %v4321 = vunpack.c.l.b16 %v4169
        %v4322 = vunpack.c.l.b16 %v4179
        %v4323 = vunpack.c.l.b16 %v4193
        %v4324 = vunpack.c.l.b16 %v4203
        %v4325 = vunpack.c.l.b16 %v4217
        %v4326 = vunpack.c.l.b16 %v4227
        %v4327 = vunpack.c.l.b16 %v4241
        %v4328 = vunpack.c.l.b16 %v4251
        %v4329 = vunpack.c.l.b16 %v4265
        %v4330 = vunpack.c.l.b16 %v4275
        %v4331 = vunpack.c.l.b16 %v4289
        %v4332 = vunpack.c.l.b16 %v4299
        %v4333 = vpack.c.b16 %v4318, %v4317
        %v4334 = vpack.c.b16 %v4320, %v4319
        %v4335 = vpack.c.b16 %v4322, %v4321
        %v4336 = vpack.c.b16 %v4324, %v4323
        %v4337 = vpack.c.b16 %v4326, %v4325
        %v4338 = vpack.c.b16 %v4328, %v4327
        %v4339 = vpack.c.b16 %v4330, %v4329
        %v4340 = vpack.c.b16 %v4332, %v4331
        %v4365 = vunpack.c.l.b16 %v4301
        %v4366 = vunpack.c.l.b16 %v4302
        %v4367 = vunpack.c.l.b16 %v4303
        %v4368 = vunpack.c.l.b16 %v4304
        %v4369 = vunpack.c.l.b16 %v4305
        %v4370 = vunpack.c.l.b16 %v4306
        %v4371 = vunpack.c.l.b16 %v4307
        %v4372 = vunpack.c.l.b16 %v4308
        %v4373 = vunpack.c.l.b16 %v4309
        %v4374 = vunpack.c.l.b16 %v4310
        %v4375 = vunpack.c.l.b16 %v4311
        %v4376 = vunpack.c.l.b16 %v4312
        %v4377 = vunpack.c.l.b16 %v4313
        %v4378 = vunpack.c.l.b16 %v4314
        %v4379 = vunpack.c.l.b16 %v4315
        %v4380 = vunpack.c.l.b16 %v4316
        %v4381 = vpack.c.b16 %v4366, %v4365
        %v4382 = vpack.c.b16 %v4368, %v4367
        %v4383 = vpack.c.b16 %v4370, %v4369
        %v4384 = vpack.c.b16 %v4372, %v4371
        %v4385 = vpack.c.b16 %v4374, %v4373
        %v4386 = vpack.c.b16 %v4376, %v4375
        %v4387 = vpack.c.b16 %v4378, %v4377
        %v4388 = vpack.c.b16 %v4380, %v4379
        %4397 = vmatprep.subr.bf16.mxu0 0
        %4398 = vmatpush1.bf16.msra.mxu0 %v4381
        %4399 = vmatprep.subr.bf16.mxu0 0
        %4400 = vmatpush1.bf16.msra.mxu0 %v4382
        %4401 = vmatprep.subr.bf16.mxu0 0
        %4402 = vmatpush1.bf16.msra.mxu0 %v4383
        %4403 = vmatprep.subr.bf16.mxu0 0
        %4404 = vmatpush1.bf16.msra.mxu0 %v4384
        %4405 = vmatprep.subr.bf16.mxu0 0
        %4406 = vmatpush1.bf16.msra.mxu0 %v4385
        %4407 = vmatprep.subr.bf16.mxu0 0
        %4408 = vmatpush1.bf16.msra.mxu0 %v4386
        %4409 = vmatprep.subr.bf16.mxu0 0
        %4410 = vmatpush1.bf16.msra.mxu0 %v4387
        %4411 = vmatprep.subr.bf16.mxu0 0
        %4412 = vmatpush1.bf16.msra.mxu0 %v4388
        %4413 = vmatprep.subr.bf16.mxu0 0
        %4414 = vmatpush1.bf16.msra.mxu0 0
        %4415 = vmatprep.subr.bf16.mxu0 0
        %4416 = vmatpush1.bf16.msra.mxu0 0
        %4417 = vmatprep.subr.bf16.mxu0 0
        %4418 = vmatpush1.bf16.msra.mxu0 0
        %4419 = vmatprep.subr.bf16.mxu0 0
        %4420 = vmatpush1.bf16.msra.mxu0 0
        %4421 = vmatprep.subr.bf16.mxu0 0
        %4422 = vmatpush1.bf16.msra.mxu0 0
        %4423 = vmatprep.subr.bf16.mxu0 0
        %4424 = vmatpush1.bf16.msra.mxu0 0
        %4425 = vmatprep.subr.bf16.mxu0 0
        %4426 = vmatpush1.bf16.msra.mxu0 0
        %4427 = vmatprep.subr.bf16.mxu0 0
        %4428 = vmatpush1.bf16.msra.mxu0 0
        %4429 = vmatprep.mubr.bf16.mxu0 0
        %4430 = vmatmul.mubr.bf16.gmra.mrb[0].mxu0 %v4333
        %v4431 = vpop.f32.mrb[0].mxu0
        %v4432 = vadd.f32 0.0, %v4431
        %v4433 = vpop.f32.mrb[0].mxu0
        %v4434 = vpop.f32.mrb[0].mxu0
        %v4435 = vadd.f32 0.0, %v4434
        %v4436 = vpop.f32.mrb[0].mxu0
        %4437 = vmatprep.mubr.bf16.mxu0 0
        %4438 = vmatmul.mubr.bf16.gmra.mrb[0].mxu0 %v4334
        %v4439 = vpop.f32.mrb[0].mxu0
        %v4440 = vadd.f32 0.0, %v4439
        %v4441 = vpop.f32.mrb[0].mxu0
        %v4442 = vpop.f32.mrb[0].mxu0
        %v4443 = vadd.f32 0.0, %v4442
        %v4444 = vpop.f32.mrb[0].mxu0
        %4445 = vmatprep.mubr.bf16.mxu0 0
        %4446 = vmatmul.mubr.bf16.gmra.mrb[0].mxu0 %v4335
        %v4447 = vpop.f32.mrb[0].mxu0
        %v4448 = vadd.f32 0.0, %v4447
        %v4449 = vpop.f32.mrb[0].mxu0
        %v4450 = vpop.f32.mrb[0].mxu0
        %v4451 = vadd.f32 0.0, %v4450
        %v4452 = vpop.f32.mrb[0].mxu0
        %4453 = vmatprep.mubr.bf16.mxu0 0
        %4454 = vmatmul.mubr.bf16.gmra.mrb[0].mxu0 %v4336
        %v4455 = vpop.f32.mrb[0].mxu0
        %v4456 = vadd.f32 0.0, %v4455
        %v4457 = vpop.f32.mrb[0].mxu0
        %v4458 = vpop.f32.mrb[0].mxu0
        %v4459 = vadd.f32 0.0, %v4458
        %v4460 = vpop.f32.mrb[0].mxu0
        %4461 = vmatprep.mubr.bf16.mxu0 0
        %4462 = vmatmul.mubr.bf16.gmra.mrb[0].mxu0 %v4337
        %v4463 = vpop.f32.mrb[0].mxu0
        %v4464 = vadd.f32 0.0, %v4463
        %v4465 = vpop.f32.mrb[0].mxu0
        %v4466 = vpop.f32.mrb[0].mxu0
        %v4467 = vadd.f32 0.0, %v4466
        %v4468 = vpop.f32.mrb[0].mxu0
        %4469 = vmatprep.mubr.bf16.mxu0 0
        %4470 = vmatmul.mubr.bf16.gmra.mrb[0].mxu0 %v4338
        %v4471 = vpop.f32.mrb[0].mxu0
        %v4472 = vadd.f32 0.0, %v4471
        %v4473 = vpop.f32.mrb[0].mxu0
        %v4474 = vpop.f32.mrb[0].mxu0
        %v4475 = vadd.f32 0.0, %v4474
        %v4476 = vpop.f32.mrb[0].mxu0
        %4477 = vmatprep.mubr.bf16.mxu0 0
        %4478 = vmatmul.mubr.bf16.gmra.mrb[0].mxu0 %v4339
        %v4479 = vpop.f32.mrb[0].mxu0
        %v4480 = vadd.f32 0.0, %v4479
        %v4481 = vpop.f32.mrb[0].mxu0
        %v4482 = vpop.f32.mrb[0].mxu0
        %v4483 = vadd.f32 0.0, %v4482
        %v4484 = vpop.f32.mrb[0].mxu0
        %4485 = vmatprep.mubr.bf16.mxu0 0
        %4486 = vmatmul.mubr.bf16.gmra.mrb[0].mxu0 %v4340
        %v4487 = vpop.f32.mrb[0].mxu0
        %v4488 = vadd.f32 0.0, %v4487
        %v4489 = vpop.f32.mrb[0].mxu0
        %v4490 = vpop.f32.mrb[0].mxu0
        %v4491 = vadd.f32 0.0, %v4490
        %v4492 = vpop.f32.mrb[0].mxu0
        %4493 = vdwg.mxu0
        %v4510 = vunpack.c.l.b16 %v4068
        %v4511 = vunpack.c.l.b16 %v4069
        %v4512 = vunpack.c.l.b16 %v4070
        %v4513 = vunpack.c.l.b16 %v4071
        %v4514 = vunpack.c.l.b16 %v4072
        %v4515 = vunpack.c.l.b16 %v4073
        %v4516 = vunpack.c.l.b16 %v4074
        %v4517 = vunpack.c.l.b16 %v4075
        %v4518 = vunpack.c.l.b16 %v4076
        %v4519 = vunpack.c.l.b16 %v4077
        %v4520 = vunpack.c.l.b16 %v4078
        %v4521 = vunpack.c.l.b16 %v4079
        %v4522 = vunpack.c.l.b16 %v4080
        %v4523 = vunpack.c.l.b16 %v4081
        %v4524 = vunpack.c.l.b16 %v4082
        %v4525 = vunpack.c.l.b16 %v4083
        %v4526 = vpack.c.b16 %v4511, %v4510
        %v4527 = vpack.c.b16 %v4513, %v4512
        %v4528 = vpack.c.b16 %v4515, %v4514
        %v4529 = vpack.c.b16 %v4517, %v4516
        %v4530 = vpack.c.b16 %v4519, %v4518
        %v4531 = vpack.c.b16 %v4521, %v4520
        %v4532 = vpack.c.b16 %v4523, %v4522
        %v4533 = vpack.c.b16 %v4525, %v4524
        %v4558 = vunpack.c.l.b16 %v4084
        %v4559 = vunpack.c.l.b16 %v4085
        %v4560 = vunpack.c.l.b16 %v4086
        %v4561 = vunpack.c.l.b16 %v4087
        %v4562 = vunpack.c.l.b16 %v4088
        %v4563 = vunpack.c.l.b16 %v4089
        %v4564 = vunpack.c.l.b16 %v4090
        %v4565 = vunpack.c.l.b16 %v4091
        %v4566 = vunpack.c.l.b16 %v4092
        %v4567 = vunpack.c.l.b16 %v4093
        %v4568 = vunpack.c.l.b16 %v4094
        %v4569 = vunpack.c.l.b16 %v4095
        %v4570 = vunpack.c.l.b16 %v4096
        %v4571 = vunpack.c.l.b16 %v4097
        %v4572 = vunpack.c.l.b16 %v4098
        %v4573 = vunpack.c.l.b16 %v4099
        %v4574 = vpack.c.b16 %v4559, %v4558
        %v4575 = vpack.c.b16 %v4561, %v4560
        %v4576 = vpack.c.b16 %v4563, %v4562
        %v4577 = vpack.c.b16 %v4565, %v4564
        %v4578 = vpack.c.b16 %v4567, %v4566
        %v4579 = vpack.c.b16 %v4569, %v4568
        %v4580 = vpack.c.b16 %v4571, %v4570
        %v4581 = vpack.c.b16 %v4573, %v4572
        %4590 = vmatprep.subr.bf16.mxu0 0
        %4591 = vmatpush1.bf16.msra.mxu0 %v4574
        %4592 = vmatprep.subr.bf16.mxu0 0
        %4593 = vmatpush1.bf16.msra.mxu0 %v4575
        %4594 = vmatprep.subr.bf16.mxu0 0
        %4595 = vmatpush1.bf16.msra.mxu0 %v4576
        %4596 = vmatprep.subr.bf16.mxu0 0
        %4597 = vmatpush1.bf16.msra.mxu0 %v4577
        %4598 = vmatprep.subr.bf16.mxu0 0
        %4599 = vmatpush1.bf16.msra.mxu0 %v4578
        %4600 = vmatprep.subr.bf16.mxu0 0
        %4601 = vmatpush1.bf16.msra.mxu0 %v4579
        %4602 = vmatprep.subr.bf16.mxu0 0
        %4603 = vmatpush1.bf16.msra.mxu0 %v4580
        %4604 = vmatprep.subr.bf16.mxu0 0
        %4605 = vmatpush1.bf16.msra.mxu0 %v4581
        %4606 = vmatprep.subr.bf16.mxu0 0
        %4607 = vmatpush1.bf16.msra.mxu0 0
        %4608 = vmatprep.subr.bf16.mxu0 0
        %4609 = vmatpush1.bf16.msra.mxu0 0
        %4610 = vmatprep.subr.bf16.mxu0 0
        %4611 = vmatpush1.bf16.msra.mxu0 0
        %4612 = vmatprep.subr.bf16.mxu0 0
        %4613 = vmatpush1.bf16.msra.mxu0 0
        %4614 = vmatprep.subr.bf16.mxu0 0
        %4615 = vmatpush1.bf16.msra.mxu0 0
        %4616 = vmatprep.subr.bf16.mxu0 0
        %4617 = vmatpush1.bf16.msra.mxu0 0
        %4618 = vmatprep.subr.bf16.mxu0 0
        %4619 = vmatpush1.bf16.msra.mxu0 0
        %4620 = vmatprep.subr.bf16.mxu0 0
        %4621 = vmatpush1.bf16.msra.mxu0 0
        %4622 = vmatprep.mubr.bf16.mxu0 0
        %4623 = vmatmul.mubr.bf16.gmra.mrb[0].mxu0 %v4526
        %v4624 = vpop.f32.mrb[0].mxu0
        %v4625 = vadd.f32 %v4432, %v4624
        %v4626 = vpop.f32.mrb[0].mxu0
        %v4627 = vpop.f32.mrb[0].mxu0
        %v4628 = vadd.f32 %v4435, %v4627
        %v4629 = vpop.f32.mrb[0].mxu0
        %4630 = vmatprep.mubr.bf16.mxu0 0
        %4631 = vmatmul.mubr.bf16.gmra.mrb[0].mxu0 %v4527
        %v4632 = vpop.f32.mrb[0].mxu0
        %v4633 = vadd.f32 %v4440, %v4632
        %v4634 = vpop.f32.mrb[0].mxu0
        %v4635 = vpop.f32.mrb[0].mxu0
        %v4636 = vadd.f32 %v4443, %v4635
        %v4637 = vpop.f32.mrb[0].mxu0
        %4638 = vmatprep.mubr.bf16.mxu0 0
        %4639 = vmatmul.mubr.bf16.gmra.mrb[0].mxu0 %v4528
        %v4640 = vpop.f32.mrb[0].mxu0
        %v4641 = vadd.f32 %v4448, %v4640
        %v4642 = vpop.f32.mrb[0].mxu0
        %v4643 = vpop.f32.mrb[0].mxu0
        %v4644 = vadd.f32 %v4451, %v4643
        %v4645 = vpop.f32.mrb[0].mxu0
        %4646 = vmatprep.mubr.bf16.mxu0 0
        %4647 = vmatmul.mubr.bf16.gmra.mrb[0].mxu0 %v4529
        %v4648 = vpop.f32.mrb[0].mxu0
        %v4649 = vadd.f32 %v4456, %v4648
        %v4650 = vpop.f32.mrb[0].mxu0
        %v4651 = vpop.f32.mrb[0].mxu0
        %v4652 = vadd.f32 %v4459, %v4651
        %v4653 = vpop.f32.mrb[0].mxu0
        %4654 = vmatprep.mubr.bf16.mxu0 0
        %4655 = vmatmul.mubr.bf16.gmra.mrb[0].mxu0 %v4530
        %v4656 = vpop.f32.mrb[0].mxu0
        %v4657 = vadd.f32 %v4464, %v4656
        %v4658 = vpop.f32.mrb[0].mxu0
        %v4659 = vpop.f32.mrb[0].mxu0
        %v4660 = vadd.f32 %v4467, %v4659
        %v4661 = vpop.f32.mrb[0].mxu0
        %4662 = vmatprep.mubr.bf16.mxu0 0
        %4663 = vmatmul.mubr.bf16.gmra.mrb[0].mxu0 %v4531
        %v4664 = vpop.f32.mrb[0].mxu0
        %v4665 = vadd.f32 %v4472, %v4664
        %v4666 = vpop.f32.mrb[0].mxu0
        %v4667 = vpop.f32.mrb[0].mxu0
        %v4668 = vadd.f32 %v4475, %v4667
        %v4669 = vpop.f32.mrb[0].mxu0
        %4670 = vmatprep.mubr.bf16.mxu0 0
        %4671 = vmatmul.mubr.bf16.gmra.mrb[0].mxu0 %v4532
        %v4672 = vpop.f32.mrb[0].mxu0
        %v4673 = vadd.f32 %v4480, %v4672
        %v4674 = vpop.f32.mrb[0].mxu0
        %v4675 = vpop.f32.mrb[0].mxu0
        %v4676 = vadd.f32 %v4483, %v4675
        %v4677 = vpop.f32.mrb[0].mxu0
        %4678 = vmatprep.mubr.bf16.mxu0 0
        %4679 = vmatmul.mubr.bf16.gmra.mrb[0].mxu0 %v4533
        %v4680 = vpop.f32.mrb[0].mxu0
        %v4681 = vadd.f32 %v4488, %v4680
        %v4682 = vpop.f32.mrb[0].mxu0
        %v4683 = vpop.f32.mrb[0].mxu0
        %v4684 = vadd.f32 %v4491, %v4683
        %v4685 = vpop.f32.mrb[0].mxu0
        %4686 = vdwg.mxu0
        %v4687 = vld [vmem:[#allocation2] sm:$0xe]
        %v4688 = vld [vmem:[#allocation2 + $0xc] sm:$0xe]
        %v4689 = vld [vmem:[#allocation2 + $0x18] sm:$0xe]
        %v4690 = vld [vmem:[#allocation2 + $0x24] sm:$0xe]
        %v4691 = vld [vmem:[#allocation2 + $0x30] sm:$0xe]
        %v4692 = vld [vmem:[#allocation2 + $0x3c] sm:$0xe]
        %v4693 = vld [vmem:[#allocation2 + $0x48] sm:$0xe]
        %v4694 = vld [vmem:[#allocation2 + $0x54] sm:$0xe]
        %v4711 = vrot.slane %v4687, 5
        %v4712 = vrot.slane %v4711, 4
        %v4713 = vrot.slane %v4069, 5
        %v4714 = vsel %vm1028, %v4712, %v4713
        %v4715 = vrot.slane %v4713, 4
        %v4716 = vrot.slane %v4100, 5
        %v4717 = vsel %vm1028, %v4715, %v4716
        %v4718 = vrot.slane %v4688, 5
        %v4719 = vrot.slane %v4718, 4
        %v4720 = vrot.slane %v4071, 5
        %v4721 = vsel %vm1028, %v4719, %v4720
        %v4722 = vrot.slane %v4720, 4
        %v4723 = vrot.slane %v4101, 5
        %v4724 = vsel %vm1028, %v4722, %v4723
        %v4725 = vrot.slane %v4689, 5
        %v4726 = vrot.slane %v4725, 4
        %v4727 = vrot.slane %v4073, 5
        %v4728 = vsel %vm1028, %v4726, %v4727
        %v4729 = vrot.slane %v4727, 4
        %v4730 = vrot.slane %v4102, 5
        %v4731 = vsel %vm1028, %v4729, %v4730
        %v4732 = vrot.slane %v4690, 5
        %v4733 = vrot.slane %v4732, 4
        %v4734 = vrot.slane %v4075, 5
        %v4735 = vsel %vm1028, %v4733, %v4734
        %v4736 = vrot.slane %v4734, 4
        %v4737 = vrot.slane %v4103, 5
        %v4738 = vsel %vm1028, %v4736, %v4737
        %v4739 = vrot.slane %v4691, 5
        %v4740 = vrot.slane %v4739, 4
        %v4741 = vrot.slane %v4077, 5
        %v4742 = vsel %vm1028, %v4740, %v4741
        %v4743 = vrot.slane %v4741, 4
        %v4744 = vrot.slane %v4104, 5
        %v4745 = vsel %vm1028, %v4743, %v4744
        %v4746 = vrot.slane %v4692, 5
        %v4747 = vrot.slane %v4746, 4
        %v4748 = vrot.slane %v4079, 5
        %v4749 = vsel %vm1028, %v4747, %v4748
        %v4750 = vrot.slane %v4748, 4
        %v4751 = vrot.slane %v4105, 5
        %v4752 = vsel %vm1028, %v4750, %v4751
        %v4753 = vrot.slane %v4693, 5
        %v4754 = vrot.slane %v4753, 4
        %v4755 = vrot.slane %v4081, 5
        %v4756 = vsel %vm1028, %v4754, %v4755
        %v4757 = vrot.slane %v4755, 4
        %v4758 = vrot.slane %v4106, 5
        %v4759 = vsel %vm1028, %v4757, %v4758
        %v4760 = vrot.slane %v4694, 5
        %v4761 = vrot.slane %v4760, 4
        %v4762 = vrot.slane %v4083, 5
        %v4763 = vsel %vm1028, %v4761, %v4762
        %v4764 = vrot.slane %v4762, 4
        %v4765 = vrot.slane %v4107, 5
        %v4766 = vsel %vm1028, %v4764, %v4765
        %s4767 = scalar_lea.vmem [#allocation3], 128
        %v4768 = vld [vmem:[%s4767] sm:$0xf]
        %v4769 = vld [vmem:[%s4767 + $0x4] sm:$0xf]
        %v4770 = vld [vmem:[%s4767 + $0x8] sm:$0xf]
        %v4771 = vld [vmem:[%s4767 + $0xc] sm:$0xf]
        %v4772 = vld [vmem:[%s4767 + $0x10] sm:$0xf]
        %v4773 = vld [vmem:[%s4767 + $0x14] sm:$0xf]
        %v4774 = vld [vmem:[%s4767 + $0x18] sm:$0xf]
        %v4775 = vld [vmem:[%s4767 + $0x1c] sm:$0xf]
        %v4776 = vld [vmem:[%s4767 + $0x20] sm:$0xf]
        %v4777 = vld [vmem:[%s4767 + $0x24] sm:$0xf]
        %v4778 = vld [vmem:[%s4767 + $0x28] sm:$0xf]
        %v4779 = vld [vmem:[%s4767 + $0x2c] sm:$0xf]
        %v4780 = vld [vmem:[%s4767 + $0x30] sm:$0xf]
        %v4781 = vld [vmem:[%s4767 + $0x34] sm:$0xf]
        %v4782 = vld [vmem:[%s4767 + $0x38] sm:$0xf]
        %v4783 = vld [vmem:[%s4767 + $0x3c] sm:$0xf]
        %v4784 = vunpack.c.l.b16 %v4714
        %v4785 = vunpack.c.l.b16 %v4717
        %v4786 = vunpack.c.l.b16 %v4721
        %v4787 = vunpack.c.l.b16 %v4724
        %v4788 = vunpack.c.l.b16 %v4728
        %v4789 = vunpack.c.l.b16 %v4731
        %v4790 = vunpack.c.l.b16 %v4735
        %v4791 = vunpack.c.l.b16 %v4738
        %v4792 = vunpack.c.l.b16 %v4742
        %v4793 = vunpack.c.l.b16 %v4745
        %v4794 = vunpack.c.l.b16 %v4749
        %v4795 = vunpack.c.l.b16 %v4752
        %v4796 = vunpack.c.l.b16 %v4756
        %v4797 = vunpack.c.l.b16 %v4759
        %v4798 = vunpack.c.l.b16 %v4763
        %v4799 = vunpack.c.l.b16 %v4766
        %v4800 = vpack.c.b16 %v4785, %v4784
        %v4801 = vpack.c.b16 %v4787, %v4786
        %v4802 = vpack.c.b16 %v4789, %v4788
        %v4803 = vpack.c.b16 %v4791, %v4790
        %v4804 = vpack.c.b16 %v4793, %v4792
        %v4805 = vpack.c.b16 %v4795, %v4794
        %v4806 = vpack.c.b16 %v4797, %v4796
        %v4807 = vpack.c.b16 %v4799, %v4798
        %v4832 = vunpack.c.l.b16 %v4768
        %v4833 = vunpack.c.l.b16 %v4769
        %v4834 = vunpack.c.l.b16 %v4770
        %v4835 = vunpack.c.l.b16 %v4771
        %v4836 = vunpack.c.l.b16 %v4772
        %v4837 = vunpack.c.l.b16 %v4773
        %v4838 = vunpack.c.l.b16 %v4774
        %v4839 = vunpack.c.l.b16 %v4775
        %v4840 = vunpack.c.l.b16 %v4776
        %v4841 = vunpack.c.l.b16 %v4777
        %v4842 = vunpack.c.l.b16 %v4778
        %v4843 = vunpack.c.l.b16 %v4779
        %v4844 = vunpack.c.l.b16 %v4780
        %v4845 = vunpack.c.l.b16 %v4781
        %v4846 = vunpack.c.l.b16 %v4782
        %v4847 = vunpack.c.l.b16 %v4783
        %v4848 = vpack.c.b16 %v4833, %v4832
        %v4849 = vpack.c.b16 %v4835, %v4834
        %v4850 = vpack.c.b16 %v4837, %v4836
        %v4851 = vpack.c.b16 %v4839, %v4838
        %v4852 = vpack.c.b16 %v4841, %v4840
        %v4853 = vpack.c.b16 %v4843, %v4842
        %v4854 = vpack.c.b16 %v4845, %v4844
        %v4855 = vpack.c.b16 %v4847, %v4846
        %4864 = vmatprep.subr.bf16.mxu0 0
        %4865 = vmatpush1.bf16.msra.mxu0 %v4848
        %4866 = vmatprep.subr.bf16.mxu0 0
        %4867 = vmatpush1.bf16.msra.mxu0 %v4849
        %4868 = vmatprep.subr.bf16.mxu0 0
        %4869 = vmatpush1.bf16.msra.mxu0 %v4850
        %4870 = vmatprep.subr.bf16.mxu0 0
        %4871 = vmatpush1.bf16.msra.mxu0 %v4851
        %4872 = vmatprep.subr.bf16.mxu0 0
        %4873 = vmatpush1.bf16.msra.mxu0 %v4852
        %4874 = vmatprep.subr.bf16.mxu0 0
        %4875 = vmatpush1.bf16.msra.mxu0 %v4853
        %4876 = vmatprep.subr.bf16.mxu0 0
        %4877 = vmatpush1.bf16.msra.mxu0 %v4854
        %4878 = vmatprep.subr.bf16.mxu0 0
        %4879 = vmatpush1.bf16.msra.mxu0 %v4855
        %4880 = vmatprep.subr.bf16.mxu0 0
        %4881 = vmatpush1.bf16.msra.mxu0 0
        %4882 = vmatprep.subr.bf16.mxu0 0
        %4883 = vmatpush1.bf16.msra.mxu0 0
        %4884 = vmatprep.subr.bf16.mxu0 0
        %4885 = vmatpush1.bf16.msra.mxu0 0
        %4886 = vmatprep.subr.bf16.mxu0 0
        %4887 = vmatpush1.bf16.msra.mxu0 0
        %4888 = vmatprep.subr.bf16.mxu0 0
        %4889 = vmatpush1.bf16.msra.mxu0 0
        %4890 = vmatprep.subr.bf16.mxu0 0
        %4891 = vmatpush1.bf16.msra.mxu0 0
        %4892 = vmatprep.subr.bf16.mxu0 0
        %4893 = vmatpush1.bf16.msra.mxu0 0
        %4894 = vmatprep.subr.bf16.mxu0 0
        %4895 = vmatpush1.bf16.msra.mxu0 0
        %4896 = vmatprep.mubr.bf16.mxu0 0
        %4897 = vmatmul.mubr.bf16.gmra.mrb[0].mxu0 %v4800
        %v4898 = vpop.f32.mrb[0].mxu0
        %v4899 = vadd.f32 0.0, %v4898
        %v4900 = vpop.f32.mrb[0].mxu0
        %v4901 = vpop.f32.mrb[0].mxu0
        %v4902 = vadd.f32 0.0, %v4901
        %v4903 = vpop.f32.mrb[0].mxu0
        %4904 = vmatprep.mubr.bf16.mxu0 0
        %4905 = vmatmul.mubr.bf16.gmra.mrb[0].mxu0 %v4801
        %v4906 = vpop.f32.mrb[0].mxu0
        %v4907 = vadd.f32 0.0, %v4906
        %v4908 = vpop.f32.mrb[0].mxu0
        %v4909 = vpop.f32.mrb[0].mxu0
        %v4910 = vadd.f32 0.0, %v4909
        %v4911 = vpop.f32.mrb[0].mxu0
        %4912 = vmatprep.mubr.bf16.mxu0 0
        %4913 = vmatmul.mubr.bf16.gmra.mrb[0].mxu0 %v4802
        %v4914 = vpop.f32.mrb[0].mxu0
        %v4915 = vadd.f32 0.0, %v4914
        %v4916 = vpop.f32.mrb[0].mxu0
        %v4917 = vpop.f32.mrb[0].mxu0
        %v4918 = vadd.f32 0.0, %v4917
        %v4919 = vpop.f32.mrb[0].mxu0
        %4920 = vmatprep.mubr.bf16.mxu0 0
        %4921 = vmatmul.mubr.bf16.gmra.mrb[0].mxu0 %v4803
        %v4922 = vpop.f32.mrb[0].mxu0
        %v4923 = vadd.f32 0.0, %v4922
        %v4924 = vpop.f32.mrb[0].mxu0
        %v4925 = vpop.f32.mrb[0].mxu0
        %v4926 = vadd.f32 0.0, %v4925
        %v4927 = vpop.f32.mrb[0].mxu0
        %4928 = vmatprep.mubr.bf16.mxu0 0
        %4929 = vmatmul.mubr.bf16.gmra.mrb[0].mxu0 %v4804
        %v4930 = vpop.f32.mrb[0].mxu0
        %v4931 = vadd.f32 0.0, %v4930
        %v4932 = vpop.f32.mrb[0].mxu0
        %v4933 = vpop.f32.mrb[0].mxu0
        %v4934 = vadd.f32 0.0, %v4933
        %v4935 = vpop.f32.mrb[0].mxu0
        %4936 = vmatprep.mubr.bf16.mxu0 0
        %4937 = vmatmul.mubr.bf16.gmra.mrb[0].mxu0 %v4805
        %v4938 = vpop.f32.mrb[0].mxu0
        %v4939 = vadd.f32 0.0, %v4938
        %v4940 = vpop.f32.mrb[0].mxu0
        %v4941 = vpop.f32.mrb[0].mxu0
        %v4942 = vadd.f32 0.0, %v4941
        %v4943 = vpop.f32.mrb[0].mxu0
        %4944 = vmatprep.mubr.bf16.mxu0 0
        %4945 = vmatmul.mubr.bf16.gmra.mrb[0].mxu0 %v4806
        %v4946 = vpop.f32.mrb[0].mxu0
        %v4947 = vadd.f32 0.0, %v4946
        %v4948 = vpop.f32.mrb[0].mxu0
        %v4949 = vpop.f32.mrb[0].mxu0
        %v4950 = vadd.f32 0.0, %v4949
        %v4951 = vpop.f32.mrb[0].mxu0
        %4952 = vmatprep.mubr.bf16.mxu0 0
        %4953 = vmatmul.mubr.bf16.gmra.mrb[0].mxu0 %v4807
        %v4954 = vpop.f32.mrb[0].mxu0
        %v4955 = vadd.f32 0.0, %v4954
        %v4956 = vpop.f32.mrb[0].mxu0
        %v4957 = vpop.f32.mrb[0].mxu0
        %v4958 = vadd.f32 0.0, %v4957
        %v4959 = vpop.f32.mrb[0].mxu0
        %4960 = vdwg.mxu0
        %v4961 = vadd.f32 %v4625, %v4899
        %v4962 = vadd.f32 %v4628, %v4902
        %v4963 = vadd.f32 %v4633, %v4907
        %v4964 = vadd.f32 %v4636, %v4910
        %v4965 = vadd.f32 %v4641, %v4915
        %v4966 = vadd.f32 %v4644, %v4918
        %v4967 = vadd.f32 %v4649, %v4923
        %v4968 = vadd.f32 %v4652, %v4926
        %v4969 = vadd.f32 %v4657, %v4931
        %v4970 = vadd.f32 %v4660, %v4934
        %v4971 = vadd.f32 %v4665, %v4939
        %v4972 = vadd.f32 %v4668, %v4942
        %v4973 = vadd.f32 %v4673, %v4947
        %v4974 = vadd.f32 %v4676, %v4950
        %v4975 = vadd.f32 %v4681, %v4955
        %v4976 = vadd.f32 %v4684, %v4958
        %s4977 = scalar_lea.vmem [#allocation2], 12
        %v4978 = vld [vmem:[%s4977] sm:$0xf]
        %v4979 = vld [vmem:[%s4977 + $0x4] sm:$0xf]
        %v4980 = vld [vmem:[%s4977 + $0xc] sm:$0xf]
        %v4981 = vld [vmem:[%s4977 + $0x10] sm:$0xf]
        %v4982 = vld [vmem:[%s4977 + $0x18] sm:$0xf]
        %v4983 = vld [vmem:[%s4977 + $0x1c] sm:$0xf]
        %v4984 = vld [vmem:[%s4977 + $0x24] sm:$0xf]
        %v4985 = vld [vmem:[%s4977 + $0x28] sm:$0xf]
        %v4986 = vld [vmem:[%s4977 + $0x30] sm:$0xf]
        %v4987 = vld [vmem:[%s4977 + $0x34] sm:$0xf]
        %v4988 = vld [vmem:[%s4977 + $0x3c] sm:$0xf]
        %v4989 = vld [vmem:[%s4977 + $0x40] sm:$0xf]
        %v4990 = vld [vmem:[%s4977 + $0x48] sm:$0xf]
        %v4991 = vld [vmem:[%s4977 + $0x4c] sm:$0xf]
        %v4992 = vld [vmem:[%s4977 + $0x54] sm:$0xf]
        %v4993 = vld [vmem:[%s4977 + $0x58] sm:$0xf]
        %s4994 = scalar_lea.vmem [#allocation3], 192
        %v4995 = vld [vmem:[%s4994] sm:$0xf]
        %v4996 = vld [vmem:[%s4994 + $0x4] sm:$0xf]
        %v4997 = vld [vmem:[%s4994 + $0x8] sm:$0xf]
        %v4998 = vld [vmem:[%s4994 + $0xc] sm:$0xf]
        %v4999 = vld [vmem:[%s4994 + $0x10] sm:$0xf]
        %v5000 = vld [vmem:[%s4994 + $0x14] sm:$0xf]
        %v5001 = vld [vmem:[%s4994 + $0x18] sm:$0xf]
        %v5002 = vld [vmem:[%s4994 + $0x1c] sm:$0xf]
        %v5003 = vld [vmem:[%s4994 + $0x20] sm:$0xf]
        %v5004 = vld [vmem:[%s4994 + $0x24] sm:$0xf]
        %v5005 = vld [vmem:[%s4994 + $0x28] sm:$0xf]
        %v5006 = vld [vmem:[%s4994 + $0x2c] sm:$0xf]
        %v5007 = vld [vmem:[%s4994 + $0x30] sm:$0xf]
        %v5008 = vld [vmem:[%s4994 + $0x34] sm:$0xf]
        %v5009 = vld [vmem:[%s4994 + $0x38] sm:$0xf]
        %v5010 = vld [vmem:[%s4994 + $0x3c] sm:$0xf]
        %v5027 = vunpack.c.l.b16 %v4978
        %v5028 = vunpack.c.l.b16 %v4979
        %v5029 = vunpack.c.l.b16 %v4980
        %v5030 = vunpack.c.l.b16 %v4981
        %v5031 = vunpack.c.l.b16 %v4982
        %v5032 = vunpack.c.l.b16 %v4983
        %v5033 = vunpack.c.l.b16 %v4984
        %v5034 = vunpack.c.l.b16 %v4985
        %v5035 = vunpack.c.l.b16 %v4986
        %v5036 = vunpack.c.l.b16 %v4987
        %v5037 = vunpack.c.l.b16 %v4988
        %v5038 = vunpack.c.l.b16 %v4989
        %v5039 = vunpack.c.l.b16 %v4990
        %v5040 = vunpack.c.l.b16 %v4991
        %v5041 = vunpack.c.l.b16 %v4992
        %v5042 = vunpack.c.l.b16 %v4993
        %v5043 = vpack.c.b16 %v5028, %v5027
        %v5044 = vpack.c.b16 %v5030, %v5029
        %v5045 = vpack.c.b16 %v5032, %v5031
        %v5046 = vpack.c.b16 %v5034, %v5033
        %v5047 = vpack.c.b16 %v5036, %v5035
        %v5048 = vpack.c.b16 %v5038, %v5037
        %v5049 = vpack.c.b16 %v5040, %v5039
        %v5050 = vpack.c.b16 %v5042, %v5041
        %v5075 = vunpack.c.l.b16 %v4995
        %v5076 = vunpack.c.l.b16 %v4996
        %v5077 = vunpack.c.l.b16 %v4997
        %v5078 = vunpack.c.l.b16 %v4998
        %v5079 = vunpack.c.l.b16 %v4999
        %v5080 = vunpack.c.l.b16 %v5000
        %v5081 = vunpack.c.l.b16 %v5001
        %v5082 = vunpack.c.l.b16 %v5002
        %v5083 = vunpack.c.l.b16 %v5003
        %v5084 = vunpack.c.l.b16 %v5004
        %v5085 = vunpack.c.l.b16 %v5005
        %v5086 = vunpack.c.l.b16 %v5006
        %v5087 = vunpack.c.l.b16 %v5007
        %v5088 = vunpack.c.l.b16 %v5008
        %v5089 = vunpack.c.l.b16 %v5009
        %v5090 = vunpack.c.l.b16 %v5010
        %v5091 = vpack.c.b16 %v5076, %v5075
        %v5092 = vpack.c.b16 %v5078, %v5077
        %v5093 = vpack.c.b16 %v5080, %v5079
        %v5094 = vpack.c.b16 %v5082, %v5081
        %v5095 = vpack.c.b16 %v5084, %v5083
        %v5096 = vpack.c.b16 %v5086, %v5085
        %v5097 = vpack.c.b16 %v5088, %v5087
        %v5098 = vpack.c.b16 %v5090, %v5089
        %5107 = vmatprep.subr.bf16.mxu0 0
        %5108 = vmatpush1.bf16.msra.mxu0 %v5091
        %5109 = vmatprep.subr.bf16.mxu0 0
        %5110 = vmatpush1.bf16.msra.mxu0 %v5092
        %5111 = vmatprep.subr.bf16.mxu0 0
        %5112 = vmatpush1.bf16.msra.mxu0 %v5093
        %5113 = vmatprep.subr.bf16.mxu0 0
        %5114 = vmatpush1.bf16.msra.mxu0 %v5094
        %5115 = vmatprep.subr.bf16.mxu0 0
        %5116 = vmatpush1.bf16.msra.mxu0 %v5095
        %5117 = vmatprep.subr.bf16.mxu0 0
        %5118 = vmatpush1.bf16.msra.mxu0 %v5096
        %5119 = vmatprep.subr.bf16.mxu0 0
        %5120 = vmatpush1.bf16.msra.mxu0 %v5097
        %5121 = vmatprep.subr.bf16.mxu0 0
        %5122 = vmatpush1.bf16.msra.mxu0 %v5098
        %5123 = vmatprep.subr.bf16.mxu0 0
        %5124 = vmatpush1.bf16.msra.mxu0 0
        %5125 = vmatprep.subr.bf16.mxu0 0
        %5126 = vmatpush1.bf16.msra.mxu0 0
        %5127 = vmatprep.subr.bf16.mxu0 0
        %5128 = vmatpush1.bf16.msra.mxu0 0
        %5129 = vmatprep.subr.bf16.mxu0 0
        %5130 = vmatpush1.bf16.msra.mxu0 0
        %5131 = vmatprep.subr.bf16.mxu0 0
        %5132 = vmatpush1.bf16.msra.mxu0 0
        %5133 = vmatprep.subr.bf16.mxu0 0
        %5134 = vmatpush1.bf16.msra.mxu0 0
        %5135 = vmatprep.subr.bf16.mxu0 0
        %5136 = vmatpush1.bf16.msra.mxu0 0
        %5137 = vmatprep.subr.bf16.mxu0 0
        %5138 = vmatpush1.bf16.msra.mxu0 0
        %5139 = vmatprep.mubr.bf16.mxu0 0
        %5140 = vmatmul.mubr.bf16.gmra.mrb[0].mxu0 %v5043
        %v5141 = vpop.f32.mrb[0].mxu0
        %v5142 = vadd.f32 0.0, %v5141
        %v5143 = vpop.f32.mrb[0].mxu0
        %v5144 = vpop.f32.mrb[0].mxu0
        %v5145 = vadd.f32 0.0, %v5144
        %v5146 = vpop.f32.mrb[0].mxu0
        %5147 = vmatprep.mubr.bf16.mxu0 0
        %5148 = vmatmul.mubr.bf16.gmra.mrb[0].mxu0 %v5044
        %v5149 = vpop.f32.mrb[0].mxu0
        %v5150 = vadd.f32 0.0, %v5149
        %v5151 = vpop.f32.mrb[0].mxu0
        %v5152 = vpop.f32.mrb[0].mxu0
        %v5153 = vadd.f32 0.0, %v5152
        %v5154 = vpop.f32.mrb[0].mxu0
        %5155 = vmatprep.mubr.bf16.mxu0 0
        %5156 = vmatmul.mubr.bf16.gmra.mrb[0].mxu0 %v5045
        %v5157 = vpop.f32.mrb[0].mxu0
        %v5158 = vadd.f32 0.0, %v5157
        %v5159 = vpop.f32.mrb[0].mxu0
        %v5160 = vpop.f32.mrb[0].mxu0
        %v5161 = vadd.f32 0.0, %v5160
        %v5162 = vpop.f32.mrb[0].mxu0
        %5163 = vmatprep.mubr.bf16.mxu0 0
        %5164 = vmatmul.mubr.bf16.gmra.mrb[0].mxu0 %v5046
        %v5165 = vpop.f32.mrb[0].mxu0
        %v5166 = vadd.f32 0.0, %v5165
        %v5167 = vpop.f32.mrb[0].mxu0
        %v5168 = vpop.f32.mrb[0].mxu0
        %v5169 = vadd.f32 0.0, %v5168
        %v5170 = vpop.f32.mrb[0].mxu0
        %5171 = vmatprep.mubr.bf16.mxu0 0
        %5172 = vmatmul.mubr.bf16.gmra.mrb[0].mxu0 %v5047
        %v5173 = vpop.f32.mrb[0].mxu0
        %v5174 = vadd.f32 0.0, %v5173
        %v5175 = vpop.f32.mrb[0].mxu0
        %v5176 = vpop.f32.mrb[0].mxu0
        %v5177 = vadd.f32 0.0, %v5176
        %v5178 = vpop.f32.mrb[0].mxu0
        %5179 = vmatprep.mubr.bf16.mxu0 0
        %5180 = vmatmul.mubr.bf16.gmra.mrb[0].mxu0 %v5048
        %v5181 = vpop.f32.mrb[0].mxu0
        %v5182 = vadd.f32 0.0, %v5181
        %v5183 = vpop.f32.mrb[0].mxu0
        %v5184 = vpop.f32.mrb[0].mxu0
        %v5185 = vadd.f32 0.0, %v5184
        %v5186 = vpop.f32.mrb[0].mxu0
        %5187 = vmatprep.mubr.bf16.mxu0 0
        %5188 = vmatmul.mubr.bf16.gmra.mrb[0].mxu0 %v5049
        %v5189 = vpop.f32.mrb[0].mxu0
        %v5190 = vadd.f32 0.0, %v5189
        %v5191 = vpop.f32.mrb[0].mxu0
        %v5192 = vpop.f32.mrb[0].mxu0
        %v5193 = vadd.f32 0.0, %v5192
        %v5194 = vpop.f32.mrb[0].mxu0
        %5195 = vmatprep.mubr.bf16.mxu0 0
        %5196 = vmatmul.mubr.bf16.gmra.mrb[0].mxu0 %v5050
        %v5197 = vpop.f32.mrb[0].mxu0
        %v5198 = vadd.f32 0.0, %v5197
        %v5199 = vpop.f32.mrb[0].mxu0
        %v5200 = vpop.f32.mrb[0].mxu0
        %v5201 = vadd.f32 0.0, %v5200
        %v5202 = vpop.f32.mrb[0].mxu0
        %5203 = vdwg.mxu0
        %v5204 = vadd.f32 %v4961, %v5142
        %v5205 = vadd.f32 %v4962, %v5145
        %v5206 = vadd.f32 %v4963, %v5150
        %v5207 = vadd.f32 %v4964, %v5153
        %v5208 = vadd.f32 %v4965, %v5158
        %v5209 = vadd.f32 %v4966, %v5161
        %v5210 = vadd.f32 %v4967, %v5166
        %v5211 = vadd.f32 %v4968, %v5169
        %v5212 = vadd.f32 %v4969, %v5174
        %v5213 = vadd.f32 %v4970, %v5177
        %v5214 = vadd.f32 %v4971, %v5182
        %v5215 = vadd.f32 %v4972, %v5185
        %v5216 = vadd.f32 %v4973, %v5190
        %v5217 = vadd.f32 %v4974, %v5193
        %v5218 = vadd.f32 %v4975, %v5198
        %v5219 = vadd.f32 %v4976, %v5201
        %v5220 = vld [vmem:[%s4977] sm:$0xf]
        %v5221 = vld [vmem:[%s4977 + $0x4] sm:$0xf]
        %v5222 = vld [vmem:[%s4977 + $0x8] sm:$0x1]
        %v5223 = vld [vmem:[%s4977 + $0xc] sm:$0xf]
        %v5224 = vld [vmem:[%s4977 + $0x10] sm:$0xf]
        %v5225 = vld [vmem:[%s4977 + $0x14] sm:$0x1]
        %v5226 = vld [vmem:[%s4977 + $0x18] sm:$0xf]
        %v5227 = vld [vmem:[%s4977 + $0x1c] sm:$0xf]
        %v5228 = vld [vmem:[%s4977 + $0x20] sm:$0x1]
        %v5229 = vld [vmem:[%s4977 + $0x24] sm:$0xf]
        %v5230 = vld [vmem:[%s4977 + $0x28] sm:$0xf]
        %v5231 = vld [vmem:[%s4977 + $0x2c] sm:$0x1]
        %v5232 = vld [vmem:[%s4977 + $0x30] sm:$0xf]
        %v5233 = vld [vmem:[%s4977 + $0x34] sm:$0xf]
        %v5234 = vld [vmem:[%s4977 + $0x38] sm:$0x1]
        %v5235 = vld [vmem:[%s4977 + $0x3c] sm:$0xf]
        %v5236 = vld [vmem:[%s4977 + $0x40] sm:$0xf]
        %v5237 = vld [vmem:[%s4977 + $0x44] sm:$0x1]
        %v5238 = vld [vmem:[%s4977 + $0x48] sm:$0xf]
        %v5239 = vld [vmem:[%s4977 + $0x4c] sm:$0xf]
        %v5240 = vld [vmem:[%s4977 + $0x50] sm:$0x1]
        %v5241 = vld [vmem:[%s4977 + $0x54] sm:$0xf]
        %v5242 = vld [vmem:[%s4977 + $0x58] sm:$0xf]
        %v5243 = vld [vmem:[%s4977 + $0x5c] sm:$0x1]
        %v5245 = vshrl.u32 %v5220, 16
        %v5247 = vrot.slane %v5245, 4
        %v5248 = vshll.u32 %v5220, 16
        %v5250 = vrot.slane %v5248, 5
        %v5251 = vor.u32 %v5247, %v5250
        %v5252 = vrot.slane %v5251, 4
        %v5254 = vshll.u32 %v5221, 16
        %v5256 = vrot.slane %v5254, 5
        %v5257 = vsel %vm316, %v5252, %v5256
        %v5258 = vshrl.u32 %v5221, 16
        %v5260 = vrot.slane %v5258, 4
        %v5261 = vor.u32 %v5260, %v5256
        %v5262 = vrot.slane %v5261, 4
        %v5264 = vshll.u32 %v5222, 16
        %v5266 = vrot.slane %v5264, 5
        %v5267 = vsel %vm316, %v5262, %v5266
        %v5269 = vshrl.u32 %v5223, 16
        %v5271 = vrot.slane %v5269, 4
        %v5272 = vshll.u32 %v5223, 16
        %v5274 = vrot.slane %v5272, 5
        %v5275 = vor.u32 %v5271, %v5274
        %v5276 = vrot.slane %v5275, 4
        %v5278 = vshll.u32 %v5224, 16
        %v5280 = vrot.slane %v5278, 5
        %v5281 = vsel %vm316, %v5276, %v5280
        %v5282 = vshrl.u32 %v5224, 16
        %v5284 = vrot.slane %v5282, 4
        %v5285 = vor.u32 %v5284, %v5280
        %v5286 = vrot.slane %v5285, 4
        %v5288 = vshll.u32 %v5225, 16
        %v5290 = vrot.slane %v5288, 5
        %v5291 = vsel %vm316, %v5286, %v5290
        %v5293 = vshrl.u32 %v5226, 16
        %v5295 = vrot.slane %v5293, 4
        %v5296 = vshll.u32 %v5226, 16
        %v5298 = vrot.slane %v5296, 5
        %v5299 = vor.u32 %v5295, %v5298
        %v5300 = vrot.slane %v5299, 4
        %v5302 = vshll.u32 %v5227, 16
        %v5304 = vrot.slane %v5302, 5
        %v5305 = vsel %vm316, %v5300, %v5304
        %v5306 = vshrl.u32 %v5227, 16
        %v5308 = vrot.slane %v5306, 4
        %v5309 = vor.u32 %v5308, %v5304
        %v5310 = vrot.slane %v5309, 4
        %v5312 = vshll.u32 %v5228, 16
        %v5314 = vrot.slane %v5312, 5
        %v5315 = vsel %vm316, %v5310, %v5314
        %v5317 = vshrl.u32 %v5229, 16
        %v5319 = vrot.slane %v5317, 4
        %v5320 = vshll.u32 %v5229, 16
        %v5322 = vrot.slane %v5320, 5
        %v5323 = vor.u32 %v5319, %v5322
        %v5324 = vrot.slane %v5323, 4
        %v5326 = vshll.u32 %v5230, 16
        %v5328 = vrot.slane %v5326, 5
        %v5329 = vsel %vm316, %v5324, %v5328
        %v5330 = vshrl.u32 %v5230, 16
        %v5332 = vrot.slane %v5330, 4
        %v5333 = vor.u32 %v5332, %v5328
        %v5334 = vrot.slane %v5333, 4
        %v5336 = vshll.u32 %v5231, 16
        %v5338 = vrot.slane %v5336, 5
        %v5339 = vsel %vm316, %v5334, %v5338
        %v5341 = vshrl.u32 %v5232, 16
        %v5343 = vrot.slane %v5341, 4
        %v5344 = vshll.u32 %v5232, 16
        %v5346 = vrot.slane %v5344, 5
        %v5347 = vor.u32 %v5343, %v5346
        %v5348 = vrot.slane %v5347, 4
        %v5350 = vshll.u32 %v5233, 16
        %v5352 = vrot.slane %v5350, 5
        %v5353 = vsel %vm316, %v5348, %v5352
        %v5354 = vshrl.u32 %v5233, 16
        %v5356 = vrot.slane %v5354, 4
        %v5357 = vor.u32 %v5356, %v5352
        %v5358 = vrot.slane %v5357, 4
        %v5360 = vshll.u32 %v5234, 16
        %v5362 = vrot.slane %v5360, 5
        %v5363 = vsel %vm316, %v5358, %v5362
        %v5365 = vshrl.u32 %v5235, 16
        %v5367 = vrot.slane %v5365, 4
        %v5368 = vshll.u32 %v5235, 16
        %v5370 = vrot.slane %v5368, 5
        %v5371 = vor.u32 %v5367, %v5370
        %v5372 = vrot.slane %v5371, 4
        %v5374 = vshll.u32 %v5236, 16
        %v5376 = vrot.slane %v5374, 5
        %v5377 = vsel %vm316, %v5372, %v5376
        %v5378 = vshrl.u32 %v5236, 16
        %v5380 = vrot.slane %v5378, 4
        %v5381 = vor.u32 %v5380, %v5376
        %v5382 = vrot.slane %v5381, 4
        %v5384 = vshll.u32 %v5237, 16
        %v5386 = vrot.slane %v5384, 5
        %v5387 = vsel %vm316, %v5382, %v5386
        %v5389 = vshrl.u32 %v5238, 16
        %v5391 = vrot.slane %v5389, 4
        %v5392 = vshll.u32 %v5238, 16
        %v5394 = vrot.slane %v5392, 5
        %v5395 = vor.u32 %v5391, %v5394
        %v5396 = vrot.slane %v5395, 4
        %v5398 = vshll.u32 %v5239, 16
        %v5400 = vrot.slane %v5398, 5
        %v5401 = vsel %vm316, %v5396, %v5400
        %v5402 = vshrl.u32 %v5239, 16
        %v5404 = vrot.slane %v5402, 4
        %v5405 = vor.u32 %v5404, %v5400
        %v5406 = vrot.slane %v5405, 4
        %v5408 = vshll.u32 %v5240, 16
        %v5410 = vrot.slane %v5408, 5
        %v5411 = vsel %vm316, %v5406, %v5410
        %v5413 = vshrl.u32 %v5241, 16
        %v5415 = vrot.slane %v5413, 4
        %v5416 = vshll.u32 %v5241, 16
        %v5418 = vrot.slane %v5416, 5
        %v5419 = vor.u32 %v5415, %v5418
        %v5420 = vrot.slane %v5419, 4
        %v5422 = vshll.u32 %v5242, 16
        %v5424 = vrot.slane %v5422, 5
        %v5425 = vsel %vm316, %v5420, %v5424
        %v5426 = vshrl.u32 %v5242, 16
        %v5428 = vrot.slane %v5426, 4
        %v5429 = vor.u32 %v5428, %v5424
        %v5430 = vrot.slane %v5429, 4
        %v5432 = vshll.u32 %v5243, 16
        %v5434 = vrot.slane %v5432, 5
        %v5435 = vsel %vm316, %v5430, %v5434
        %s5436 = scalar_lea.vmem [#allocation3], 256
        %v5437 = vld [vmem:[%s5436] sm:$0xf]
        %v5438 = vld [vmem:[%s5436 + $0x4] sm:$0xf]
        %v5439 = vld [vmem:[%s5436 + $0x8] sm:$0xf]
        %v5440 = vld [vmem:[%s5436 + $0xc] sm:$0xf]
        %v5441 = vld [vmem:[%s5436 + $0x10] sm:$0xf]
        %v5442 = vld [vmem:[%s5436 + $0x14] sm:$0xf]
        %v5443 = vld [vmem:[%s5436 + $0x18] sm:$0xf]
        %v5444 = vld [vmem:[%s5436 + $0x1c] sm:$0xf]
        %v5445 = vld [vmem:[%s5436 + $0x20] sm:$0xf]
        %v5446 = vld [vmem:[%s5436 + $0x24] sm:$0xf]
        %v5447 = vld [vmem:[%s5436 + $0x28] sm:$0xf]
        %v5448 = vld [vmem:[%s5436 + $0x2c] sm:$0xf]
        %v5449 = vld [vmem:[%s5436 + $0x30] sm:$0xf]
        %v5450 = vld [vmem:[%s5436 + $0x34] sm:$0xf]
        %v5451 = vld [vmem:[%s5436 + $0x38] sm:$0xf]
        %v5452 = vld [vmem:[%s5436 + $0x3c] sm:$0xf]
        %v5453 = vunpack.c.l.b16 %v5257
        %v5454 = vunpack.c.l.b16 %v5267
        %v5455 = vunpack.c.l.b16 %v5281
        %v5456 = vunpack.c.l.b16 %v5291
        %v5457 = vunpack.c.l.b16 %v5305
        %v5458 = vunpack.c.l.b16 %v5315
        %v5459 = vunpack.c.l.b16 %v5329
        %v5460 = vunpack.c.l.b16 %v5339
        %v5461 = vunpack.c.l.b16 %v5353
        %v5462 = vunpack.c.l.b16 %v5363
        %v5463 = vunpack.c.l.b16 %v5377
        %v5464 = vunpack.c.l.b16 %v5387
        %v5465 = vunpack.c.l.b16 %v5401
        %v5466 = vunpack.c.l.b16 %v5411
        %v5467 = vunpack.c.l.b16 %v5425
        %v5468 = vunpack.c.l.b16 %v5435
        %v5469 = vpack.c.b16 %v5454, %v5453
        %v5470 = vpack.c.b16 %v5456, %v5455
        %v5471 = vpack.c.b16 %v5458, %v5457
        %v5472 = vpack.c.b16 %v5460, %v5459
        %v5473 = vpack.c.b16 %v5462, %v5461
        %v5474 = vpack.c.b16 %v5464, %v5463
        %v5475 = vpack.c.b16 %v5466, %v5465
        %v5476 = vpack.c.b16 %v5468, %v5467
        %v5501 = vunpack.c.l.b16 %v5437
        %v5502 = vunpack.c.l.b16 %v5438
        %v5503 = vunpack.c.l.b16 %v5439
        %v5504 = vunpack.c.l.b16 %v5440
        %v5505 = vunpack.c.l.b16 %v5441
        %v5506 = vunpack.c.l.b16 %v5442
        %v5507 = vunpack.c.l.b16 %v5443
        %v5508 = vunpack.c.l.b16 %v5444
        %v5509 = vunpack.c.l.b16 %v5445
        %v5510 = vunpack.c.l.b16 %v5446
        %v5511 = vunpack.c.l.b16 %v5447
        %v5512 = vunpack.c.l.b16 %v5448
        %v5513 = vunpack.c.l.b16 %v5449
        %v5514 = vunpack.c.l.b16 %v5450
        %v5515 = vunpack.c.l.b16 %v5451
        %v5516 = vunpack.c.l.b16 %v5452
        %v5517 = vpack.c.b16 %v5502, %v5501
        %v5518 = vpack.c.b16 %v5504, %v5503
        %v5519 = vpack.c.b16 %v5506, %v5505
        %v5520 = vpack.c.b16 %v5508, %v5507
        %v5521 = vpack.c.b16 %v5510, %v5509
        %v5522 = vpack.c.b16 %v5512, %v5511
        %v5523 = vpack.c.b16 %v5514, %v5513
        %v5524 = vpack.c.b16 %v5516, %v5515
        %5533 = vmatprep.subr.bf16.mxu0 0
        %5534 = vmatpush1.bf16.msra.mxu0 %v5517
        %5535 = vmatprep.subr.bf16.mxu0 0
        %5536 = vmatpush1.bf16.msra.mxu0 %v5518
        %5537 = vmatprep.subr.bf16.mxu0 0
        %5538 = vmatpush1.bf16.msra.mxu0 %v5519
        %5539 = vmatprep.subr.bf16.mxu0 0
        %5540 = vmatpush1.bf16.msra.mxu0 %v5520
        %5541 = vmatprep.subr.bf16.mxu0 0
        %5542 = vmatpush1.bf16.msra.mxu0 %v5521
        %5543 = vmatprep.subr.bf16.mxu0 0
        %5544 = vmatpush1.bf16.msra.mxu0 %v5522
        %5545 = vmatprep.subr.bf16.mxu0 0
        %5546 = vmatpush1.bf16.msra.mxu0 %v5523
        %5547 = vmatprep.subr.bf16.mxu0 0
        %5548 = vmatpush1.bf16.msra.mxu0 %v5524
        %5549 = vmatprep.subr.bf16.mxu0 0
        %5550 = vmatpush1.bf16.msra.mxu0 0
        %5551 = vmatprep.subr.bf16.mxu0 0
        %5552 = vmatpush1.bf16.msra.mxu0 0
        %5553 = vmatprep.subr.bf16.mxu0 0
        %5554 = vmatpush1.bf16.msra.mxu0 0
        %5555 = vmatprep.subr.bf16.mxu0 0
        %5556 = vmatpush1.bf16.msra.mxu0 0
        %5557 = vmatprep.subr.bf16.mxu0 0
        %5558 = vmatpush1.bf16.msra.mxu0 0
        %5559 = vmatprep.subr.bf16.mxu0 0
        %5560 = vmatpush1.bf16.msra.mxu0 0
        %5561 = vmatprep.subr.bf16.mxu0 0
        %5562 = vmatpush1.bf16.msra.mxu0 0
        %5563 = vmatprep.subr.bf16.mxu0 0
        %5564 = vmatpush1.bf16.msra.mxu0 0
        %5565 = vmatprep.mubr.bf16.mxu0 0
        %5566 = vmatmul.mubr.bf16.gmra.mrb[0].mxu0 %v5469
        %v5567 = vpop.f32.mrb[0].mxu0
        %v5568 = vadd.f32 0.0, %v5567
        %v5569 = vpop.f32.mrb[0].mxu0
        %v5570 = vpop.f32.mrb[0].mxu0
        %v5571 = vadd.f32 0.0, %v5570
        %v5572 = vpop.f32.mrb[0].mxu0
        %5573 = vmatprep.mubr.bf16.mxu0 0
        %5574 = vmatmul.mubr.bf16.gmra.mrb[0].mxu0 %v5470
        %v5575 = vpop.f32.mrb[0].mxu0
        %v5576 = vadd.f32 0.0, %v5575
        %v5577 = vpop.f32.mrb[0].mxu0
        %v5578 = vpop.f32.mrb[0].mxu0
        %v5579 = vadd.f32 0.0, %v5578
        %v5580 = vpop.f32.mrb[0].mxu0
        %5581 = vmatprep.mubr.bf16.mxu0 0
        %5582 = vmatmul.mubr.bf16.gmra.mrb[0].mxu0 %v5471
        %v5583 = vpop.f32.mrb[0].mxu0
        %v5584 = vadd.f32 0.0, %v5583
        %v5585 = vpop.f32.mrb[0].mxu0
        %v5586 = vpop.f32.mrb[0].mxu0
        %v5587 = vadd.f32 0.0, %v5586
        %v5588 = vpop.f32.mrb[0].mxu0
        %5589 = vmatprep.mubr.bf16.mxu0 0
        %5590 = vmatmul.mubr.bf16.gmra.mrb[0].mxu0 %v5472
        %v5591 = vpop.f32.mrb[0].mxu0
        %v5592 = vadd.f32 0.0, %v5591
        %v5593 = vpop.f32.mrb[0].mxu0
        %v5594 = vpop.f32.mrb[0].mxu0
        %v5595 = vadd.f32 0.0, %v5594
        %v5596 = vpop.f32.mrb[0].mxu0
        %5597 = vmatprep.mubr.bf16.mxu0 0
        %5598 = vmatmul.mubr.bf16.gmra.mrb[0].mxu0 %v5473
        %v5599 = vpop.f32.mrb[0].mxu0
        %v5600 = vadd.f32 0.0, %v5599
        %v5601 = vpop.f32.mrb[0].mxu0
        %v5602 = vpop.f32.mrb[0].mxu0
        %v5603 = vadd.f32 0.0, %v5602
        %v5604 = vpop.f32.mrb[0].mxu0
        %5605 = vmatprep.mubr.bf16.mxu0 0
        %5606 = vmatmul.mubr.bf16.gmra.mrb[0].mxu0 %v5474
        %v5607 = vpop.f32.mrb[0].mxu0
        %v5608 = vadd.f32 0.0, %v5607
        %v5609 = vpop.f32.mrb[0].mxu0
        %v5610 = vpop.f32.mrb[0].mxu0
        %v5611 = vadd.f32 0.0, %v5610
        %v5612 = vpop.f32.mrb[0].mxu0
        %5613 = vmatprep.mubr.bf16.mxu0 0
        %5614 = vmatmul.mubr.bf16.gmra.mrb[0].mxu0 %v5475
        %v5615 = vpop.f32.mrb[0].mxu0
        %v5616 = vadd.f32 0.0, %v5615
        %v5617 = vpop.f32.mrb[0].mxu0
        %v5618 = vpop.f32.mrb[0].mxu0
        %v5619 = vadd.f32 0.0, %v5618
        %v5620 = vpop.f32.mrb[0].mxu0
        %5621 = vmatprep.mubr.bf16.mxu0 0
        %5622 = vmatmul.mubr.bf16.gmra.mrb[0].mxu0 %v5476
        %v5623 = vpop.f32.mrb[0].mxu0
        %v5624 = vadd.f32 0.0, %v5623
        %v5625 = vpop.f32.mrb[0].mxu0
        %v5626 = vpop.f32.mrb[0].mxu0
        %v5627 = vadd.f32 0.0, %v5626
        %v5628 = vpop.f32.mrb[0].mxu0
        %5629 = vdwg.mxu0
        %v5630 = vadd.f32 %v5204, %v5568
        %v5631 = vadd.f32 %v5205, %v5571
        %v5632 = vadd.f32 %v5206, %v5576
        %v5633 = vadd.f32 %v5207, %v5579
        %v5634 = vadd.f32 %v5208, %v5584
        %v5635 = vadd.f32 %v5209, %v5587
        %v5636 = vadd.f32 %v5210, %v5592
        %v5637 = vadd.f32 %v5211, %v5595
        %v5638 = vadd.f32 %v5212, %v5600
        %v5639 = vadd.f32 %v5213, %v5603
        %v5640 = vadd.f32 %v5214, %v5608
        %v5641 = vadd.f32 %v5215, %v5611
        %v5642 = vadd.f32 %v5216, %v5616
        %v5643 = vadd.f32 %v5217, %v5619
        %v5644 = vadd.f32 %v5218, %v5624
        %v5645 = vadd.f32 %v5219, %v5627
        %v5646 = vld [vmem:[%s4977] sm:$0xe]
        %v5647 = vld [vmem:[%s4977 + $0xc] sm:$0xe]
        %v5648 = vld [vmem:[%s4977 + $0x18] sm:$0xe]
        %v5649 = vld [vmem:[%s4977 + $0x24] sm:$0xe]
        %v5650 = vld [vmem:[%s4977 + $0x30] sm:$0xe]
        %v5651 = vld [vmem:[%s4977 + $0x3c] sm:$0xe]
        %v5652 = vld [vmem:[%s4977 + $0x48] sm:$0xe]
        %v5653 = vld [vmem:[%s4977 + $0x54] sm:$0xe]
        %v5678 = vrot.slane %v5646, 5
        %v5679 = vrot.slane %v5678, 4
        %v5680 = vrot.slane %v5221, 5
        %v5681 = vsel %vm1028, %v5679, %v5680
        %v5682 = vrot.slane %v5680, 4
        %v5683 = vrot.slane %v5222, 5
        %v5684 = vsel %vm1028, %v5682, %v5683
        %v5685 = vrot.slane %v5647, 5
        %v5686 = vrot.slane %v5685, 4
        %v5687 = vrot.slane %v5224, 5
        %v5688 = vsel %vm1028, %v5686, %v5687
        %v5689 = vrot.slane %v5687, 4
        %v5690 = vrot.slane %v5225, 5
        %v5691 = vsel %vm1028, %v5689, %v5690
        %v5692 = vrot.slane %v5648, 5
        %v5693 = vrot.slane %v5692, 4
        %v5694 = vrot.slane %v5227, 5
        %v5695 = vsel %vm1028, %v5693, %v5694
        %v5696 = vrot.slane %v5694, 4
        %v5697 = vrot.slane %v5228, 5
        %v5698 = vsel %vm1028, %v5696, %v5697
        %v5699 = vrot.slane %v5649, 5
        %v5700 = vrot.slane %v5699, 4
        %v5701 = vrot.slane %v5230, 5
        %v5702 = vsel %vm1028, %v5700, %v5701
        %v5703 = vrot.slane %v5701, 4
        %v5704 = vrot.slane %v5231, 5
        %v5705 = vsel %vm1028, %v5703, %v5704
        %v5706 = vrot.slane %v5650, 5
        %v5707 = vrot.slane %v5706, 4
        %v5708 = vrot.slane %v5233, 5
        %v5709 = vsel %vm1028, %v5707, %v5708
        %v5710 = vrot.slane %v5708, 4
        %v5711 = vrot.slane %v5234, 5
        %v5712 = vsel %vm1028, %v5710, %v5711
        %v5713 = vrot.slane %v5651, 5
        %v5714 = vrot.slane %v5713, 4
        %v5715 = vrot.slane %v5236, 5
        %v5716 = vsel %vm1028, %v5714, %v5715
        %v5717 = vrot.slane %v5715, 4
        %v5718 = vrot.slane %v5237, 5
        %v5719 = vsel %vm1028, %v5717, %v5718
        %v5720 = vrot.slane %v5652, 5
        %v5721 = vrot.slane %v5720, 4
        %v5722 = vrot.slane %v5239, 5
        %v5723 = vsel %vm1028, %v5721, %v5722
        %v5724 = vrot.slane %v5722, 4
        %v5725 = vrot.slane %v5240, 5
        %v5726 = vsel %vm1028, %v5724, %v5725
        %v5727 = vrot.slane %v5653, 5
        %v5728 = vrot.slane %v5727, 4
        %v5729 = vrot.slane %v5242, 5
        %v5730 = vsel %vm1028, %v5728, %v5729
        %v5731 = vrot.slane %v5729, 4
        %v5732 = vrot.slane %v5243, 5
        %v5733 = vsel %vm1028, %v5731, %v5732
        %s5734 = scalar_lea.vmem [#allocation3], 320
        %v5735 = vld [vmem:[%s5734] sm:$0xf]
        %v5736 = vld [vmem:[%s5734 + $0x4] sm:$0xf]
        %v5737 = vld [vmem:[%s5734 + $0x8] sm:$0xf]
        %v5738 = vld [vmem:[%s5734 + $0xc] sm:$0xf]
        %v5739 = vld [vmem:[%s5734 + $0x10] sm:$0xf]
        %v5740 = vld [vmem:[%s5734 + $0x14] sm:$0xf]
        %v5741 = vld [vmem:[%s5734 + $0x18] sm:$0xf]
        %v5742 = vld [vmem:[%s5734 + $0x1c] sm:$0xf]
        %v5743 = vld [vmem:[%s5734 + $0x20] sm:$0xf]
        %v5744 = vld [vmem:[%s5734 + $0x24] sm:$0xf]
        %v5745 = vld [vmem:[%s5734 + $0x28] sm:$0xf]
        %v5746 = vld [vmem:[%s5734 + $0x2c] sm:$0xf]
        %v5747 = vld [vmem:[%s5734 + $0x30] sm:$0xf]
        %v5748 = vld [vmem:[%s5734 + $0x34] sm:$0xf]
        %v5749 = vld [vmem:[%s5734 + $0x38] sm:$0xf]
        %v5750 = vld [vmem:[%s5734 + $0x3c] sm:$0xf]
        %v5751 = vunpack.c.l.b16 %v5681
        %v5752 = vunpack.c.l.b16 %v5684
        %v5753 = vunpack.c.l.b16 %v5688
        %v5754 = vunpack.c.l.b16 %v5691
        %v5755 = vunpack.c.l.b16 %v5695
        %v5756 = vunpack.c.l.b16 %v5698
        %v5757 = vunpack.c.l.b16 %v5702
        %v5758 = vunpack.c.l.b16 %v5705
        %v5759 = vunpack.c.l.b16 %v5709
        %v5760 = vunpack.c.l.b16 %v5712
        %v5761 = vunpack.c.l.b16 %v5716
        %v5762 = vunpack.c.l.b16 %v5719
        %v5763 = vunpack.c.l.b16 %v5723
        %v5764 = vunpack.c.l.b16 %v5726
        %v5765 = vunpack.c.l.b16 %v5730
        %v5766 = vunpack.c.l.b16 %v5733
        %v5767 = vpack.c.b16 %v5752, %v5751
        %v5768 = vpack.c.b16 %v5754, %v5753
        %v5769 = vpack.c.b16 %v5756, %v5755
        %v5770 = vpack.c.b16 %v5758, %v5757
        %v5771 = vpack.c.b16 %v5760, %v5759
        %v5772 = vpack.c.b16 %v5762, %v5761
        %v5773 = vpack.c.b16 %v5764, %v5763
        %v5774 = vpack.c.b16 %v5766, %v5765
        %v5799 = vunpack.c.l.b16 %v5735
        %v5800 = vunpack.c.l.b16 %v5736
        %v5801 = vunpack.c.l.b16 %v5737
        %v5802 = vunpack.c.l.b16 %v5738
        %v5803 = vunpack.c.l.b16 %v5739
        %v5804 = vunpack.c.l.b16 %v5740
        %v5805 = vunpack.c.l.b16 %v5741
        %v5806 = vunpack.c.l.b16 %v5742
        %v5807 = vunpack.c.l.b16 %v5743
        %v5808 = vunpack.c.l.b16 %v5744
        %v5809 = vunpack.c.l.b16 %v5745
        %v5810 = vunpack.c.l.b16 %v5746
        %v5811 = vunpack.c.l.b16 %v5747
        %v5812 = vunpack.c.l.b16 %v5748
        %v5813 = vunpack.c.l.b16 %v5749
        %v5814 = vunpack.c.l.b16 %v5750
        %v5815 = vpack.c.b16 %v5800, %v5799
        %v5816 = vpack.c.b16 %v5802, %v5801
        %v5817 = vpack.c.b16 %v5804, %v5803
        %v5818 = vpack.c.b16 %v5806, %v5805
        %v5819 = vpack.c.b16 %v5808, %v5807
        %v5820 = vpack.c.b16 %v5810, %v5809
        %v5821 = vpack.c.b16 %v5812, %v5811
        %v5822 = vpack.c.b16 %v5814, %v5813
        %5831 = vmatprep.subr.bf16.mxu0 0
        %5832 = vmatpush1.bf16.msra.mxu0 %v5815
        %5833 = vmatprep.subr.bf16.mxu0 0
        %5834 = vmatpush1.bf16.msra.mxu0 %v5816
        %5835 = vmatprep.subr.bf16.mxu0 0
        %5836 = vmatpush1.bf16.msra.mxu0 %v5817
        %5837 = vmatprep.subr.bf16.mxu0 0
        %5838 = vmatpush1.bf16.msra.mxu0 %v5818
        %5839 = vmatprep.subr.bf16.mxu0 0
        %5840 = vmatpush1.bf16.msra.mxu0 %v5819
        %5841 = vmatprep.subr.bf16.mxu0 0
        %5842 = vmatpush1.bf16.msra.mxu0 %v5820
        %5843 = vmatprep.subr.bf16.mxu0 0
        %5844 = vmatpush1.bf16.msra.mxu0 %v5821
        %5845 = vmatprep.subr.bf16.mxu0 0
        %5846 = vmatpush1.bf16.msra.mxu0 %v5822
        %5847 = vmatprep.subr.bf16.mxu0 0
        %5848 = vmatpush1.bf16.msra.mxu0 0
        %5849 = vmatprep.subr.bf16.mxu0 0
        %5850 = vmatpush1.bf16.msra.mxu0 0
        %5851 = vmatprep.subr.bf16.mxu0 0
        %5852 = vmatpush1.bf16.msra.mxu0 0
        %5853 = vmatprep.subr.bf16.mxu0 0
        %5854 = vmatpush1.bf16.msra.mxu0 0
        %5855 = vmatprep.subr.bf16.mxu0 0
        %5856 = vmatpush1.bf16.msra.mxu0 0
        %5857 = vmatprep.subr.bf16.mxu0 0
        %5858 = vmatpush1.bf16.msra.mxu0 0
        %5859 = vmatprep.subr.bf16.mxu0 0
        %5860 = vmatpush1.bf16.msra.mxu0 0
        %5861 = vmatprep.subr.bf16.mxu0 0
        %5862 = vmatpush1.bf16.msra.mxu0 0
        %5863 = vmatprep.mubr.bf16.mxu0 0
        %5864 = vmatmul.mubr.bf16.gmra.mrb[0].mxu0 %v5767
        %v5865 = vpop.f32.mrb[0].mxu0
        %v5866 = vadd.f32 0.0, %v5865
        %v5867 = vpop.f32.mrb[0].mxu0
        %v5868 = vpop.f32.mrb[0].mxu0
        %v5869 = vadd.f32 0.0, %v5868
        %v5870 = vpop.f32.mrb[0].mxu0
        %5871 = vmatprep.mubr.bf16.mxu0 0
        %5872 = vmatmul.mubr.bf16.gmra.mrb[0].mxu0 %v5768
        %v5873 = vpop.f32.mrb[0].mxu0
        %v5874 = vadd.f32 0.0, %v5873
        %v5875 = vpop.f32.mrb[0].mxu0
        %v5876 = vpop.f32.mrb[0].mxu0
        %v5877 = vadd.f32 0.0, %v5876
        %v5878 = vpop.f32.mrb[0].mxu0
        %5879 = vmatprep.mubr.bf16.mxu0 0
        %5880 = vmatmul.mubr.bf16.gmra.mrb[0].mxu0 %v5769
        %v5881 = vpop.f32.mrb[0].mxu0
        %v5882 = vadd.f32 0.0, %v5881
        %v5883 = vpop.f32.mrb[0].mxu0
        %v5884 = vpop.f32.mrb[0].mxu0
        %v5885 = vadd.f32 0.0, %v5884
        %v5886 = vpop.f32.mrb[0].mxu0
        %5887 = vmatprep.mubr.bf16.mxu0 0
        %5888 = vmatmul.mubr.bf16.gmra.mrb[0].mxu0 %v5770
        %v5889 = vpop.f32.mrb[0].mxu0
        %v5890 = vadd.f32 0.0, %v5889
        %v5891 = vpop.f32.mrb[0].mxu0
        %v5892 = vpop.f32.mrb[0].mxu0
        %v5893 = vadd.f32 0.0, %v5892
        %v5894 = vpop.f32.mrb[0].mxu0
        %5895 = vmatprep.mubr.bf16.mxu0 0
        %5896 = vmatmul.mubr.bf16.gmra.mrb[0].mxu0 %v5771
        %v5897 = vpop.f32.mrb[0].mxu0
        %v5898 = vadd.f32 0.0, %v5897
        %v5899 = vpop.f32.mrb[0].mxu0
        %v5900 = vpop.f32.mrb[0].mxu0
        %v5901 = vadd.f32 0.0, %v5900
        %v5902 = vpop.f32.mrb[0].mxu0
        %5903 = vmatprep.mubr.bf16.mxu0 0
        %5904 = vmatmul.mubr.bf16.gmra.mrb[0].mxu0 %v5772
        %v5905 = vpop.f32.mrb[0].mxu0
        %v5906 = vadd.f32 0.0, %v5905
        %v5907 = vpop.f32.mrb[0].mxu0
        %v5908 = vpop.f32.mrb[0].mxu0
        %v5909 = vadd.f32 0.0, %v5908
        %v5910 = vpop.f32.mrb[0].mxu0
        %5911 = vmatprep.mubr.bf16.mxu0 0
        %5912 = vmatmul.mubr.bf16.gmra.mrb[0].mxu0 %v5773
        %v5913 = vpop.f32.mrb[0].mxu0
        %v5914 = vadd.f32 0.0, %v5913
        %v5915 = vpop.f32.mrb[0].mxu0
        %v5916 = vpop.f32.mrb[0].mxu0
        %v5917 = vadd.f32 0.0, %v5916
        %v5918 = vpop.f32.mrb[0].mxu0
        %5919 = vmatprep.mubr.bf16.mxu0 0
        %5920 = vmatmul.mubr.bf16.gmra.mrb[0].mxu0 %v5774
        %v5921 = vpop.f32.mrb[0].mxu0
        %v5922 = vadd.f32 0.0, %v5921
        %v5923 = vpop.f32.mrb[0].mxu0
        %v5924 = vpop.f32.mrb[0].mxu0
        %v5925 = vadd.f32 0.0, %v5924
        %v5926 = vpop.f32.mrb[0].mxu0
        %5927 = vdwg.mxu0
        %v5928 = vadd.f32 %v5630, %v5866
        %v5929 = vadd.f32 %v5631, %v5869
        %v5930 = vadd.f32 %v5632, %v5874
        %v5931 = vadd.f32 %v5633, %v5877
        %v5932 = vadd.f32 %v5634, %v5882
        %v5933 = vadd.f32 %v5635, %v5885
        %v5934 = vadd.f32 %v5636, %v5890
        %v5935 = vadd.f32 %v5637, %v5893
        %v5936 = vadd.f32 %v5638, %v5898
        %v5937 = vadd.f32 %v5639, %v5901
        %v5938 = vadd.f32 %v5640, %v5906
        %v5939 = vadd.f32 %v5641, %v5909
        %v5940 = vadd.f32 %v5642, %v5914
        %v5941 = vadd.f32 %v5643, %v5917
        %v5942 = vadd.f32 %v5644, %v5922
        %v5943 = vadd.f32 %v5645, %v5925
        %s5944 = scalar_lea.vmem [#allocation2], 24
        %v5945 = vld [vmem:[%s5944] sm:$0xf]
        %v5946 = vld [vmem:[%s5944 + $0x4] sm:$0xf]
        %v5947 = vld [vmem:[%s5944 + $0xc] sm:$0xf]
        %v5948 = vld [vmem:[%s5944 + $0x10] sm:$0xf]
        %v5949 = vld [vmem:[%s5944 + $0x18] sm:$0xf]
        %v5950 = vld [vmem:[%s5944 + $0x1c] sm:$0xf]
        %v5951 = vld [vmem:[%s5944 + $0x24] sm:$0xf]
        %v5952 = vld [vmem:[%s5944 + $0x28] sm:$0xf]
        %v5953 = vld [vmem:[%s5944 + $0x30] sm:$0xf]
        %v5954 = vld [vmem:[%s5944 + $0x34] sm:$0xf]
        %v5955 = vld [vmem:[%s5944 + $0x3c] sm:$0xf]
        %v5956 = vld [vmem:[%s5944 + $0x40] sm:$0xf]
        %v5957 = vld [vmem:[%s5944 + $0x48] sm:$0xf]
        %v5958 = vld [vmem:[%s5944 + $0x4c] sm:$0xf]
        %v5959 = vld [vmem:[%s5944 + $0x54] sm:$0xf]
        %v5960 = vld [vmem:[%s5944 + $0x58] sm:$0xf]
        %s5961 = scalar_lea.vmem [#allocation3], 384
        %v5962 = vld [vmem:[%s5961] sm:$0xf]
        %v5963 = vld [vmem:[%s5961 + $0x4] sm:$0xf]
        %v5964 = vld [vmem:[%s5961 + $0x8] sm:$0xf]
        %v5965 = vld [vmem:[%s5961 + $0xc] sm:$0xf]
        %v5966 = vld [vmem:[%s5961 + $0x10] sm:$0xf]
        %v5967 = vld [vmem:[%s5961 + $0x14] sm:$0xf]
        %v5968 = vld [vmem:[%s5961 + $0x18] sm:$0xf]
        %v5969 = vld [vmem:[%s5961 + $0x1c] sm:$0xf]
        %v5970 = vld [vmem:[%s5961 + $0x20] sm:$0xf]
        %v5971 = vld [vmem:[%s5961 + $0x24] sm:$0xf]
        %v5972 = vld [vmem:[%s5961 + $0x28] sm:$0xf]
        %v5973 = vld [vmem:[%s5961 + $0x2c] sm:$0xf]
        %v5974 = vld [vmem:[%s5961 + $0x30] sm:$0xf]
        %v5975 = vld [vmem:[%s5961 + $0x34] sm:$0xf]
        %v5976 = vld [vmem:[%s5961 + $0x38] sm:$0xf]
        %v5977 = vld [vmem:[%s5961 + $0x3c] sm:$0xf]
        %v5994 = vunpack.c.l.b16 %v5945
        %v5995 = vunpack.c.l.b16 %v5946
        %v5996 = vunpack.c.l.b16 %v5947
        %v5997 = vunpack.c.l.b16 %v5948
        %v5998 = vunpack.c.l.b16 %v5949
        %v5999 = vunpack.c.l.b16 %v5950
        %v6000 = vunpack.c.l.b16 %v5951
        %v6001 = vunpack.c.l.b16 %v5952
        %v6002 = vunpack.c.l.b16 %v5953
        %v6003 = vunpack.c.l.b16 %v5954
        %v6004 = vunpack.c.l.b16 %v5955
        %v6005 = vunpack.c.l.b16 %v5956
        %v6006 = vunpack.c.l.b16 %v5957
        %v6007 = vunpack.c.l.b16 %v5958
        %v6008 = vunpack.c.l.b16 %v5959
        %v6009 = vunpack.c.l.b16 %v5960
        %v6010 = vpack.c.b16 %v5995, %v5994
        %v6011 = vpack.c.b16 %v5997, %v5996
        %v6012 = vpack.c.b16 %v5999, %v5998
        %v6013 = vpack.c.b16 %v6001, %v6000
        %v6014 = vpack.c.b16 %v6003, %v6002
        %v6015 = vpack.c.b16 %v6005, %v6004
        %v6016 = vpack.c.b16 %v6007, %v6006
        %v6017 = vpack.c.b16 %v6009, %v6008
        %v6042 = vunpack.c.l.b16 %v5962
        %v6043 = vunpack.c.l.b16 %v5963
        %v6044 = vunpack.c.l.b16 %v5964
        %v6045 = vunpack.c.l.b16 %v5965
        %v6046 = vunpack.c.l.b16 %v5966
        %v6047 = vunpack.c.l.b16 %v5967
        %v6048 = vunpack.c.l.b16 %v5968
        %v6049 = vunpack.c.l.b16 %v5969
        %v6050 = vunpack.c.l.b16 %v5970
        %v6051 = vunpack.c.l.b16 %v5971
        %v6052 = vunpack.c.l.b16 %v5972
        %v6053 = vunpack.c.l.b16 %v5973
        %v6054 = vunpack.c.l.b16 %v5974
        %v6055 = vunpack.c.l.b16 %v5975
        %v6056 = vunpack.c.l.b16 %v5976
        %v6057 = vunpack.c.l.b16 %v5977
        %v6058 = vpack.c.b16 %v6043, %v6042
        %v6059 = vpack.c.b16 %v6045, %v6044
        %v6060 = vpack.c.b16 %v6047, %v6046
        %v6061 = vpack.c.b16 %v6049, %v6048
        %v6062 = vpack.c.b16 %v6051, %v6050
        %v6063 = vpack.c.b16 %v6053, %v6052
        %v6064 = vpack.c.b16 %v6055, %v6054
        %v6065 = vpack.c.b16 %v6057, %v6056
        %6074 = vmatprep.subr.bf16.mxu0 0
        %6075 = vmatpush1.bf16.msra.mxu0 %v6058
        %6076 = vmatprep.subr.bf16.mxu0 0
        %6077 = vmatpush1.bf16.msra.mxu0 %v6059
        %6078 = vmatprep.subr.bf16.mxu0 0
        %6079 = vmatpush1.bf16.msra.mxu0 %v6060
        %6080 = vmatprep.subr.bf16.mxu0 0
        %6081 = vmatpush1.bf16.msra.mxu0 %v6061
        %6082 = vmatprep.subr.bf16.mxu0 0
        %6083 = vmatpush1.bf16.msra.mxu0 %v6062
        %6084 = vmatprep.subr.bf16.mxu0 0
        %6085 = vmatpush1.bf16.msra.mxu0 %v6063
        %6086 = vmatprep.subr.bf16.mxu0 0
        %6087 = vmatpush1.bf16.msra.mxu0 %v6064
        %6088 = vmatprep.subr.bf16.mxu0 0
        %6089 = vmatpush1.bf16.msra.mxu0 %v6065
        %6090 = vmatprep.subr.bf16.mxu0 0
        %6091 = vmatpush1.bf16.msra.mxu0 0
        %6092 = vmatprep.subr.bf16.mxu0 0
        %6093 = vmatpush1.bf16.msra.mxu0 0
        %6094 = vmatprep.subr.bf16.mxu0 0
        %6095 = vmatpush1.bf16.msra.mxu0 0
        %6096 = vmatprep.subr.bf16.mxu0 0
        %6097 = vmatpush1.bf16.msra.mxu0 0
        %6098 = vmatprep.subr.bf16.mxu0 0
        %6099 = vmatpush1.bf16.msra.mxu0 0
        %6100 = vmatprep.subr.bf16.mxu0 0
        %6101 = vmatpush1.bf16.msra.mxu0 0
        %6102 = vmatprep.subr.bf16.mxu0 0
        %6103 = vmatpush1.bf16.msra.mxu0 0
        %6104 = vmatprep.subr.bf16.mxu0 0
        %6105 = vmatpush1.bf16.msra.mxu0 0
        %6106 = vmatprep.mubr.bf16.mxu0 0
        %6107 = vmatmul.mubr.bf16.gmra.mrb[0].mxu0 %v6010
        %v6108 = vpop.f32.mrb[0].mxu0
        %v6109 = vadd.f32 0.0, %v6108
        %v6110 = vpop.f32.mrb[0].mxu0
        %v6111 = vpop.f32.mrb[0].mxu0
        %v6112 = vadd.f32 0.0, %v6111
        %v6113 = vpop.f32.mrb[0].mxu0
        %6114 = vmatprep.mubr.bf16.mxu0 0
        %6115 = vmatmul.mubr.bf16.gmra.mrb[0].mxu0 %v6011
        %v6116 = vpop.f32.mrb[0].mxu0
        %v6117 = vadd.f32 0.0, %v6116
        %v6118 = vpop.f32.mrb[0].mxu0
        %v6119 = vpop.f32.mrb[0].mxu0
        %v6120 = vadd.f32 0.0, %v6119
        %v6121 = vpop.f32.mrb[0].mxu0
        %6122 = vmatprep.mubr.bf16.mxu0 0
        %6123 = vmatmul.mubr.bf16.gmra.mrb[0].mxu0 %v6012
        %v6124 = vpop.f32.mrb[0].mxu0
        %v6125 = vadd.f32 0.0, %v6124
        %v6126 = vpop.f32.mrb[0].mxu0
        %v6127 = vpop.f32.mrb[0].mxu0
        %v6128 = vadd.f32 0.0, %v6127
        %v6129 = vpop.f32.mrb[0].mxu0
        %6130 = vmatprep.mubr.bf16.mxu0 0
        %6131 = vmatmul.mubr.bf16.gmra.mrb[0].mxu0 %v6013
        %v6132 = vpop.f32.mrb[0].mxu0
        %v6133 = vadd.f32 0.0, %v6132
        %v6134 = vpop.f32.mrb[0].mxu0
        %v6135 = vpop.f32.mrb[0].mxu0
        %v6136 = vadd.f32 0.0, %v6135
        %v6137 = vpop.f32.mrb[0].mxu0
        %6138 = vmatprep.mubr.bf16.mxu0 0
        %6139 = vmatmul.mubr.bf16.gmra.mrb[0].mxu0 %v6014
        %v6140 = vpop.f32.mrb[0].mxu0
        %v6141 = vadd.f32 0.0, %v6140
        %v6142 = vpop.f32.mrb[0].mxu0
        %v6143 = vpop.f32.mrb[0].mxu0
        %v6144 = vadd.f32 0.0, %v6143
        %v6145 = vpop.f32.mrb[0].mxu0
        %6146 = vmatprep.mubr.bf16.mxu0 0
        %6147 = vmatmul.mubr.bf16.gmra.mrb[0].mxu0 %v6015
        %v6148 = vpop.f32.mrb[0].mxu0
        %v6149 = vadd.f32 0.0, %v6148
        %v6150 = vpop.f32.mrb[0].mxu0
        %v6151 = vpop.f32.mrb[0].mxu0
        %v6152 = vadd.f32 0.0, %v6151
        %v6153 = vpop.f32.mrb[0].mxu0
        %6154 = vmatprep.mubr.bf16.mxu0 0
        %6155 = vmatmul.mubr.bf16.gmra.mrb[0].mxu0 %v6016
        %v6156 = vpop.f32.mrb[0].mxu0
        %v6157 = vadd.f32 0.0, %v6156
        %v6158 = vpop.f32.mrb[0].mxu0
        %v6159 = vpop.f32.mrb[0].mxu0
        %v6160 = vadd.f32 0.0, %v6159
        %v6161 = vpop.f32.mrb[0].mxu0
        %6162 = vmatprep.mubr.bf16.mxu0 0
        %6163 = vmatmul.mubr.bf16.gmra.mrb[0].mxu0 %v6017
        %v6164 = vpop.f32.mrb[0].mxu0
        %v6165 = vadd.f32 0.0, %v6164
        %v6166 = vpop.f32.mrb[0].mxu0
        %v6167 = vpop.f32.mrb[0].mxu0
        %v6168 = vadd.f32 0.0, %v6167
        %v6169 = vpop.f32.mrb[0].mxu0
        %6170 = vdwg.mxu0
        %v6171 = vadd.f32 %v5928, %v6109
        %v6172 = vadd.f32 %v5929, %v6112
        %v6173 = vadd.f32 %v5930, %v6117
        %v6174 = vadd.f32 %v5931, %v6120
        %v6175 = vadd.f32 %v5932, %v6125
        %v6176 = vadd.f32 %v5933, %v6128
        %v6177 = vadd.f32 %v5934, %v6133
        %v6178 = vadd.f32 %v5935, %v6136
        %v6179 = vadd.f32 %v5936, %v6141
        %v6180 = vadd.f32 %v5937, %v6144
        %v6181 = vadd.f32 %v5938, %v6149
        %v6182 = vadd.f32 %v5939, %v6152
        %v6183 = vadd.f32 %v5940, %v6157
        %v6184 = vadd.f32 %v5941, %v6160
        %v6185 = vadd.f32 %v5942, %v6165
        %v6186 = vadd.f32 %v5943, %v6168
        %v6187 = vld [vmem:[%s5944] sm:$0xf]
        %v6188 = vld [vmem:[%s5944 + $0x4] sm:$0xf]
        %v6189 = vld [vmem:[%s5944 + $0x8] sm:$0x1]
        %v6190 = vld [vmem:[%s5944 + $0xc] sm:$0xf]
        %v6191 = vld [vmem:[%s5944 + $0x10] sm:$0xf]
        %v6192 = vld [vmem:[%s5944 + $0x14] sm:$0x1]
        %v6193 = vld [vmem:[%s5944 + $0x18] sm:$0xf]
        %v6194 = vld [vmem:[%s5944 + $0x1c] sm:$0xf]
        %v6195 = vld [vmem:[%s5944 + $0x20] sm:$0x1]
        %v6196 = vld [vmem:[%s5944 + $0x24] sm:$0xf]
        %v6197 = vld [vmem:[%s5944 + $0x28] sm:$0xf]
        %v6198 = vld [vmem:[%s5944 + $0x2c] sm:$0x1]
        %v6199 = vld [vmem:[%s5944 + $0x30] sm:$0xf]
        %v6200 = vld [vmem:[%s5944 + $0x34] sm:$0xf]
        %v6201 = vld [vmem:[%s5944 + $0x38] sm:$0x1]
        %v6202 = vld [vmem:[%s5944 + $0x3c] sm:$0xf]
        %v6203 = vld [vmem:[%s5944 + $0x40] sm:$0xf]
        %v6204 = vld [vmem:[%s5944 + $0x44] sm:$0x1]
        %v6205 = vld [vmem:[%s5944 + $0x48] sm:$0xf]
        %v6206 = vld [vmem:[%s5944 + $0x4c] sm:$0xf]
        %v6207 = vld [vmem:[%s5944 + $0x50] sm:$0x1]
        %v6208 = vld [vmem:[%s5944 + $0x54] sm:$0xf]
        %v6209 = vld [vmem:[%s5944 + $0x58] sm:$0xf]
        %v6210 = vld [vmem:[%s5944 + $0x5c] sm:$0x1]
        %v6212 = vshrl.u32 %v6187, 16
        %v6214 = vrot.slane %v6212, 4
        %v6215 = vshll.u32 %v6187, 16
        %v6217 = vrot.slane %v6215, 5
        %v6218 = vor.u32 %v6214, %v6217
        %v6219 = vrot.slane %v6218, 4
        %v6221 = vshll.u32 %v6188, 16
        %v6223 = vrot.slane %v6221, 5
        %v6224 = vsel %vm316, %v6219, %v6223
        %v6225 = vshrl.u32 %v6188, 16
        %v6227 = vrot.slane %v6225, 4
        %v6228 = vor.u32 %v6227, %v6223
        %v6229 = vrot.slane %v6228, 4
        %v6231 = vshll.u32 %v6189, 16
        %v6233 = vrot.slane %v6231, 5
        %v6234 = vsel %vm316, %v6229, %v6233
        %v6236 = vshrl.u32 %v6190, 16
        %v6238 = vrot.slane %v6236, 4
        %v6239 = vshll.u32 %v6190, 16
        %v6241 = vrot.slane %v6239, 5
        %v6242 = vor.u32 %v6238, %v6241
        %v6243 = vrot.slane %v6242, 4
        %v6245 = vshll.u32 %v6191, 16
        %v6247 = vrot.slane %v6245, 5
        %v6248 = vsel %vm316, %v6243, %v6247
        %v6249 = vshrl.u32 %v6191, 16
        %v6251 = vrot.slane %v6249, 4
        %v6252 = vor.u32 %v6251, %v6247
        %v6253 = vrot.slane %v6252, 4
        %v6255 = vshll.u32 %v6192, 16
        %v6257 = vrot.slane %v6255, 5
        %v6258 = vsel %vm316, %v6253, %v6257
        %v6260 = vshrl.u32 %v6193, 16
        %v6262 = vrot.slane %v6260, 4
        %v6263 = vshll.u32 %v6193, 16
        %v6265 = vrot.slane %v6263, 5
        %v6266 = vor.u32 %v6262, %v6265
        %v6267 = vrot.slane %v6266, 4
        %v6269 = vshll.u32 %v6194, 16
        %v6271 = vrot.slane %v6269, 5
        %v6272 = vsel %vm316, %v6267, %v6271
        %v6273 = vshrl.u32 %v6194, 16
        %v6275 = vrot.slane %v6273, 4
        %v6276 = vor.u32 %v6275, %v6271
        %v6277 = vrot.slane %v6276, 4
        %v6279 = vshll.u32 %v6195, 16
        %v6281 = vrot.slane %v6279, 5
        %v6282 = vsel %vm316, %v6277, %v6281
        %v6284 = vshrl.u32 %v6196, 16
        %v6286 = vrot.slane %v6284, 4
        %v6287 = vshll.u32 %v6196, 16
        %v6289 = vrot.slane %v6287, 5
        %v6290 = vor.u32 %v6286, %v6289
        %v6291 = vrot.slane %v6290, 4
        %v6293 = vshll.u32 %v6197, 16
        %v6295 = vrot.slane %v6293, 5
        %v6296 = vsel %vm316, %v6291, %v6295
        %v6297 = vshrl.u32 %v6197, 16
        %v6299 = vrot.slane %v6297, 4
        %v6300 = vor.u32 %v6299, %v6295
        %v6301 = vrot.slane %v6300, 4
        %v6303 = vshll.u32 %v6198, 16
        %v6305 = vrot.slane %v6303, 5
        %v6306 = vsel %vm316, %v6301, %v6305
        %v6308 = vshrl.u32 %v6199, 16
        %v6310 = vrot.slane %v6308, 4
        %v6311 = vshll.u32 %v6199, 16
        %v6313 = vrot.slane %v6311, 5
        %v6314 = vor.u32 %v6310, %v6313
        %v6315 = vrot.slane %v6314, 4
        %v6317 = vshll.u32 %v6200, 16
        %v6319 = vrot.slane %v6317, 5
        %v6320 = vsel %vm316, %v6315, %v6319
        %v6321 = vshrl.u32 %v6200, 16
        %v6323 = vrot.slane %v6321, 4
        %v6324 = vor.u32 %v6323, %v6319
        %v6325 = vrot.slane %v6324, 4
        %v6327 = vshll.u32 %v6201, 16
        %v6329 = vrot.slane %v6327, 5
        %v6330 = vsel %vm316, %v6325, %v6329
        %v6332 = vshrl.u32 %v6202, 16
        %v6334 = vrot.slane %v6332, 4
        %v6335 = vshll.u32 %v6202, 16
        %v6337 = vrot.slane %v6335, 5
        %v6338 = vor.u32 %v6334, %v6337
        %v6339 = vrot.slane %v6338, 4
        %v6341 = vshll.u32 %v6203, 16
        %v6343 = vrot.slane %v6341, 5
        %v6344 = vsel %vm316, %v6339, %v6343
        %v6345 = vshrl.u32 %v6203, 16
        %v6347 = vrot.slane %v6345, 4
        %v6348 = vor.u32 %v6347, %v6343
        %v6349 = vrot.slane %v6348, 4
        %v6351 = vshll.u32 %v6204, 16
        %v6353 = vrot.slane %v6351, 5
        %v6354 = vsel %vm316, %v6349, %v6353
        %v6356 = vshrl.u32 %v6205, 16
        %v6358 = vrot.slane %v6356, 4
        %v6359 = vshll.u32 %v6205, 16
        %v6361 = vrot.slane %v6359, 5
        %v6362 = vor.u32 %v6358, %v6361
        %v6363 = vrot.slane %v6362, 4
        %v6365 = vshll.u32 %v6206, 16
        %v6367 = vrot.slane %v6365, 5
        %v6368 = vsel %vm316, %v6363, %v6367
        %v6369 = vshrl.u32 %v6206, 16
        %v6371 = vrot.slane %v6369, 4
        %v6372 = vor.u32 %v6371, %v6367
        %v6373 = vrot.slane %v6372, 4
        %v6375 = vshll.u32 %v6207, 16
        %v6377 = vrot.slane %v6375, 5
        %v6378 = vsel %vm316, %v6373, %v6377
        %v6380 = vshrl.u32 %v6208, 16
        %v6382 = vrot.slane %v6380, 4
        %v6383 = vshll.u32 %v6208, 16
        %v6385 = vrot.slane %v6383, 5
        %v6386 = vor.u32 %v6382, %v6385
        %v6387 = vrot.slane %v6386, 4
        %v6389 = vshll.u32 %v6209, 16
        %v6391 = vrot.slane %v6389, 5
        %v6392 = vsel %vm316, %v6387, %v6391
        %v6393 = vshrl.u32 %v6209, 16
        %v6395 = vrot.slane %v6393, 4
        %v6396 = vor.u32 %v6395, %v6391
        %v6397 = vrot.slane %v6396, 4
        %v6399 = vshll.u32 %v6210, 16
        %v6401 = vrot.slane %v6399, 5
        %v6402 = vsel %vm316, %v6397, %v6401
        %s6403 = scalar_lea.vmem [#allocation3], 448
        %v6404 = vld [vmem:[%s6403] sm:$0xf]
        %v6405 = vld [vmem:[%s6403 + $0x4] sm:$0xf]
        %v6406 = vld [vmem:[%s6403 + $0x8] sm:$0xf]
        %v6407 = vld [vmem:[%s6403 + $0xc] sm:$0xf]
        %v6408 = vld [vmem:[%s6403 + $0x10] sm:$0xf]
        %v6409 = vld [vmem:[%s6403 + $0x14] sm:$0xf]
        %v6410 = vld [vmem:[%s6403 + $0x18] sm:$0xf]
        %v6411 = vld [vmem:[%s6403 + $0x1c] sm:$0xf]
        %v6412 = vld [vmem:[%s6403 + $0x20] sm:$0xf]
        %v6413 = vld [vmem:[%s6403 + $0x24] sm:$0xf]
        %v6414 = vld [vmem:[%s6403 + $0x28] sm:$0xf]
        %v6415 = vld [vmem:[%s6403 + $0x2c] sm:$0xf]
        %v6416 = vld [vmem:[%s6403 + $0x30] sm:$0xf]
        %v6417 = vld [vmem:[%s6403 + $0x34] sm:$0xf]
        %v6418 = vld [vmem:[%s6403 + $0x38] sm:$0xf]
        %v6419 = vld [vmem:[%s6403 + $0x3c] sm:$0xf]
        %v6420 = vunpack.c.l.b16 %v6224
        %v6421 = vunpack.c.l.b16 %v6234
        %v6422 = vunpack.c.l.b16 %v6248
        %v6423 = vunpack.c.l.b16 %v6258
        %v6424 = vunpack.c.l.b16 %v6272
        %v6425 = vunpack.c.l.b16 %v6282
        %v6426 = vunpack.c.l.b16 %v6296
        %v6427 = vunpack.c.l.b16 %v6306
        %v6428 = vunpack.c.l.b16 %v6320
        %v6429 = vunpack.c.l.b16 %v6330
        %v6430 = vunpack.c.l.b16 %v6344
        %v6431 = vunpack.c.l.b16 %v6354
        %v6432 = vunpack.c.l.b16 %v6368
        %v6433 = vunpack.c.l.b16 %v6378
        %v6434 = vunpack.c.l.b16 %v6392
        %v6435 = vunpack.c.l.b16 %v6402
        %v6436 = vpack.c.b16 %v6421, %v6420
        %v6437 = vpack.c.b16 %v6423, %v6422
        %v6438 = vpack.c.b16 %v6425, %v6424
        %v6439 = vpack.c.b16 %v6427, %v6426
        %v6440 = vpack.c.b16 %v6429, %v6428
        %v6441 = vpack.c.b16 %v6431, %v6430
        %v6442 = vpack.c.b16 %v6433, %v6432
        %v6443 = vpack.c.b16 %v6435, %v6434
        %v6468 = vunpack.c.l.b16 %v6404
        %v6469 = vunpack.c.l.b16 %v6405
        %v6470 = vunpack.c.l.b16 %v6406
        %v6471 = vunpack.c.l.b16 %v6407
        %v6472 = vunpack.c.l.b16 %v6408
        %v6473 = vunpack.c.l.b16 %v6409
        %v6474 = vunpack.c.l.b16 %v6410
        %v6475 = vunpack.c.l.b16 %v6411
        %v6476 = vunpack.c.l.b16 %v6412
        %v6477 = vunpack.c.l.b16 %v6413
        %v6478 = vunpack.c.l.b16 %v6414
        %v6479 = vunpack.c.l.b16 %v6415
        %v6480 = vunpack.c.l.b16 %v6416
        %v6481 = vunpack.c.l.b16 %v6417
        %v6482 = vunpack.c.l.b16 %v6418
        %v6483 = vunpack.c.l.b16 %v6419
        %v6484 = vpack.c.b16 %v6469, %v6468
        %v6485 = vpack.c.b16 %v6471, %v6470
        %v6486 = vpack.c.b16 %v6473, %v6472
        %v6487 = vpack.c.b16 %v6475, %v6474
        %v6488 = vpack.c.b16 %v6477, %v6476
        %v6489 = vpack.c.b16 %v6479, %v6478
        %v6490 = vpack.c.b16 %v6481, %v6480
        %v6491 = vpack.c.b16 %v6483, %v6482
        %6500 = vmatprep.subr.bf16.mxu0 0
        %6501 = vmatpush1.bf16.msra.mxu0 %v6484
        %6502 = vmatprep.subr.bf16.mxu0 0
        %6503 = vmatpush1.bf16.msra.mxu0 %v6485
        %6504 = vmatprep.subr.bf16.mxu0 0
        %6505 = vmatpush1.bf16.msra.mxu0 %v6486
        %6506 = vmatprep.subr.bf16.mxu0 0
        %6507 = vmatpush1.bf16.msra.mxu0 %v6487
        %6508 = vmatprep.subr.bf16.mxu0 0
        %6509 = vmatpush1.bf16.msra.mxu0 %v6488
        %6510 = vmatprep.subr.bf16.mxu0 0
        %6511 = vmatpush1.bf16.msra.mxu0 %v6489
        %6512 = vmatprep.subr.bf16.mxu0 0
        %6513 = vmatpush1.bf16.msra.mxu0 %v6490
        %6514 = vmatprep.subr.bf16.mxu0 0
        %6515 = vmatpush1.bf16.msra.mxu0 %v6491
        %6516 = vmatprep.subr.bf16.mxu0 0
        %6517 = vmatpush1.bf16.msra.mxu0 0
        %6518 = vmatprep.subr.bf16.mxu0 0
        %6519 = vmatpush1.bf16.msra.mxu0 0
        %6520 = vmatprep.subr.bf16.mxu0 0
        %6521 = vmatpush1.bf16.msra.mxu0 0
        %6522 = vmatprep.subr.bf16.mxu0 0
        %6523 = vmatpush1.bf16.msra.mxu0 0
        %6524 = vmatprep.subr.bf16.mxu0 0
        %6525 = vmatpush1.bf16.msra.mxu0 0
        %6526 = vmatprep.subr.bf16.mxu0 0
        %6527 = vmatpush1.bf16.msra.mxu0 0
        %6528 = vmatprep.subr.bf16.mxu0 0
        %6529 = vmatpush1.bf16.msra.mxu0 0
        %6530 = vmatprep.subr.bf16.mxu0 0
        %6531 = vmatpush1.bf16.msra.mxu0 0
        %6532 = vmatprep.mubr.bf16.mxu0 0
        %6533 = vmatmul.mubr.bf16.gmra.mrb[0].mxu0 %v6436
        %v6534 = vpop.f32.mrb[0].mxu0
        %v6535 = vadd.f32 0.0, %v6534
        %v6536 = vpop.f32.mrb[0].mxu0
        %v6537 = vpop.f32.mrb[0].mxu0
        %v6538 = vadd.f32 0.0, %v6537
        %v6539 = vpop.f32.mrb[0].mxu0
        %6540 = vmatprep.mubr.bf16.mxu0 0
        %6541 = vmatmul.mubr.bf16.gmra.mrb[0].mxu0 %v6437
        %v6542 = vpop.f32.mrb[0].mxu0
        %v6543 = vadd.f32 0.0, %v6542
        %v6544 = vpop.f32.mrb[0].mxu0
        %v6545 = vpop.f32.mrb[0].mxu0
        %v6546 = vadd.f32 0.0, %v6545
        %v6547 = vpop.f32.mrb[0].mxu0
        %6548 = vmatprep.mubr.bf16.mxu0 0
        %6549 = vmatmul.mubr.bf16.gmra.mrb[0].mxu0 %v6438
        %v6550 = vpop.f32.mrb[0].mxu0
        %v6551 = vadd.f32 0.0, %v6550
        %v6552 = vpop.f32.mrb[0].mxu0
        %v6553 = vpop.f32.mrb[0].mxu0
        %v6554 = vadd.f32 0.0, %v6553
        %v6555 = vpop.f32.mrb[0].mxu0
        %6556 = vmatprep.mubr.bf16.mxu0 0
        %6557 = vmatmul.mubr.bf16.gmra.mrb[0].mxu0 %v6439
        %v6558 = vpop.f32.mrb[0].mxu0
        %v6559 = vadd.f32 0.0, %v6558
        %v6560 = vpop.f32.mrb[0].mxu0
        %v6561 = vpop.f32.mrb[0].mxu0
        %v6562 = vadd.f32 0.0, %v6561
        %v6563 = vpop.f32.mrb[0].mxu0
        %6564 = vmatprep.mubr.bf16.mxu0 0
        %6565 = vmatmul.mubr.bf16.gmra.mrb[0].mxu0 %v6440
        %v6566 = vpop.f32.mrb[0].mxu0
        %v6567 = vadd.f32 0.0, %v6566
        %v6568 = vpop.f32.mrb[0].mxu0
        %v6569 = vpop.f32.mrb[0].mxu0
        %v6570 = vadd.f32 0.0, %v6569
        %v6571 = vpop.f32.mrb[0].mxu0
        %6572 = vmatprep.mubr.bf16.mxu0 0
        %6573 = vmatmul.mubr.bf16.gmra.mrb[0].mxu0 %v6441
        %v6574 = vpop.f32.mrb[0].mxu0
        %v6575 = vadd.f32 0.0, %v6574
        %v6576 = vpop.f32.mrb[0].mxu0
        %v6577 = vpop.f32.mrb[0].mxu0
        %v6578 = vadd.f32 0.0, %v6577
        %v6579 = vpop.f32.mrb[0].mxu0
        %6580 = vmatprep.mubr.bf16.mxu0 0
        %6581 = vmatmul.mubr.bf16.gmra.mrb[0].mxu0 %v6442
        %v6582 = vpop.f32.mrb[0].mxu0
        %v6583 = vadd.f32 0.0, %v6582
        %v6584 = vpop.f32.mrb[0].mxu0
        %v6585 = vpop.f32.mrb[0].mxu0
        %v6586 = vadd.f32 0.0, %v6585
        %v6587 = vpop.f32.mrb[0].mxu0
        %6588 = vmatprep.mubr.bf16.mxu0 0
        %6589 = vmatmul.mubr.bf16.gmra.mrb[0].mxu0 %v6443
        %v6590 = vpop.f32.mrb[0].mxu0
        %v6591 = vadd.f32 0.0, %v6590
        %v6592 = vpop.f32.mrb[0].mxu0
        %v6593 = vpop.f32.mrb[0].mxu0
        %v6594 = vadd.f32 0.0, %v6593
        %v6595 = vpop.f32.mrb[0].mxu0
        %6596 = vdwg.mxu0
        %v6597 = vadd.f32 %v6171, %v6535
        %v6598 = vadd.f32 %v6172, %v6538
        %v6599 = vadd.f32 %v6173, %v6543
        %v6600 = vadd.f32 %v6174, %v6546
        %v6601 = vadd.f32 %v6175, %v6551
        %v6602 = vadd.f32 %v6176, %v6554
        %v6603 = vadd.f32 %v6177, %v6559
        %v6604 = vadd.f32 %v6178, %v6562
        %v6605 = vadd.f32 %v6179, %v6567
        %v6606 = vadd.f32 %v6180, %v6570
        %v6607 = vadd.f32 %v6181, %v6575
        %v6608 = vadd.f32 %v6182, %v6578
        %v6609 = vadd.f32 %v6183, %v6583
        %v6610 = vadd.f32 %v6184, %v6586
        %v6611 = vadd.f32 %v6185, %v6591
        %v6612 = vadd.f32 %v6186, %v6594
        %v6613 = vld [vmem:[%s5944] sm:$0xe]
        %v6614 = vld [vmem:[%s5944 + $0xc] sm:$0xe]
        %v6615 = vld [vmem:[%s5944 + $0x18] sm:$0xe]
        %v6616 = vld [vmem:[%s5944 + $0x24] sm:$0xe]
        %v6617 = vld [vmem:[%s5944 + $0x30] sm:$0xe]
        %v6618 = vld [vmem:[%s5944 + $0x3c] sm:$0xe]
        %v6619 = vld [vmem:[%s5944 + $0x48] sm:$0xe]
        %v6620 = vld [vmem:[%s5944 + $0x54] sm:$0xe]
        %v6645 = vrot.slane %v6613, 5
        %v6646 = vrot.slane %v6645, 4
        %v6647 = vrot.slane %v6188, 5
        %v6648 = vsel %vm1028, %v6646, %v6647
        %v6649 = vrot.slane %v6647, 4
        %v6650 = vrot.slane %v6189, 5
        %v6651 = vsel %vm1028, %v6649, %v6650
        %v6652 = vrot.slane %v6614, 5
        %v6653 = vrot.slane %v6652, 4
        %v6654 = vrot.slane %v6191, 5
        %v6655 = vsel %vm1028, %v6653, %v6654
        %v6656 = vrot.slane %v6654, 4
        %v6657 = vrot.slane %v6192, 5
        %v6658 = vsel %vm1028, %v6656, %v6657
        %v6659 = vrot.slane %v6615, 5
        %v6660 = vrot.slane %v6659, 4
        %v6661 = vrot.slane %v6194, 5
        %v6662 = vsel %vm1028, %v6660, %v6661
        %v6663 = vrot.slane %v6661, 4
        %v6664 = vrot.slane %v6195, 5
        %v6665 = vsel %vm1028, %v6663, %v6664
        %v6666 = vrot.slane %v6616, 5
        %v6667 = vrot.slane %v6666, 4
        %v6668 = vrot.slane %v6197, 5
        %v6669 = vsel %vm1028, %v6667, %v6668
        %v6670 = vrot.slane %v6668, 4
        %v6671 = vrot.slane %v6198, 5
        %v6672 = vsel %vm1028, %v6670, %v6671
        %v6673 = vrot.slane %v6617, 5
        %v6674 = vrot.slane %v6673, 4
        %v6675 = vrot.slane %v6200, 5
        %v6676 = vsel %vm1028, %v6674, %v6675
        %v6677 = vrot.slane %v6675, 4
        %v6678 = vrot.slane %v6201, 5
        %v6679 = vsel %vm1028, %v6677, %v6678
        %v6680 = vrot.slane %v6618, 5
        %v6681 = vrot.slane %v6680, 4
        %v6682 = vrot.slane %v6203, 5
        %v6683 = vsel %vm1028, %v6681, %v6682
        %v6684 = vrot.slane %v6682, 4
        %v6685 = vrot.slane %v6204, 5
        %v6686 = vsel %vm1028, %v6684, %v6685
        %v6687 = vrot.slane %v6619, 5
        %v6688 = vrot.slane %v6687, 4
        %v6689 = vrot.slane %v6206, 5
        %v6690 = vsel %vm1028, %v6688, %v6689
        %v6691 = vrot.slane %v6689, 4
        %v6692 = vrot.slane %v6207, 5
        %v6693 = vsel %vm1028, %v6691, %v6692
        %v6694 = vrot.slane %v6620, 5
        %v6695 = vrot.slane %v6694, 4
        %v6696 = vrot.slane %v6209, 5
        %v6697 = vsel %vm1028, %v6695, %v6696
        %v6698 = vrot.slane %v6696, 4
        %v6699 = vrot.slane %v6210, 5
        %v6700 = vsel %vm1028, %v6698, %v6699
        %s6701 = scalar_lea.vmem [#allocation3], 512
        %v6702 = vld [vmem:[%s6701] sm:$0xf]
        %v6703 = vld [vmem:[%s6701 + $0x4] sm:$0xf]
        %v6704 = vld [vmem:[%s6701 + $0x8] sm:$0xf]
        %v6705 = vld [vmem:[%s6701 + $0xc] sm:$0xf]
        %v6706 = vld [vmem:[%s6701 + $0x10] sm:$0xf]
        %v6707 = vld [vmem:[%s6701 + $0x14] sm:$0xf]
        %v6708 = vld [vmem:[%s6701 + $0x18] sm:$0xf]
        %v6709 = vld [vmem:[%s6701 + $0x1c] sm:$0xf]
        %v6710 = vld [vmem:[%s6701 + $0x20] sm:$0xf]
        %v6711 = vld [vmem:[%s6701 + $0x24] sm:$0xf]
        %v6712 = vld [vmem:[%s6701 + $0x28] sm:$0xf]
        %v6713 = vld [vmem:[%s6701 + $0x2c] sm:$0xf]
        %v6714 = vld [vmem:[%s6701 + $0x30] sm:$0xf]
        %v6715 = vld [vmem:[%s6701 + $0x34] sm:$0xf]
        %v6716 = vld [vmem:[%s6701 + $0x38] sm:$0xf]
        %v6717 = vld [vmem:[%s6701 + $0x3c] sm:$0xf]
        %v6718 = vunpack.c.l.b16 %v6648
        %v6719 = vunpack.c.l.b16 %v6651
        %v6720 = vunpack.c.l.b16 %v6655
        %v6721 = vunpack.c.l.b16 %v6658
        %v6722 = vunpack.c.l.b16 %v6662
        %v6723 = vunpack.c.l.b16 %v6665
        %v6724 = vunpack.c.l.b16 %v6669
        %v6725 = vunpack.c.l.b16 %v6672
        %v6726 = vunpack.c.l.b16 %v6676
        %v6727 = vunpack.c.l.b16 %v6679
        %v6728 = vunpack.c.l.b16 %v6683
        %v6729 = vunpack.c.l.b16 %v6686
        %v6730 = vunpack.c.l.b16 %v6690
        %v6731 = vunpack.c.l.b16 %v6693
        %v6732 = vunpack.c.l.b16 %v6697
        %v6733 = vunpack.c.l.b16 %v6700
        %v6734 = vpack.c.b16 %v6719, %v6718
        %v6735 = vpack.c.b16 %v6721, %v6720
        %v6736 = vpack.c.b16 %v6723, %v6722
        %v6737 = vpack.c.b16 %v6725, %v6724
        %v6738 = vpack.c.b16 %v6727, %v6726
        %v6739 = vpack.c.b16 %v6729, %v6728
        %v6740 = vpack.c.b16 %v6731, %v6730
        %v6741 = vpack.c.b16 %v6733, %v6732
        %v6766 = vunpack.c.l.b16 %v6702
        %v6767 = vunpack.c.l.b16 %v6703
        %v6768 = vunpack.c.l.b16 %v6704
        %v6769 = vunpack.c.l.b16 %v6705
        %v6770 = vunpack.c.l.b16 %v6706
        %v6771 = vunpack.c.l.b16 %v6707
        %v6772 = vunpack.c.l.b16 %v6708
        %v6773 = vunpack.c.l.b16 %v6709
        %v6774 = vunpack.c.l.b16 %v6710
        %v6775 = vunpack.c.l.b16 %v6711
        %v6776 = vunpack.c.l.b16 %v6712
        %v6777 = vunpack.c.l.b16 %v6713
        %v6778 = vunpack.c.l.b16 %v6714
        %v6779 = vunpack.c.l.b16 %v6715
        %v6780 = vunpack.c.l.b16 %v6716
        %v6781 = vunpack.c.l.b16 %v6717
        %v6782 = vpack.c.b16 %v6767, %v6766
        %v6783 = vpack.c.b16 %v6769, %v6768
        %v6784 = vpack.c.b16 %v6771, %v6770
        %v6785 = vpack.c.b16 %v6773, %v6772
        %v6786 = vpack.c.b16 %v6775, %v6774
        %v6787 = vpack.c.b16 %v6777, %v6776
        %v6788 = vpack.c.b16 %v6779, %v6778
        %v6789 = vpack.c.b16 %v6781, %v6780
        %6798 = vmatprep.subr.bf16.mxu0 0
        %6799 = vmatpush1.bf16.msra.mxu0 %v6782
        %6800 = vmatprep.subr.bf16.mxu0 0
        %6801 = vmatpush1.bf16.msra.mxu0 %v6783
        %6802 = vmatprep.subr.bf16.mxu0 0
        %6803 = vmatpush1.bf16.msra.mxu0 %v6784
        %6804 = vmatprep.subr.bf16.mxu0 0
        %6805 = vmatpush1.bf16.msra.mxu0 %v6785
        %6806 = vmatprep.subr.bf16.mxu0 0
        %6807 = vmatpush1.bf16.msra.mxu0 %v6786
        %6808 = vmatprep.subr.bf16.mxu0 0
        %6809 = vmatpush1.bf16.msra.mxu0 %v6787
        %6810 = vmatprep.subr.bf16.mxu0 0
        %6811 = vmatpush1.bf16.msra.mxu0 %v6788
        %6812 = vmatprep.subr.bf16.mxu0 0
        %6813 = vmatpush1.bf16.msra.mxu0 %v6789
        %6814 = vmatprep.subr.bf16.mxu0 0
        %6815 = vmatpush1.bf16.msra.mxu0 0
        %6816 = vmatprep.subr.bf16.mxu0 0
        %6817 = vmatpush1.bf16.msra.mxu0 0
        %6818 = vmatprep.subr.bf16.mxu0 0
        %6819 = vmatpush1.bf16.msra.mxu0 0
        %6820 = vmatprep.subr.bf16.mxu0 0
        %6821 = vmatpush1.bf16.msra.mxu0 0
        %6822 = vmatprep.subr.bf16.mxu0 0
        %6823 = vmatpush1.bf16.msra.mxu0 0
        %6824 = vmatprep.subr.bf16.mxu0 0
        %6825 = vmatpush1.bf16.msra.mxu0 0
        %6826 = vmatprep.subr.bf16.mxu0 0
        %6827 = vmatpush1.bf16.msra.mxu0 0
        %6828 = vmatprep.subr.bf16.mxu0 0
        %6829 = vmatpush1.bf16.msra.mxu0 0
        %6830 = vmatprep.mubr.bf16.mxu0 0
        %6831 = vmatmul.mubr.bf16.gmra.mrb[0].mxu0 %v6734
        %v6832 = vpop.f32.mrb[0].mxu0
        %v6833 = vadd.f32 0.0, %v6832
        %v6834 = vpop.f32.mrb[0].mxu0
        %v6835 = vpop.f32.mrb[0].mxu0
        %v6836 = vadd.f32 0.0, %v6835
        %v6837 = vpop.f32.mrb[0].mxu0
        %6838 = vmatprep.mubr.bf16.mxu0 0
        %6839 = vmatmul.mubr.bf16.gmra.mrb[0].mxu0 %v6735
        %v6840 = vpop.f32.mrb[0].mxu0
        %v6841 = vadd.f32 0.0, %v6840
        %v6842 = vpop.f32.mrb[0].mxu0
        %v6843 = vpop.f32.mrb[0].mxu0
        %v6844 = vadd.f32 0.0, %v6843
        %v6845 = vpop.f32.mrb[0].mxu0
        %6846 = vmatprep.mubr.bf16.mxu0 0
        %6847 = vmatmul.mubr.bf16.gmra.mrb[0].mxu0 %v6736
        %v6848 = vpop.f32.mrb[0].mxu0
        %v6849 = vadd.f32 0.0, %v6848
        %v6850 = vpop.f32.mrb[0].mxu0
        %v6851 = vpop.f32.mrb[0].mxu0
        %v6852 = vadd.f32 0.0, %v6851
        %v6853 = vpop.f32.mrb[0].mxu0
        %6854 = vmatprep.mubr.bf16.mxu0 0
        %6855 = vmatmul.mubr.bf16.gmra.mrb[0].mxu0 %v6737
        %v6856 = vpop.f32.mrb[0].mxu0
        %v6857 = vadd.f32 0.0, %v6856
        %v6858 = vpop.f32.mrb[0].mxu0
        %v6859 = vpop.f32.mrb[0].mxu0
        %v6860 = vadd.f32 0.0, %v6859
        %v6861 = vpop.f32.mrb[0].mxu0
        %6862 = vmatprep.mubr.bf16.mxu0 0
        %6863 = vmatmul.mubr.bf16.gmra.mrb[0].mxu0 %v6738
        %v6864 = vpop.f32.mrb[0].mxu0
        %v6865 = vadd.f32 0.0, %v6864
        %v6866 = vpop.f32.mrb[0].mxu0
        %v6867 = vpop.f32.mrb[0].mxu0
        %v6868 = vadd.f32 0.0, %v6867
        %v6869 = vpop.f32.mrb[0].mxu0
        %6870 = vmatprep.mubr.bf16.mxu0 0
        %6871 = vmatmul.mubr.bf16.gmra.mrb[0].mxu0 %v6739
        %v6872 = vpop.f32.mrb[0].mxu0
        %v6873 = vadd.f32 0.0, %v6872
        %v6874 = vpop.f32.mrb[0].mxu0
        %v6875 = vpop.f32.mrb[0].mxu0
        %v6876 = vadd.f32 0.0, %v6875
        %v6877 = vpop.f32.mrb[0].mxu0
        %6878 = vmatprep.mubr.bf16.mxu0 0
        %6879 = vmatmul.mubr.bf16.gmra.mrb[0].mxu0 %v6740
        %v6880 = vpop.f32.mrb[0].mxu0
        %v6881 = vadd.f32 0.0, %v6880
        %v6882 = vpop.f32.mrb[0].mxu0
        %v6883 = vpop.f32.mrb[0].mxu0
        %v6884 = vadd.f32 0.0, %v6883
        %v6885 = vpop.f32.mrb[0].mxu0
        %6886 = vmatprep.mubr.bf16.mxu0 0
        %6887 = vmatmul.mubr.bf16.gmra.mrb[0].mxu0 %v6741
        %v6888 = vpop.f32.mrb[0].mxu0
        %v6889 = vadd.f32 0.0, %v6888
        %v6890 = vpop.f32.mrb[0].mxu0
        %v6891 = vpop.f32.mrb[0].mxu0
        %v6892 = vadd.f32 0.0, %v6891
        %v6893 = vpop.f32.mrb[0].mxu0
        %6894 = vdwg.mxu0
        %v6895 = vadd.f32 %v6597, %v6833
        %v6896 = vadd.f32 %v6598, %v6836
        %v6897 = vadd.f32 %v6599, %v6841
        %v6898 = vadd.f32 %v6600, %v6844
        %v6899 = vadd.f32 %v6601, %v6849
        %v6900 = vadd.f32 %v6602, %v6852
        %v6901 = vadd.f32 %v6603, %v6857
        %v6902 = vadd.f32 %v6604, %v6860
        %v6903 = vadd.f32 %v6605, %v6865
        %v6904 = vadd.f32 %v6606, %v6868
        %v6905 = vadd.f32 %v6607, %v6873
        %v6906 = vadd.f32 %v6608, %v6876
        %v6907 = vadd.f32 %v6609, %v6881
        %v6908 = vadd.f32 %v6610, %v6884
        %v6909 = vadd.f32 %v6611, %v6889
        %v6910 = vadd.f32 %v6612, %v6892
        %v6911 = vld [vmem:[%s4] sm:$0x1]
        %v6913 = vlaneseq
        %v6914 = vshrl.u32 %v6913, 7
        %v6915 = vsub.s32 0, %v6914
        %v6916 = vrot.slane %v6911, %v6915
        %v6918 = vadd.f32 %v6895, %v6916
        %v6919 = vadd.f32 %v6896, %v6916
        %v6920 = vadd.f32 %v6897, %v6916
        %v6921 = vadd.f32 %v6898, %v6916
        %v6922 = vadd.f32 %v6899, %v6916
        %v6923 = vadd.f32 %v6900, %v6916
        %v6924 = vadd.f32 %v6901, %v6916
        %v6925 = vadd.f32 %v6902, %v6916
        %v6926 = vadd.f32 %v6903, %v6916
        %v6927 = vadd.f32 %v6904, %v6916
        %v6928 = vadd.f32 %v6905, %v6916
        %v6929 = vadd.f32 %v6906, %v6916
        %v6930 = vadd.f32 %v6907, %v6916
        %v6931 = vadd.f32 %v6908, %v6916
        %v6932 = vadd.f32 %v6909, %v6916
        %v6933 = vadd.f32 %v6910, %v6916
        %v6934 = vmax.f32 %v6918, 0.0
        %v6935 = vmax.f32 %v6919, 0.0
        %v6936 = vmax.f32 %v6920, 0.0
        %v6937 = vmax.f32 %v6921, 0.0
        %v6938 = vmax.f32 %v6922, 0.0
        %v6939 = vmax.f32 %v6923, 0.0
        %v6940 = vmax.f32 %v6924, 0.0
        %v6941 = vmax.f32 %v6925, 0.0
        %v6942 = vmax.f32 %v6926, 0.0
        %v6943 = vmax.f32 %v6927, 0.0
        %v6944 = vmax.f32 %v6928, 0.0
        %v6945 = vmax.f32 %v6929, 0.0
        %v6946 = vmax.f32 %v6930, 0.0
        %v6947 = vmax.f32 %v6931, 0.0
        %v6948 = vmax.f32 %v6932, 0.0
        %v6949 = vmax.f32 %v6933, 0.0
        %6950 = vst [vmem:[%s256] sm:$0xff] %v6934
        %6951 = vst [vmem:[%s256 + $0x8] sm:$0xff] %v6935
        %6952 = vst [vmem:[%s256 + $0x10] sm:$0xff] %v6936
        %6953 = vst [vmem:[%s256 + $0x18] sm:$0xff] %v6937
        %6954 = vst [vmem:[%s256 + $0x20] sm:$0xff] %v6938
        %6955 = vst [vmem:[%s256 + $0x28] sm:$0xff] %v6939
        %6956 = vst [vmem:[%s256 + $0x30] sm:$0xff] %v6940
        %6957 = vst [vmem:[%s256 + $0x38] sm:$0xff] %v6941
        %6958 = vst [vmem:[%s256 + $0x40] sm:$0xff] %v6942
        %6959 = vst [vmem:[%s256 + $0x48] sm:$0xff] %v6943
        %6960 = vst [vmem:[%s256 + $0x50] sm:$0xff] %v6944
        %6961 = vst [vmem:[%s256 + $0x58] sm:$0xff] %v6945
        %6962 = vst [vmem:[%s256 + $0x60] sm:$0xff] %v6946
        %6963 = vst [vmem:[%s256 + $0x68] sm:$0xff] %v6947
        %6964 = vst [vmem:[%s256 + $0x70] sm:$0xff] %v6948
        %6965 = vst [vmem:[%s256 + $0x78] sm:$0xff] %v6949
        %s6966 = sand.u32 %s156, 1
        %s6967 = scalar_lea.sflag [#allocation5], %s6966
        %s6968 = sand.u32 %s156, 1
        %s6969 = smul.addr %s6968, 128
        %s6970 = scalar_lea.vmem [#allocation6], %s6969
        // Predicated region
        $region53: #{tpu_custom_call.1} parent=39 // pred_check
          %p6971 = pneg %p166
        $region54: #{tpu_custom_call.1} parent=39 // pred_check_branch
          %6973 = sbr.rel (%p6971) target = $region56
        $region55: #{tpu_custom_call.1} parent=39 // pred_region
          %s6974 = smul.u32 8, %s25
          %s6976 = ssub.s32 2048, 2048
          %6977 = vsyncadd %s6967, %s6976
          %s6978 = smul.addr %s6974, 2
          %s6979 = smul.addr %s24, 32
          %s6980 = sadd.s32 %s6978, %s6979
          %s6981 = smul.addr %s6980, 128
          %s6982 = scalar_lea.hbm %s5, %s6981
          %s6983 = sshll.u32 %s6970, 4
          %s6984 = int_to_ptr.vmem [resolvable:$true] %s6983
          %6989 = dma.vmem_to_hbm [thread:$0]  %s6984, 2048, %s6982, %s6967, 128, 128, 8
        $region56: #{tpu_custom_call.1} parent=39 // pred_fallthru
          _
      $region40: #{tpu_custom_call.1} parent=5 // pred_fallthru
        _
      %p6990 = scmp.le.s32.totalorder 2, %s15
      // Predicated region
      $region57: #{tpu_custom_call.1} parent=5 // pred_check
        %p6991 = pneg %p6990
      $region58: #{tpu_custom_call.1} parent=5 // pred_check_branch
        %6993 = sbr.rel (%p6991) target = $region60
      $region59: #{tpu_custom_call.1} parent=5 // pred_region
        %s6994 = ssub.s32 %s15, 2
        // Predicated region
        $region61: #{tpu_custom_call.1} parent=59 // pred_check
          %p6995 = pneg %p172
        $region62: #{tpu_custom_call.1} parent=59 // pred_check_branch
          %6997 = sbr.rel (%p6995) target = $region64
        $region63: #{tpu_custom_call.1} parent=59 // pred_region
          %s6998 = sand.u32 %s157, 1
          %s6999 = scalar_lea.sflag [#allocation5], %s6998
          %s7000 = sand.u32 %s157, 1
          %s7001 = smul.addr %s7000, 128
          %s7002 = scalar_lea.vmem [#allocation6], %s7001
          %7003 = dma.done %s6999, 2048
        $region64: #{tpu_custom_call.1} parent=59 // pred_fallthru
          _
      $region60: #{tpu_custom_call.1} parent=5 // pred_fallthru
        _
    $region6: #{tpu_custom_call.1} parent=1 // loop_footer
      %s19 = sadd.s32 1, %s15
    $region7: #{tpu_custom_call.1} parent=1 // loop_footer_branch
      %14 = sbr.rel target = $region3
    $region8: #{tpu_custom_call.1} parent=1 // loop_exit
      _
    %7004 = vsyncpa [#allocation4], 1
    %s7005 = scalar_lea.sflag [#allocation4], 1
    %7006 = vsyncpa %s7005, 1
    %7007 = vsyncpa [#allocation5], 1
    %s7008 = scalar_lea.sflag [#allocation5], 1
    %7009 = vsyncpa %s7008, 1

</llo_original>
